<compile_context>
chip_gen: v7x
topology: tpu7x:2x2x1
jax: 0.10.0
libtpu: 0.0.40
codegen_flags: <defaults>
</compile_context>

<pallas_src>
import functools

import jax
import jax.numpy as jnp
from jax.experimental import pallas as pl
from jax.experimental.pallas import tpu as pltpu

N_UNITS_1 = 500
N_UNITS_2 = 500
N_UNITS_3 = 2000

_LANE = 128
_SUBLANE = 8


def _round_up(n, m):
    return ((n + m - 1) // m) * m


def _cdiv(a, b):
    return -(-a // b)


def _device_kind():
    try:
        return jax.devices()[0].device_kind.lower()
    except Exception:
        return ""


def _default_bf16_epilogue():
    # bf16 VPU epilogues pay off on v6e/v7x; v5e and older have no bf16 VPU.
    k = _device_kind()
    return ("v6" in k) or ("v7" in k)


def _default_min_grid():
    # v7x has 2 TensorCores per chip -> keep at least 2 "parallel" grid steps.
    return 2 if "v7" in _device_kind() else 1


def _pad2d(a, rows, cols, dtype):
    """Zero-pad a 2-D array to (rows, cols) and cast to dtype."""
    out = jnp.zeros((rows, cols), dtype)
    return out.at[: a.shape[0], : a.shape[1]].set(a.astype(dtype))


def _pad_bias(b, cols, dtype):
    """Zero-pad a bias (1-D or 2-D) to (1, cols) and cast to dtype."""
    b2 = jnp.asarray(b).reshape(1, -1)
    return _pad2d(b2, 1, cols, dtype)


def _pick_batch_tile(B, batch_tile, min_grid):
    Bp8 = _round_up(B, _SUBLANE)
    tb = min(_round_up(batch_tile, _SUBLANE), Bp8)
    if min_grid > 1 and Bp8 >= min_grid * _SUBLANE:
        # Cap the tile so the batch grid keeps >= min_grid steps (v7x megacore).
        tb = min(tb, _round_up(_cdiv(Bp8, min_grid), _SUBLANE))
    return max(_SUBLANE, tb)


def _mlp_kernel(x_ref, w1_ref, b1_ref, w2_ref, b2_ref, w3_ref, b3_ref,
                w4_ref, b4_ref, out_ref):
    tb = x_ref.shape[0]
    # Split the batch tile into two sub-chunks (static unroll) so the LLO
    # scheduler can overlap sub-chunk j+1's MXU pushes with sub-chunk j's
    # VPU bias/ReLU epilogue.
    n_sub = 2 if (tb % 2 == 0 and tb // 2 >= 64) else 1
    sub = tb // n_sub

    def hidden(h, w_ref, b_ref):
        # Epilogue dtype (bf16 on v6e/v7x, f32 on v5e) is carried by the bias
        # dtype.  The MXU accumulates in f32 internally in either case.
        ep = b_ref.dtype
        o = jnp.dot(h, w_ref[...], preferred_element_type=ep)
        o = jnp.maximum(o + b_ref[...], 0.0)
        return o.astype(jnp.bfloat16)   # no-op when the epilogue is bf16

    for c in range(n_sub):   # static unroll
        r0 = c * sub
        h = x_ref[r0:r0 + sub, :]
        h = hidden(h, w1_ref, b1_ref)            # fc1 + ReLU
        h = hidden(h, w2_ref, b2_ref)            # fc2 + ReLU
        h = hidden(h, w3_ref, b3_ref)            # fc3 + ReLU
        o = jnp.dot(h, w4_ref[...], preferred_element_type=jnp.float32)  # fc4
        out_ref[r0:r0 + sub, :] = (o + b4_ref[...]).astype(out_ref.dtype)


def prepare_params(params, *, bf16_epilogue=None):
    """Pad/cast parameters ONCE (hoisted out of the per-call jitted path).

    Weights -> bf16, zero-padded to multiples of 128 on both dims (exact for a
    ReLU MLP).  fc1-fc3 biases are cast to the epilogue dtype (bf16 on v6e/v7x,
    f32 on v5e); fc4's bias stays f32 so the final layer is f32 end to end.
    """
    if bf16_epilogue is None:
        bf16_epilogue = _default_bf16_epilogue()
    ep = jnp.bfloat16 if bf16_epilogue else jnp.float32

    (w1, b1), (w2, b2), (w3, b3), (w4, b4) = params
    D = w1.shape[0]

    Dp = _round_up(D, _LANE)
    N1p = _round_up(N_UNITS_1, _LANE)   # 512
    N2p = _round_up(N_UNITS_2, _LANE)   # 512
    N3p = _round_up(N_UNITS_3, _LANE)   # 2048
    NCp = _round_up(w4.shape[1], _LANE)

    return (
        _pad2d(w1, Dp, N1p, jnp.bfloat16), _pad_bias(b1, N1p, ep),
        _pad2d(w2, N1p, N2p, jnp.bfloat16), _pad_bias(b2, N2p, ep),
        _pad2d(w3, N2p, N3p, jnp.bfloat16), _pad_bias(b3, N3p, ep),
        _pad2d(w4, N3p, NCp, jnp.bfloat16), _pad_bias(b4, NCp, jnp.float32),
    )


@functools.partial(jax.jit,
                   static_argnames=("n_components", "batch_tile", "min_grid"))
def simple_net_forward(x, padded_params, *, n_components, batch_tile=256,
                       min_grid=1):
    """x: (B, ...) — flattened to (B, D) like x.view(x.shape[0], -1)."""
    B = x.shape[0]
    x2d = x.reshape(B, -1)
    D = x2d.shape[1]

    w1p, b1p, w2p, b2p, w3p, b3p, w4p, b4p = padded_params
    Dp = w1p.shape[0]
    N1p, N2p, N3p, NCp = w1p.shape[1], w2p.shape[1], w3p.shape[1], w4p.shape[1]
    assert Dp == _round_up(D, _LANE), "padded params do not match input dim"

    # Batch tiling: multiple of 8, capped at batch_tile; >= min_grid steps.
    tb = _pick_batch_tile(B, batch_tile, min_grid)
    Bp = _round_up(B, tb)

    # Pad/cast the input straight to bf16 (zero-padding is exact for a ReLU
    # MLP; padded batch rows are sliced off below).
    xp = _pad2d(x2d, Bp, Dp, jnp.bfloat16)

    full = lambda i: (0, 0)          # weights / biases: fully resident
    rowtile = lambda i: (i, 0)       # batch-tiled activations / output

    flops = 2 * Bp * (Dp * N1p + N1p * N2p + N2p * N3p + N3p * NCp)
    bytes_accessed = (
        Bp * Dp * 2
        + sum(int(a.size) * a.dtype.itemsize for a in padded_params)
        + Bp * NCp * 4)

    out = pl.pallas_call(
        _mlp_kernel,
        out_shape=jax.ShapeDtypeStruct((Bp, NCp), jnp.float32),
        grid_spec=pltpu.PrefetchScalarGridSpec(
            num_scalar_prefetch=0,
            grid=(Bp // tb,),
            in_specs=[
                pl.BlockSpec((tb, Dp), rowtile),
                pl.BlockSpec((Dp, N1p), full),
                pl.BlockSpec((1, N1p), full),
                pl.BlockSpec((N1p, N2p), full),
                pl.BlockSpec((1, N2p), full),
                pl.BlockSpec((N2p, N3p), full),
                pl.BlockSpec((1, N3p), full),
                pl.BlockSpec((N3p, NCp), full),
                pl.BlockSpec((1, NCp), full),
            ],
            out_specs=pl.BlockSpec((tb, NCp), rowtile),
        ),
        compiler_params=pltpu.CompilerParams(
            dimension_semantics=("parallel",),
            vmem_limit_bytes=32 * 1024 * 1024,
        ),
        cost_estimate=pl.CostEstimate(
            flops=flops, transcendentals=0, bytes_accessed=bytes_accessed),
    )(xp, w1p, b1p, w2p, b2p, w3p, b3p, w4p, b4p)

    # Strip batch / n_components padding.
    return out[:B, :n_components]


def init_params(key, input_size, n_components):
    """Deterministic init mimicking torch.nn.Linear default U(-1/sqrt(in), 1/sqrt(in)).

    Weights are stored as (in_features, out_features)."""
    dims = [(input_size, N_UNITS_1),
            (N_UNITS_1, N_UNITS_2),
            (N_UNITS_2, N_UNITS_3),
            (N_UNITS_3, n_components)]
    params = []
    for (fan_in, fan_out) in dims:
        key, kw, kb = jax.random.split(key, 3)
        bound = 1.0 / jnp.sqrt(fan_in)
        w = jax.random.uniform(kw, (fan_in, fan_out), jnp.float32, -bound, bound)
        b = jax.random.uniform(kb, (1, fan_out), jnp.float32, -bound, bound)
        params.append((w, b))
    return params


def reference_forward_f32(x, params):
    """Plain-JAX f32 reference matching SimpleNet.forward semantics."""
    h = x.reshape(x.shape[0], -1).astype(jnp.float32)
    (w1, b1), (w2, b2), (w3, b3), (w4, b4) = params
    h = jnp.maximum(h @ w1 + b1, 0.0)
    h = jnp.maximum(h @ w2 + b2, 0.0)
    h = jnp.maximum(h @ w3 + b3, 0.0)
    return h @ w4 + b4


def reference_forward_matched(x, params, *, bf16_epilogue):
    """Plain-JAX reference replicating the kernel's mixed-precision recipe."""
    ep = jnp.bfloat16 if bf16_epilogue else jnp.float32
    (w1, b1), (w2, b2), (w3, b3), (w4, b4) = params
    h = x.reshape(x.shape[0], -1).astype(jnp.bfloat16)

    def hidden(h, w, b):
        o = jnp.dot(h, w.astype(jnp.bfloat16), preferred_element_type=ep)
        o = jnp.maximum(o + jnp.asarray(b).reshape(1, -1).astype(ep), 0.0)
        return o.astype(jnp.bfloat16)

    h = hidden(h, w1, b1)
    h = hidden(h, w2, b2)
    h = hidden(h, w3, b3)
    o = jnp.dot(h, w4.astype(jnp.bfloat16), preferred_element_type=jnp.float32)
    return o + jnp.asarray(b4).reshape(1, -1).astype(jnp.float32)


if __name__ == "__main__":
    key = jax.random.PRNGKey(0)
    k_in, k_in2, k_par = jax.random.split(key, 3)

    # Small shapes: batch=4, (C,H,W)=(3,8,8) -> D=192, n_components=30
    # (deliberately not multiples of 128 to exercise the padding path).
    B, C, H, W = 4, 3, 8, 8
    D = C * H * W
    n_components = 30

    x = jax.random.normal(k_in, (B, C, H, W), dtype=jnp.float32)
    params = init_params(k_par, D, n_components)

    bf16_ep = _default_bf16_epilogue()
    min_grid = _default_min_grid()
    padded = prepare_params(params, bf16_epilogue=bf16_ep)   # once, outside jit

    out = simple_net_forward(x, padded, n_components=n_components,
                             min_grid=min_grid)
    out = jax.block_until_ready(out)
    assert out.shape == (B, n_components)

    # Exact-recipe check (same mixed-precision math outside Pallas).
    ref_m = reference_forward_matched(x, params, bf16_epilogue=bf16_ep)
    assert jnp.allclose(out, ref_m, atol=2e-2, rtol=2e-2), \
        "mismatch vs precision-matched reference"

    # Semantic check vs the original f32 forward pass (bf16 quantization slack).
    ref_f32 = reference_forward_f32(x, params)
    assert jnp.allclose(out, ref_f32, atol=7.5e-2, rtol=7.5e-2), \
        "mismatch vs f32 reference"

    # Larger batch: exercises tb=256, a multi-step (grid > 1) pipeline and the
    # in-kernel sub-chunking path.
    B2 = 512
    x2 = jax.random.normal(k_in2, (B2, C, H, W), dtype=jnp.float32)
    out2 = jax.block_until_ready(
        simple_net_forward(x2, padded, n_components=n_components,
                           min_grid=min_grid))
    assert out2.shape == (B2, n_components)
    ref2 = reference_forward_f32(x2, params)
    assert jnp.allclose(out2, ref2, atol=7.5e-2, rtol=7.5e-2), \
        "mismatch vs f32 reference (tiled batch)"

    print("KERNEL_OK")
</pallas_src>

<mosaic_0001>
module attributes {stable_mosaic.version = 11 : i64} {
  func.func @_mlp_kernel(%arg0: i32, %arg1: memref<8x256xbf16, #tpu.memory_space<vmem>>, %arg2: memref<256x512xbf16, #tpu.memory_space<vmem>>, %arg3: memref<1x512xf32, #tpu.memory_space<vmem>>, %arg4: memref<512x512xbf16, #tpu.memory_space<vmem>>, %arg5: memref<1x512xf32, #tpu.memory_space<vmem>>, %arg6: memref<512x2048xbf16, #tpu.memory_space<vmem>>, %arg7: memref<1x2048xf32, #tpu.memory_space<vmem>>, %arg8: memref<2048x128xbf16, #tpu.memory_space<vmem>>, %arg9: memref<1x128xf32, #tpu.memory_space<vmem>>, %arg10: memref<8x128xf32, #tpu.memory_space<vmem>>) attributes {dimension_semantics = [#tpu.dimension_semantics<parallel>], iteration_bounds = array<i64: 1>, scalar_prefetch = 0 : i64, scratch_operands = 0 : i64, tpu.core_type = #tpu.core_type<tc>, window_params = [{transform_indices = @transform_0, window_bounds = array<i64: 8, 256>}, {pipeline_mode = #tpu.pipeline_mode<synchronous>, transform_indices = @transform_1, window_bounds = array<i64: 256, 512>}, {pipeline_mode = #tpu.pipeline_mode<synchronous>, transform_indices = @transform_2, window_bounds = array<i64: 1, 512>}, {pipeline_mode = #tpu.pipeline_mode<synchronous>, transform_indices = @transform_3, window_bounds = array<i64: 512, 512>}, {pipeline_mode = #tpu.pipeline_mode<synchronous>, transform_indices = @transform_4, window_bounds = array<i64: 1, 512>}, {pipeline_mode = #tpu.pipeline_mode<synchronous>, transform_indices = @transform_5, window_bounds = array<i64: 512, 2048>}, {pipeline_mode = #tpu.pipeline_mode<synchronous>, transform_indices = @transform_6, window_bounds = array<i64: 1, 2048>}, {pipeline_mode = #tpu.pipeline_mode<synchronous>, transform_indices = @transform_7, window_bounds = array<i64: 2048, 128>}, {pipeline_mode = #tpu.pipeline_mode<synchronous>, transform_indices = @transform_8, window_bounds = array<i64: 1, 128>}, {transform_indices = @transform_9, window_bounds = array<i64: 8, 128>}]} {
    %c0 = arith.constant 0 : index
    %c0_0 = arith.constant 0 : index
    %0 = vector.load %arg1[%c0, %c0_0] : memref<8x256xbf16, #tpu.memory_space<vmem>>, vector<8x256xbf16>
    %c0_1 = arith.constant 0 : index
    %c0_2 = arith.constant 0 : index
    %1 = vector.load %arg2[%c0_1, %c0_2] : memref<256x512xbf16, #tpu.memory_space<vmem>>, vector<256x512xbf16>
    %cst = arith.constant dense<0.000000e+00> : vector<8x512xf32>
    %2 = tpu.matmul %0, %1, %cst {dimension_numbers = #tpu.dot_dimension_numbers<[1], [0], [0], [1], [0, 0, 1, 1], [], []>} : vector<8x256xbf16>, vector<256x512xbf16>, vector<8x512xf32> -> vector<8x512xf32>
    %c0_3 = arith.constant 0 : index
    %c0_4 = arith.constant 0 : index
    %3 = vector.load %arg3[%c0_3, %c0_4] : memref<1x512xf32, #tpu.memory_space<vmem>>, vector<1x512xf32>
    %4 = vector.broadcast %3 : vector<1x512xf32> to vector<8x512xf32>
    %5 = arith.addf %2, %4 : vector<8x512xf32>
    %cst_5 = arith.constant 0.000000e+00 : f32
    %6 = vector.broadcast %cst_5 : f32 to vector<8x512xf32>
    %7 = arith.maximumf %5, %6 : vector<8x512xf32>
    %8 = arith.truncf %7 : vector<8x512xf32> to vector<8x512xbf16>
    %c0_6 = arith.constant 0 : index
    %c0_7 = arith.constant 0 : index
    %9 = vector.load %arg4[%c0_6, %c0_7] : memref<512x512xbf16, #tpu.memory_space<vmem>>, vector<512x512xbf16>
    %cst_8 = arith.constant dense<0.000000e+00> : vector<8x512xf32>
    %10 = tpu.matmul %8, %9, %cst_8 {dimension_numbers = #tpu.dot_dimension_numbers<[1], [0], [0], [1], [0, 0, 1, 1], [], []>} : vector<8x512xbf16>, vector<512x512xbf16>, vector<8x512xf32> -> vector<8x512xf32>
    %c0_9 = arith.constant 0 : index
    %c0_10 = arith.constant 0 : index
    %11 = vector.load %arg5[%c0_9, %c0_10] : memref<1x512xf32, #tpu.memory_space<vmem>>, vector<1x512xf32>
    %12 = vector.broadcast %11 : vector<1x512xf32> to vector<8x512xf32>
    %13 = arith.addf %10, %12 : vector<8x512xf32>
    %cst_11 = arith.constant 0.000000e+00 : f32
    %14 = vector.broadcast %cst_11 : f32 to vector<8x512xf32>
    %15 = arith.maximumf %13, %14 : vector<8x512xf32>
    %16 = arith.truncf %15 : vector<8x512xf32> to vector<8x512xbf16>
    %c0_12 = arith.constant 0 : index
    %c0_13 = arith.constant 0 : index
    %17 = vector.load %arg6[%c0_12, %c0_13] : memref<512x2048xbf16, #tpu.memory_space<vmem>>, vector<512x2048xbf16>
    %cst_14 = arith.constant dense<0.000000e+00> : vector<8x2048xf32>
    %18 = tpu.matmul %16, %17, %cst_14 {dimension_numbers = #tpu.dot_dimension_numbers<[1], [0], [0], [1], [0, 0, 1, 1], [], []>} : vector<8x512xbf16>, vector<512x2048xbf16>, vector<8x2048xf32> -> vector<8x2048xf32>
    %c0_15 = arith.constant 0 : index
    %c0_16 = arith.constant 0 : index
    %19 = vector.load %arg7[%c0_15, %c0_16] : memref<1x2048xf32, #tpu.memory_space<vmem>>, vector<1x2048xf32>
    %20 = vector.broadcast %19 : vector<1x2048xf32> to vector<8x2048xf32>
    %21 = arith.addf %18, %20 : vector<8x2048xf32>
    %cst_17 = arith.constant 0.000000e+00 : f32
    %22 = vector.broadcast %cst_17 : f32 to vector<8x2048xf32>
    %23 = arith.maximumf %21, %22 : vector<8x2048xf32>
    %24 = arith.truncf %23 : vector<8x2048xf32> to vector<8x2048xbf16>
    %c0_18 = arith.constant 0 : index
    %c0_19 = arith.constant 0 : index
    %25 = vector.load %arg8[%c0_18, %c0_19] : memref<2048x128xbf16, #tpu.memory_space<vmem>>, vector<2048x128xbf16>
    %cst_20 = arith.constant dense<0.000000e+00> : vector<8x128xf32>
    %26 = tpu.matmul %24, %25, %cst_20 {dimension_numbers = #tpu.dot_dimension_numbers<[1], [0], [0], [1], [0, 0, 1, 1], [], []>} : vector<8x2048xbf16>, vector<2048x128xbf16>, vector<8x128xf32> -> vector<8x128xf32>
    %c0_21 = arith.constant 0 : index
    %c0_22 = arith.constant 0 : index
    %27 = vector.load %arg9[%c0_21, %c0_22] : memref<1x128xf32, #tpu.memory_space<vmem>>, vector<1x128xf32>
    %28 = vector.broadcast %27 : vector<1x128xf32> to vector<8x128xf32>
    %29 = arith.addf %26, %28 : vector<8x128xf32>
    %c0_23 = arith.constant 0 : index
    %c0_24 = arith.constant 0 : index
    %30 = vector.load %arg10[%c0_23, %c0_24] : memref<8x128xf32, #tpu.memory_space<vmem>>, vector<8x128xf32>
    tpu.vector_store %arg10[%c0_23, %c0_24], %29 {strides = array<i32>} : memref<8x128xf32, #tpu.memory_space<vmem>>, vector<8x128xf32>,
    return
  }
  func.func @transform_0(%arg0: i32) -> (i32, i32) {
    %c0_i32 = arith.constant 0 : i32
    %c0_i32_0 = arith.constant 0 : i32
    return %arg0, %c0_i32 : i32, i32
  }
  func.func @transform_1(%arg0: i32) -> (i32, i32) {
    %c0_i32 = arith.constant 0 : i32
    %c0_i32_0 = arith.constant 0 : i32
    %c0_i32_1 = arith.constant 0 : i32
    return %c0_i32, %c0_i32_0 : i32, i32
  }
  func.func @transform_2(%arg0: i32) -> (i32, i32) {
    %c0_i32 = arith.constant 0 : i32
    %c0_i32_0 = arith.constant 0 : i32
    %c0_i32_1 = arith.constant 0 : i32
    return %c0_i32, %c0_i32_0 : i32, i32
  }
  func.func @transform_3(%arg0: i32) -> (i32, i32) {
    %c0_i32 = arith.constant 0 : i32
    %c0_i32_0 = arith.constant 0 : i32
    %c0_i32_1 = arith.constant 0 : i32
    return %c0_i32, %c0_i32_0 : i32, i32
  }
  func.func @transform_4(%arg0: i32) -> (i32, i32) {
    %c0_i32 = arith.constant 0 : i32
    %c0_i32_0 = arith.constant 0 : i32
    %c0_i32_1 = arith.constant 0 : i32
    return %c0_i32, %c0_i32_0 : i32, i32
  }
  func.func @transform_5(%arg0: i32) -> (i32, i32) {
    %c0_i32 = arith.constant 0 : i32
    %c0_i32_0 = arith.constant 0 : i32
    %c0_i32_1 = arith.constant 0 : i32
    return %c0_i32, %c0_i32_0 : i32, i32
  }
  func.func @transform_6(%arg0: i32) -> (i32, i32) {
    %c0_i32 = arith.constant 0 : i32
    %c0_i32_0 = arith.constant 0 : i32
    %c0_i32_1 = arith.constant 0 : i32
    return %c0_i32, %c0_i32_0 : i32, i32
  }
  func.func @transform_7(%arg0: i32) -> (i32, i32) {
    %c0_i32 = arith.constant 0 : i32
    %c0_i32_0 = arith.constant 0 : i32
    %c0_i32_1 = arith.constant 0 : i32
    return %c0_i32, %c0_i32_0 : i32, i32
  }
  func.func @transform_8(%arg0: i32) -> (i32, i32) {
    %c0_i32 = arith.constant 0 : i32
    %c0_i32_0 = arith.constant 0 : i32
    %c0_i32_1 = arith.constant 0 : i32
    return %c0_i32, %c0_i32_0 : i32, i32
  }
  func.func @transform_9(%arg0: i32) -> (i32, i32) {
    %c0_i32 = arith.constant 0 : i32
    %c0_i32_0 = arith.constant 0 : i32
    return %arg0, %c0_i32 : i32, i32
  }
}

</mosaic_0001>

<llo_original>
// kernel: simple_net_forward.1
$region0: #{simple_net_forward.1}
  #allocation0 [shape = 'u32[]', space=smem, size = 0x4, offset = 0x4, fixed_abs, tag = 'smem constant byte address 0x4 - core index']
  #allocation1 [shape = 'u32[144,128]{1,0:T(1,128)}', space=vmem, size = 0x12000, scoped, tag = 'internal scratch']
  %s0 = inlined_call_operand.vmem [shape: bf16[8,256], index: 0, kind: input, shape index: {}]
  %s1 = inlined_call_operand.hbm [shape: bf16[256,512], index: 1, kind: input, shape index: {}]
  %s2 = inlined_call_operand.hbm [shape: f32[1,512], index: 2, kind: input, shape index: {}]
  %s3 = inlined_call_operand.hbm [shape: bf16[512,512], index: 3, kind: input, shape index: {}]
  %s4 = inlined_call_operand.hbm [shape: f32[1,512], index: 4, kind: input, shape index: {}]
  %s5 = inlined_call_operand.hbm [shape: bf16[512,2048], index: 5, kind: input, shape index: {}]
  %s6 = inlined_call_operand.hbm [shape: f32[1,2048], index: 6, kind: input, shape index: {}]
  %s7 = inlined_call_operand.hbm [shape: bf16[2048,128], index: 7, kind: input, shape index: {}]
  %s8 = inlined_call_operand.hbm [shape: f32[1,128], index: 8, kind: input, shape index: {}]
  %s9 = inlined_call_operand.vmem [shape: f32[8,128], index: 9, kind: output, shape index: {}]
  %s10 = sld [smem:[#allocation0]]
  $region78: #{simple_net_forward.1} parent=0
    _
  %s12 = ssub.s32 1, %s10
  %s13 = scalar_select 0, %s12, %s10
  $region1: #{simple_net_forward.1} parent=0
    #allocation2 [shape = 'u8[262144]{0}', space=vmem, size = 0x40000, scoped, tag = 'input window, operand 1, single buffered']
    #allocation3 [shape = 's32[1]{0}', space=sflag, size = 0x4, scoped, tag = 'scoped memory for simple_net_forward.1']
    #allocation4 [shape = 'u8[2048]{0}', space=vmem, size = 0x800, scoped, tag = 'input window, operand 2, single buffered']
    #allocation5 [shape = 's32[1]{0}', space=sflag, size = 0x4, scoped, tag = 'scoped memory for simple_net_forward.1']
    #allocation6 [shape = 'u8[524288]{0}', space=vmem, size = 0x80000, scoped, tag = 'input window, operand 3, single buffered']
    #allocation7 [shape = 'u8[2048]{0}', space=vmem, size = 0x800, scoped, tag = 'input window, operand 4, single buffered']
    #allocation8 [shape = 's32[1]{0}', space=sflag, size = 0x4, scoped, tag = 'scoped memory for simple_net_forward.1']
    #allocation9 [shape = 'u8[2097152]{0}', space=vmem, size = 0x200000, scoped, tag = 'input window, operand 5, single buffered']
    #allocation10 [shape = 'u8[8192]{0}', space=vmem, size = 0x2000, scoped, tag = 'input window, operand 6, single buffered']
    #allocation11 [shape = 's32[1]{0}', space=sflag, size = 0x4, scoped, tag = 'scoped memory for simple_net_forward.1']
    #allocation12 [shape = 'u8[524288]{0}', space=vmem, size = 0x80000, scoped, tag = 'input window, operand 7, single buffered']
    #allocation13 [shape = 'u8[512]{0}', space=vmem, size = 0x400, scoped, tag = 'input window, operand 8, single buffered']
    #allocation14 [shape = 's32[1]{0}', space=sflag, size = 0x4, scoped, tag = 'scoped memory for simple_net_forward.1']
    %14 = vsyncpa [#allocation3], 0
    %15 = vsyncpa [#allocation5], 0
    %16 = vsyncpa [#allocation8], 0
    %17 = vsyncpa [#allocation11], 0
    %18 = vsyncpa [#allocation14], 0
    // Predicated region
    $region2: #{simple_net_forward.1} parent=1 // pred_check
      _
    $region3: #{simple_net_forward.1} parent=1 // pred_check_branch
      %20 = sbr.rel (0) target = $region5
    $region4: #{simple_net_forward.1} parent=1 // pred_region
      _
    $region5: #{simple_net_forward.1} parent=1 // pred_fallthru
      _
    // Predicated region
    $region6: #{simple_net_forward.1} parent=1 // pred_check
      _
    $region7: #{simple_net_forward.1} parent=1 // pred_check_branch
      %22 = sbr.rel (0) target = $region9
    $region8: #{simple_net_forward.1} parent=1 // pred_region
      %s24 = ssub.s32 8192, 8192
      %25 = vsyncadd [#allocation3], %s24
      %s26 = sshll.u32 [#allocation2], 4
      %s27 = int_to_ptr.vmem [resolvable:$true] %s26
      %32 = dma.hbm_to_vmem [thread:$0]  %s1, 8192, %s27, [#allocation3], 256, 256, 16
    $region9: #{simple_net_forward.1} parent=1 // pred_fallthru
      _
    // Predicated region
    $region10: #{simple_net_forward.1} parent=1 // pred_check
      _
    $region11: #{simple_net_forward.1} parent=1 // pred_check_branch
      %34 = sbr.rel (0) target = $region13
    $region12: #{simple_net_forward.1} parent=1 // pred_region
      %s36 = ssub.s32 64, 64
      %37 = vsyncadd [#allocation5], %s36
      %s39 = sshll.u32 [#allocation4], 4
      %s40 = int_to_ptr.vmem [resolvable:$true] %s39
      %42 = dma.hbm_to_vmem [thread:$0]  %s2, 64, %s40, [#allocation5]
    $region13: #{simple_net_forward.1} parent=1 // pred_fallthru
      _
    // Predicated region
    $region14: #{simple_net_forward.1} parent=1 // pred_check
      _
    $region15: #{simple_net_forward.1} parent=1 // pred_check_branch
      %44 = sbr.rel (0) target = $region17
    $region16: #{simple_net_forward.1} parent=1 // pred_region
      %s46 = ssub.s32 16384, 16384
      %47 = vsyncadd [#allocation5], %s46
      %s48 = sshll.u32 [#allocation6], 4
      %s49 = int_to_ptr.vmem [resolvable:$true] %s48
      %54 = dma.hbm_to_vmem [thread:$0]  %s3, 16384, %s49, [#allocation5], 256, 256, 16
    $region17: #{simple_net_forward.1} parent=1 // pred_fallthru
      _
    // Predicated region
    $region18: #{simple_net_forward.1} parent=1 // pred_check
      _
    $region19: #{simple_net_forward.1} parent=1 // pred_check_branch
      %56 = sbr.rel (0) target = $region21
    $region20: #{simple_net_forward.1} parent=1 // pred_region
      %s58 = ssub.s32 64, 64
      %59 = vsyncadd [#allocation8], %s58
      %s61 = sshll.u32 [#allocation7], 4
      %s62 = int_to_ptr.vmem [resolvable:$true] %s61
      %64 = dma.hbm_to_vmem [thread:$0]  %s4, 64, %s62, [#allocation8]
    $region21: #{simple_net_forward.1} parent=1 // pred_fallthru
      _
    // Predicated region
    $region22: #{simple_net_forward.1} parent=1 // pred_check
      _
    $region23: #{simple_net_forward.1} parent=1 // pred_check_branch
      %66 = sbr.rel (0) target = $region25
    $region24: #{simple_net_forward.1} parent=1 // pred_region
      %s68 = ssub.s32 65536, 65536
      %69 = vsyncadd [#allocation8], %s68
      %s70 = sshll.u32 [#allocation9], 4
      %s71 = int_to_ptr.vmem [resolvable:$true] %s70
      %76 = dma.hbm_to_vmem [thread:$0]  %s5, 65536, %s71, [#allocation8], 1024, 1024, 64
    $region25: #{simple_net_forward.1} parent=1 // pred_fallthru
      _
    // Predicated region
    $region26: #{simple_net_forward.1} parent=1 // pred_check
      _
    $region27: #{simple_net_forward.1} parent=1 // pred_check_branch
      %78 = sbr.rel (0) target = $region29
    $region28: #{simple_net_forward.1} parent=1 // pred_region
      %s80 = ssub.s32 256, 256
      %81 = vsyncadd [#allocation11], %s80
      %s83 = sshll.u32 [#allocation10], 4
      %s84 = int_to_ptr.vmem [resolvable:$true] %s83
      %86 = dma.hbm_to_vmem [thread:$0]  %s6, 256, %s84, [#allocation11]
    $region29: #{simple_net_forward.1} parent=1 // pred_fallthru
      _
    // Predicated region
    $region30: #{simple_net_forward.1} parent=1 // pred_check
      _
    $region31: #{simple_net_forward.1} parent=1 // pred_check_branch
      %88 = sbr.rel (0) target = $region33
    $region32: #{simple_net_forward.1} parent=1 // pred_region
      %s90 = ssub.s32 16384, 16384
      %91 = vsyncadd [#allocation11], %s90
      %s92 = sshll.u32 [#allocation12], 4
      %s93 = int_to_ptr.vmem [resolvable:$true] %s92
      %98 = dma.hbm_to_vmem [thread:$0]  %s7, 16384, %s93, [#allocation11], 64, 64, 4
    $region33: #{simple_net_forward.1} parent=1 // pred_fallthru
      _
    // Predicated region
    $region34: #{simple_net_forward.1} parent=1 // pred_check
      _
    $region35: #{simple_net_forward.1} parent=1 // pred_check_branch
      %100 = sbr.rel (0) target = $region37
    $region36: #{simple_net_forward.1} parent=1 // pred_region
      %s102 = ssub.s32 16, 16
      %103 = vsyncadd [#allocation14], %s102
      %s105 = sshll.u32 [#allocation13], 4
      %s106 = int_to_ptr.vmem [resolvable:$true] %s105
      %108 = dma.hbm_to_vmem [thread:$0]  %s8, 16, %s106, [#allocation14]
    $region37: #{simple_net_forward.1} parent=1 // pred_fallthru
      _
    // Predicated region
    $region38: #{simple_net_forward.1} parent=1 // pred_check
      _
    $region39: #{simple_net_forward.1} parent=1 // pred_check_branch
      %110 = sbr.rel (0) target = $region41
    $region40: #{simple_net_forward.1} parent=1 // pred_region
      %111 = dma.done [#allocation3], 8192
    $region41: #{simple_net_forward.1} parent=1 // pred_fallthru
      _
    // Predicated region
    $region42: #{simple_net_forward.1} parent=1 // pred_check
      _
    $region43: #{simple_net_forward.1} parent=1 // pred_check_branch
      %113 = sbr.rel (0) target = $region45
    $region44: #{simple_net_forward.1} parent=1 // pred_region
      %114 = dma.done [#allocation5], 64
    $region45: #{simple_net_forward.1} parent=1 // pred_fallthru
      _
    // Predicated region
    $region46: #{simple_net_forward.1} parent=1 // pred_check
      _
    $region47: #{simple_net_forward.1} parent=1 // pred_check_branch
      %116 = sbr.rel (0) target = $region49
    $region48: #{simple_net_forward.1} parent=1 // pred_region
      %117 = dma.done [#allocation5], 16384
    $region49: #{simple_net_forward.1} parent=1 // pred_fallthru
      _
    // Predicated region
    $region50: #{simple_net_forward.1} parent=1 // pred_check
      _
    $region51: #{simple_net_forward.1} parent=1 // pred_check_branch
      %119 = sbr.rel (0) target = $region53
    $region52: #{simple_net_forward.1} parent=1 // pred_region
      %120 = dma.done [#allocation8], 64
    $region53: #{simple_net_forward.1} parent=1 // pred_fallthru
      _
    // Predicated region
    $region54: #{simple_net_forward.1} parent=1 // pred_check
      _
    $region55: #{simple_net_forward.1} parent=1 // pred_check_branch
      %122 = sbr.rel (0) target = $region57
    $region56: #{simple_net_forward.1} parent=1 // pred_region
      %123 = dma.done [#allocation8], 65536
    $region57: #{simple_net_forward.1} parent=1 // pred_fallthru
      _
    // Predicated region
    $region58: #{simple_net_forward.1} parent=1 // pred_check
      _
    $region59: #{simple_net_forward.1} parent=1 // pred_check_branch
      %125 = sbr.rel (0) target = $region61
    $region60: #{simple_net_forward.1} parent=1 // pred_region
      %126 = dma.done [#allocation11], 256
    $region61: #{simple_net_forward.1} parent=1 // pred_fallthru
      _
    // Predicated region
    $region62: #{simple_net_forward.1} parent=1 // pred_check
      _
    $region63: #{simple_net_forward.1} parent=1 // pred_check_branch
      %128 = sbr.rel (0) target = $region65
    $region64: #{simple_net_forward.1} parent=1 // pred_region
      %129 = dma.done [#allocation11], 16384
    $region65: #{simple_net_forward.1} parent=1 // pred_fallthru
      _
    // Predicated region
    $region66: #{simple_net_forward.1} parent=1 // pred_check
      _
    $region67: #{simple_net_forward.1} parent=1 // pred_check_branch
      %131 = sbr.rel (0) target = $region69
    $region68: #{simple_net_forward.1} parent=1 // pred_region
      %132 = dma.done [#allocation14], 16
    $region69: #{simple_net_forward.1} parent=1 // pred_fallthru
      _
    %v134 = vld [vmem:[%s0] sm:$0xff]
    %v135 = vld [vmem:[#allocation2] sm:$0xff]
    %v136 = vld [vmem:[#allocation2 + $0x8] sm:$0xff]
    %v137 = vld [vmem:[#allocation2 + $0x10] sm:$0xff]
    %v138 = vld [vmem:[#allocation2 + $0x18] sm:$0xff]
    %v139 = vld [vmem:[#allocation2 + $0x20] sm:$0xff]
    %v140 = vld [vmem:[#allocation2 + $0x28] sm:$0xff]
    %v141 = vld [vmem:[#allocation2 + $0x30] sm:$0xff]
    %v142 = vld [vmem:[#allocation2 + $0x38] sm:$0xff]
    %v143 = vld [vmem:[#allocation2 + $0x40] sm:$0xff]
    %v144 = vld [vmem:[#allocation2 + $0x48] sm:$0xff]
    %v145 = vld [vmem:[#allocation2 + $0x50] sm:$0xff]
    %v146 = vld [vmem:[#allocation2 + $0x58] sm:$0xff]
    %v147 = vld [vmem:[#allocation2 + $0x60] sm:$0xff]
    %v148 = vld [vmem:[#allocation2 + $0x68] sm:$0xff]
    %v149 = vld [vmem:[#allocation2 + $0x70] sm:$0xff]
    %v150 = vld [vmem:[#allocation2 + $0x78] sm:$0xff]
    %v151 = vld [vmem:[#allocation2 + $0x80] sm:$0xff]
    %v152 = vld [vmem:[#allocation2 + $0x88] sm:$0xff]
    %v153 = vld [vmem:[#allocation2 + $0x90] sm:$0xff]
    %v154 = vld [vmem:[#allocation2 + $0x98] sm:$0xff]
    %v155 = vld [vmem:[#allocation2 + $0xa0] sm:$0xff]
    %v156 = vld [vmem:[#allocation2 + $0xa8] sm:$0xff]
    %v157 = vld [vmem:[#allocation2 + $0xb0] sm:$0xff]
    %v158 = vld [vmem:[#allocation2 + $0xb8] sm:$0xff]
    %v159 = vld [vmem:[#allocation2 + $0xc0] sm:$0xff]
    %v160 = vld [vmem:[#allocation2 + $0xc8] sm:$0xff]
    %v161 = vld [vmem:[#allocation2 + $0xd0] sm:$0xff]
    %v162 = vld [vmem:[#allocation2 + $0xd8] sm:$0xff]
    %v163 = vld [vmem:[#allocation2 + $0xe0] sm:$0xff]
    %v164 = vld [vmem:[#allocation2 + $0xe8] sm:$0xff]
    %v165 = vld [vmem:[#allocation2 + $0xf0] sm:$0xff]
    %v166 = vld [vmem:[#allocation2 + $0xf8] sm:$0xff]
    %v167 = vld [vmem:[#allocation2 + $0x100] sm:$0xff]
    %v168 = vld [vmem:[#allocation2 + $0x108] sm:$0xff]
    %v169 = vld [vmem:[#allocation2 + $0x110] sm:$0xff]
    %v170 = vld [vmem:[#allocation2 + $0x118] sm:$0xff]
    %v171 = vld [vmem:[#allocation2 + $0x120] sm:$0xff]
    %v172 = vld [vmem:[#allocation2 + $0x128] sm:$0xff]
    %v173 = vld [vmem:[#allocation2 + $0x130] sm:$0xff]
    %v174 = vld [vmem:[#allocation2 + $0x138] sm:$0xff]
    %v175 = vld [vmem:[#allocation2 + $0x140] sm:$0xff]
    %v176 = vld [vmem:[#allocation2 + $0x148] sm:$0xff]
    %v177 = vld [vmem:[#allocation2 + $0x150] sm:$0xff]
    %v178 = vld [vmem:[#allocation2 + $0x158] sm:$0xff]
    %v179 = vld [vmem:[#allocation2 + $0x160] sm:$0xff]
    %v180 = vld [vmem:[#allocation2 + $0x168] sm:$0xff]
    %v181 = vld [vmem:[#allocation2 + $0x170] sm:$0xff]
    %v182 = vld [vmem:[#allocation2 + $0x178] sm:$0xff]
    %v183 = vld [vmem:[#allocation2 + $0x180] sm:$0xff]
    %v184 = vld [vmem:[#allocation2 + $0x188] sm:$0xff]
    %v185 = vld [vmem:[#allocation2 + $0x190] sm:$0xff]
    %v186 = vld [vmem:[#allocation2 + $0x198] sm:$0xff]
    %v187 = vld [vmem:[#allocation2 + $0x1a0] sm:$0xff]
    %v188 = vld [vmem:[#allocation2 + $0x1a8] sm:$0xff]
    %v189 = vld [vmem:[#allocation2 + $0x1b0] sm:$0xff]
    %v190 = vld [vmem:[#allocation2 + $0x1b8] sm:$0xff]
    %v191 = vld [vmem:[#allocation2 + $0x1c0] sm:$0xff]
    %v192 = vld [vmem:[#allocation2 + $0x1c8] sm:$0xff]
    %v193 = vld [vmem:[#allocation2 + $0x1d0] sm:$0xff]
    %v194 = vld [vmem:[#allocation2 + $0x1d8] sm:$0xff]
    %v195 = vld [vmem:[#allocation2 + $0x1e0] sm:$0xff]
    %v196 = vld [vmem:[#allocation2 + $0x1e8] sm:$0xff]
    %v197 = vld [vmem:[#allocation2 + $0x1f0] sm:$0xff]
    %v198 = vld [vmem:[#allocation2 + $0x1f8] sm:$0xff]
    %v199 = vld [vmem:[#allocation4] sm:$0xf]
    %v201 = vlaneseq
    %v202 = vshrl.u32 %v201, 7
    %v203 = vsub.s32 0, %v202
    %v204 = vrot.slane %v199, %v203
    %v205 = vlaneseq
    %v206 = vshrl.u32 %v205, 7
    %v207 = vsub.s32 1, %v206
    %v208 = vrot.slane %v199, %v207
    %v209 = vlaneseq
    %v210 = vshrl.u32 %v209, 7
    %v211 = vsub.s32 2, %v210
    %v212 = vrot.slane %v199, %v211
    %v213 = vlaneseq
    %v214 = vshrl.u32 %v213, 7
    %v215 = vsub.s32 3, %v214
    %v216 = vrot.slane %v199, %v215
    %v222 = vunpack.c.l.b16 %v134
    %v223 = vunpack.c.h.b16 %v134
    %v224 = vpack.c.b16 %v222, %v222
    %v225 = vpack.c.b16 %v223, %v223
    %v292 = vunpack.c.l.b16 %v135
    %v293 = vunpack.c.h.b16 %v135
    %v294 = vunpack.c.l.b16 %v136
    %v295 = vunpack.c.h.b16 %v136
    %v296 = vunpack.c.l.b16 %v137
    %v297 = vunpack.c.h.b16 %v137
    %v298 = vunpack.c.l.b16 %v138
    %v299 = vunpack.c.h.b16 %v138
    %v300 = vunpack.c.l.b16 %v139
    %v301 = vunpack.c.h.b16 %v139
    %v302 = vunpack.c.l.b16 %v140
    %v303 = vunpack.c.h.b16 %v140
    %v304 = vunpack.c.l.b16 %v141
    %v305 = vunpack.c.h.b16 %v141
    %v306 = vunpack.c.l.b16 %v142
    %v307 = vunpack.c.h.b16 %v142
    %v308 = vunpack.c.l.b16 %v143
    %v309 = vunpack.c.h.b16 %v143
    %v310 = vunpack.c.l.b16 %v144
    %v311 = vunpack.c.h.b16 %v144
    %v312 = vunpack.c.l.b16 %v145
    %v313 = vunpack.c.h.b16 %v145
    %v314 = vunpack.c.l.b16 %v146
    %v315 = vunpack.c.h.b16 %v146
    %v316 = vunpack.c.l.b16 %v147
    %v317 = vunpack.c.h.b16 %v147
    %v318 = vunpack.c.l.b16 %v148
    %v319 = vunpack.c.h.b16 %v148
    %v320 = vunpack.c.l.b16 %v149
    %v321 = vunpack.c.h.b16 %v149
    %v322 = vunpack.c.l.b16 %v150
    %v323 = vunpack.c.h.b16 %v150
    %v324 = vunpack.c.l.b16 %v151
    %v325 = vunpack.c.h.b16 %v151
    %v326 = vunpack.c.l.b16 %v152
    %v327 = vunpack.c.h.b16 %v152
    %v328 = vunpack.c.l.b16 %v153
    %v329 = vunpack.c.h.b16 %v153
    %v330 = vunpack.c.l.b16 %v154
    %v331 = vunpack.c.h.b16 %v154
    %v332 = vunpack.c.l.b16 %v155
    %v333 = vunpack.c.h.b16 %v155
    %v334 = vunpack.c.l.b16 %v156
    %v335 = vunpack.c.h.b16 %v156
    %v336 = vunpack.c.l.b16 %v157
    %v337 = vunpack.c.h.b16 %v157
    %v338 = vunpack.c.l.b16 %v158
    %v339 = vunpack.c.h.b16 %v158
    %v340 = vunpack.c.l.b16 %v159
    %v341 = vunpack.c.h.b16 %v159
    %v342 = vunpack.c.l.b16 %v160
    %v343 = vunpack.c.h.b16 %v160
    %v344 = vunpack.c.l.b16 %v161
    %v345 = vunpack.c.h.b16 %v161
    %v346 = vunpack.c.l.b16 %v162
    %v347 = vunpack.c.h.b16 %v162
    %v348 = vunpack.c.l.b16 %v163
    %v349 = vunpack.c.h.b16 %v163
    %v350 = vunpack.c.l.b16 %v164
    %v351 = vunpack.c.h.b16 %v164
    %v352 = vunpack.c.l.b16 %v165
    %v353 = vunpack.c.h.b16 %v165
    %v354 = vunpack.c.l.b16 %v166
    %v355 = vunpack.c.h.b16 %v166
    %v356 = vunpack.c.l.b16 %v167
    %v357 = vunpack.c.h.b16 %v167
    %v358 = vunpack.c.l.b16 %v168
    %v359 = vunpack.c.h.b16 %v168
    %v360 = vunpack.c.l.b16 %v169
    %v361 = vunpack.c.h.b16 %v169
    %v362 = vunpack.c.l.b16 %v170
    %v363 = vunpack.c.h.b16 %v170
    %v364 = vunpack.c.l.b16 %v171
    %v365 = vunpack.c.h.b16 %v171
    %v366 = vunpack.c.l.b16 %v172
    %v367 = vunpack.c.h.b16 %v172
    %v368 = vunpack.c.l.b16 %v173
    %v369 = vunpack.c.h.b16 %v173
    %v370 = vunpack.c.l.b16 %v174
    %v371 = vunpack.c.h.b16 %v174
    %v372 = vunpack.c.l.b16 %v175
    %v373 = vunpack.c.h.b16 %v175
    %v374 = vunpack.c.l.b16 %v176
    %v375 = vunpack.c.h.b16 %v176
    %v376 = vunpack.c.l.b16 %v177
    %v377 = vunpack.c.h.b16 %v177
    %v378 = vunpack.c.l.b16 %v178
    %v379 = vunpack.c.h.b16 %v178
    %v380 = vunpack.c.l.b16 %v179
    %v381 = vunpack.c.h.b16 %v179
    %v382 = vunpack.c.l.b16 %v180
    %v383 = vunpack.c.h.b16 %v180
    %v384 = vunpack.c.l.b16 %v181
    %v385 = vunpack.c.h.b16 %v181
    %v386 = vunpack.c.l.b16 %v182
    %v387 = vunpack.c.h.b16 %v182
    %v388 = vunpack.c.l.b16 %v183
    %v389 = vunpack.c.h.b16 %v183
    %v390 = vunpack.c.l.b16 %v184
    %v391 = vunpack.c.h.b16 %v184
    %v392 = vunpack.c.l.b16 %v185
    %v393 = vunpack.c.h.b16 %v185
    %v394 = vunpack.c.l.b16 %v186
    %v395 = vunpack.c.h.b16 %v186
    %v396 = vunpack.c.l.b16 %v187
    %v397 = vunpack.c.h.b16 %v187
    %v398 = vunpack.c.l.b16 %v188
    %v399 = vunpack.c.h.b16 %v188
    %v400 = vunpack.c.l.b16 %v189
    %v401 = vunpack.c.h.b16 %v189
    %v402 = vunpack.c.l.b16 %v190
    %v403 = vunpack.c.h.b16 %v190
    %v404 = vunpack.c.l.b16 %v191
    %v405 = vunpack.c.h.b16 %v191
    %v406 = vunpack.c.l.b16 %v192
    %v407 = vunpack.c.h.b16 %v192
    %v408 = vunpack.c.l.b16 %v193
    %v409 = vunpack.c.h.b16 %v193
    %v410 = vunpack.c.l.b16 %v194
    %v411 = vunpack.c.h.b16 %v194
    %v412 = vunpack.c.l.b16 %v195
    %v413 = vunpack.c.h.b16 %v195
    %v414 = vunpack.c.l.b16 %v196
    %v415 = vunpack.c.h.b16 %v196
    %v416 = vunpack.c.l.b16 %v197
    %v417 = vunpack.c.h.b16 %v197
    %v418 = vunpack.c.l.b16 %v198
    %v419 = vunpack.c.h.b16 %v198
    %v420 = vpack.c.b16 %v296, %v292
    %v421 = vpack.c.b16 %v297, %v293
    %v422 = vpack.c.b16 %v298, %v294
    %v423 = vpack.c.b16 %v299, %v295
    %v424 = vpack.c.b16 %v304, %v300
    %v425 = vpack.c.b16 %v305, %v301
    %v426 = vpack.c.b16 %v306, %v302
    %v427 = vpack.c.b16 %v307, %v303
    %v428 = vpack.c.b16 %v312, %v308
    %v429 = vpack.c.b16 %v313, %v309
    %v430 = vpack.c.b16 %v314, %v310
    %v431 = vpack.c.b16 %v315, %v311
    %v432 = vpack.c.b16 %v320, %v316
    %v433 = vpack.c.b16 %v321, %v317
    %v434 = vpack.c.b16 %v322, %v318
    %v435 = vpack.c.b16 %v323, %v319
    %v436 = vpack.c.b16 %v328, %v324
    %v437 = vpack.c.b16 %v329, %v325
    %v438 = vpack.c.b16 %v330, %v326
    %v439 = vpack.c.b16 %v331, %v327
    %v440 = vpack.c.b16 %v336, %v332
    %v441 = vpack.c.b16 %v337, %v333
    %v442 = vpack.c.b16 %v338, %v334
    %v443 = vpack.c.b16 %v339, %v335
    %v444 = vpack.c.b16 %v344, %v340
    %v445 = vpack.c.b16 %v345, %v341
    %v446 = vpack.c.b16 %v346, %v342
    %v447 = vpack.c.b16 %v347, %v343
    %v448 = vpack.c.b16 %v352, %v348
    %v449 = vpack.c.b16 %v353, %v349
    %v450 = vpack.c.b16 %v354, %v350
    %v451 = vpack.c.b16 %v355, %v351
    %v452 = vpack.c.b16 %v360, %v356
    %v453 = vpack.c.b16 %v361, %v357
    %v454 = vpack.c.b16 %v362, %v358
    %v455 = vpack.c.b16 %v363, %v359
    %v456 = vpack.c.b16 %v368, %v364
    %v457 = vpack.c.b16 %v369, %v365
    %v458 = vpack.c.b16 %v370, %v366
    %v459 = vpack.c.b16 %v371, %v367
    %v460 = vpack.c.b16 %v376, %v372
    %v461 = vpack.c.b16 %v377, %v373
    %v462 = vpack.c.b16 %v378, %v374
    %v463 = vpack.c.b16 %v379, %v375
    %v464 = vpack.c.b16 %v384, %v380
    %v465 = vpack.c.b16 %v385, %v381
    %v466 = vpack.c.b16 %v386, %v382
    %v467 = vpack.c.b16 %v387, %v383
    %v468 = vpack.c.b16 %v392, %v388
    %v469 = vpack.c.b16 %v393, %v389
    %v470 = vpack.c.b16 %v394, %v390
    %v471 = vpack.c.b16 %v395, %v391
    %v472 = vpack.c.b16 %v400, %v396
    %v473 = vpack.c.b16 %v401, %v397
    %v474 = vpack.c.b16 %v402, %v398
    %v475 = vpack.c.b16 %v403, %v399
    %v476 = vpack.c.b16 %v408, %v404
    %v477 = vpack.c.b16 %v409, %v405
    %v478 = vpack.c.b16 %v410, %v406
    %v479 = vpack.c.b16 %v411, %v407
    %v480 = vpack.c.b16 %v416, %v412
    %v481 = vpack.c.b16 %v417, %v413
    %v482 = vpack.c.b16 %v418, %v414
    %v483 = vpack.c.b16 %v419, %v415
    %548 = vmatprep.subr.bf16.mxu0 %v421
    %549 = vmatpush1.bf16.msra.mxu0 %v420
    %550 = vmatprep.subr.bf16.mxu0 %v425
    %551 = vmatpush1.bf16.msra.mxu0 %v424
    %552 = vmatprep.subr.bf16.mxu0 %v429
    %553 = vmatpush1.bf16.msra.mxu0 %v428
    %554 = vmatprep.subr.bf16.mxu0 %v433
    %555 = vmatpush1.bf16.msra.mxu0 %v432
    %556 = vmatprep.subr.bf16.mxu0 %v437
    %557 = vmatpush1.bf16.msra.mxu0 %v436
    %558 = vmatprep.subr.bf16.mxu0 %v441
    %559 = vmatpush1.bf16.msra.mxu0 %v440
    %560 = vmatprep.subr.bf16.mxu0 %v445
    %561 = vmatpush1.bf16.msra.mxu0 %v444
    %562 = vmatprep.subr.bf16.mxu0 %v449
    %563 = vmatpush1.bf16.msra.mxu0 %v448
    %564 = vmatprep.subr.bf16.mxu0 %v453
    %565 = vmatpush1.bf16.msra.mxu0 %v452
    %566 = vmatprep.subr.bf16.mxu0 %v457
    %567 = vmatpush1.bf16.msra.mxu0 %v456
    %568 = vmatprep.subr.bf16.mxu0 %v461
    %569 = vmatpush1.bf16.msra.mxu0 %v460
    %570 = vmatprep.subr.bf16.mxu0 %v465
    %571 = vmatpush1.bf16.msra.mxu0 %v464
    %572 = vmatprep.subr.bf16.mxu0 %v469
    %573 = vmatpush1.bf16.msra.mxu0 %v468
    %574 = vmatprep.subr.bf16.mxu0 %v473
    %575 = vmatpush1.bf16.msra.mxu0 %v472
    %576 = vmatprep.subr.bf16.mxu0 %v477
    %577 = vmatpush1.bf16.msra.mxu0 %v476
    %578 = vmatprep.subr.bf16.mxu0 %v481
    %579 = vmatpush1.bf16.msra.mxu0 %v480
    %580 = vmatprep.mubr.bf16.mxu0 %v225
    %581 = vmatmul.mubr.bf16.gmra.mrb[0].mxu0 %v224
    %v582 = vpop.f32.mrb[0].mxu0
    %v583 = vadd.f32 %v204, %v582
    %v584 = vpop.f32.mrb[0].mxu0
    %v585 = vadd.f32 %v208, %v584
    %v586 = vpop.f32.mrb[0].mxu0
    %v587 = vpop.f32.mrb[0].mxu0
    %588 = vdwg.mxu0
    %589 = vmatprep.subr.bf16.mxu0 %v423
    %590 = vmatpush1.bf16.msra.mxu0 %v422
    %591 = vmatprep.subr.bf16.mxu0 %v427
    %592 = vmatpush1.bf16.msra.mxu0 %v426
    %593 = vmatprep.subr.bf16.mxu0 %v431
    %594 = vmatpush1.bf16.msra.mxu0 %v430
    %595 = vmatprep.subr.bf16.mxu0 %v435
    %596 = vmatpush1.bf16.msra.mxu0 %v434
    %597 = vmatprep.subr.bf16.mxu0 %v439
    %598 = vmatpush1.bf16.msra.mxu0 %v438
    %599 = vmatprep.subr.bf16.mxu0 %v443
    %600 = vmatpush1.bf16.msra.mxu0 %v442
    %601 = vmatprep.subr.bf16.mxu0 %v447
    %602 = vmatpush1.bf16.msra.mxu0 %v446
    %603 = vmatprep.subr.bf16.mxu0 %v451
    %604 = vmatpush1.bf16.msra.mxu0 %v450
    %605 = vmatprep.subr.bf16.mxu0 %v455
    %606 = vmatpush1.bf16.msra.mxu0 %v454
    %607 = vmatprep.subr.bf16.mxu0 %v459
    %608 = vmatpush1.bf16.msra.mxu0 %v458
    %609 = vmatprep.subr.bf16.mxu0 %v463
    %610 = vmatpush1.bf16.msra.mxu0 %v462
    %611 = vmatprep.subr.bf16.mxu0 %v467
    %612 = vmatpush1.bf16.msra.mxu0 %v466
    %613 = vmatprep.subr.bf16.mxu0 %v471
    %614 = vmatpush1.bf16.msra.mxu0 %v470
    %615 = vmatprep.subr.bf16.mxu0 %v475
    %616 = vmatpush1.bf16.msra.mxu0 %v474
    %617 = vmatprep.subr.bf16.mxu0 %v479
    %618 = vmatpush1.bf16.msra.mxu0 %v478
    %619 = vmatprep.subr.bf16.mxu0 %v483
    %620 = vmatpush1.bf16.msra.mxu0 %v482
    %621 = vmatprep.mubr.bf16.mxu0 %v225
    %622 = vmatmul.mubr.bf16.gmra.mrb[0].mxu0 %v224
    %v623 = vpop.f32.mrb[0].mxu0
    %v624 = vadd.f32 %v212, %v623
    %v625 = vpop.f32.mrb[0].mxu0
    %v626 = vadd.f32 %v216, %v625
    %v627 = vpop.f32.mrb[0].mxu0
    %v628 = vpop.f32.mrb[0].mxu0
    %629 = vdwg.mxu0
    %v630 = vmax.f32 %v583, 0.0
    %v631 = vmax.f32 %v585, 0.0
    %v632 = vmax.f32 %v624, 0.0
    %v633 = vmax.f32 %v626, 0.0
    %v634 = vpack.c.bf16 %v630, %v630
    %v635 = vpack.c.bf16 %v631, %v631
    %v636 = vpack.c.bf16 %v632, %v632
    %v637 = vpack.c.bf16 %v633, %v633
    %v638 = vld [vmem:[#allocation6] sm:$0xff]
    %v639 = vld [vmem:[#allocation6 + $0x8] sm:$0xff]
    %v640 = vld [vmem:[#allocation6 + $0x10] sm:$0xff]
    %v641 = vld [vmem:[#allocation6 + $0x18] sm:$0xff]
    %v642 = vld [vmem:[#allocation6 + $0x20] sm:$0xff]
    %v643 = vld [vmem:[#allocation6 + $0x28] sm:$0xff]
    %v644 = vld [vmem:[#allocation6 + $0x30] sm:$0xff]
    %v645 = vld [vmem:[#allocation6 + $0x38] sm:$0xff]
    %v646 = vld [vmem:[#allocation6 + $0x40] sm:$0xff]
    %v647 = vld [vmem:[#allocation6 + $0x48] sm:$0xff]
    %v648 = vld [vmem:[#allocation6 + $0x50] sm:$0xff]
    %v649 = vld [vmem:[#allocation6 + $0x58] sm:$0xff]
    %v650 = vld [vmem:[#allocation6 + $0x60] sm:$0xff]
    %v651 = vld [vmem:[#allocation6 + $0x68] sm:$0xff]
    %v652 = vld [vmem:[#allocation6 + $0x70] sm:$0xff]
    %v653 = vld [vmem:[#allocation6 + $0x78] sm:$0xff]
    %v654 = vld [vmem:[#allocation6 + $0x80] sm:$0xff]
    %v655 = vld [vmem:[#allocation6 + $0x88] sm:$0xff]
    %v656 = vld [vmem:[#allocation6 + $0x90] sm:$0xff]
    %v657 = vld [vmem:[#allocation6 + $0x98] sm:$0xff]
    %v658 = vld [vmem:[#allocation6 + $0xa0] sm:$0xff]
    %v659 = vld [vmem:[#allocation6 + $0xa8] sm:$0xff]
    %v660 = vld [vmem:[#allocation6 + $0xb0] sm:$0xff]
    %v661 = vld [vmem:[#allocation6 + $0xb8] sm:$0xff]
    %v662 = vld [vmem:[#allocation6 + $0xc0] sm:$0xff]
    %v663 = vld [vmem:[#allocation6 + $0xc8] sm:$0xff]
    %v664 = vld [vmem:[#allocation6 + $0xd0] sm:$0xff]
    %v665 = vld [vmem:[#allocation6 + $0xd8] sm:$0xff]
    %v666 = vld [vmem:[#allocation6 + $0xe0] sm:$0xff]
    %v667 = vld [vmem:[#allocation6 + $0xe8] sm:$0xff]
    %v668 = vld [vmem:[#allocation6 + $0xf0] sm:$0xff]
    %v669 = vld [vmem:[#allocation6 + $0xf8] sm:$0xff]
    %v670 = vld [vmem:[#allocation6 + $0x100] sm:$0xff]
    %v671 = vld [vmem:[#allocation6 + $0x108] sm:$0xff]
    %v672 = vld [vmem:[#allocation6 + $0x110] sm:$0xff]
    %v673 = vld [vmem:[#allocation6 + $0x118] sm:$0xff]
    %v674 = vld [vmem:[#allocation6 + $0x120] sm:$0xff]
    %v675 = vld [vmem:[#allocation6 + $0x128] sm:$0xff]
    %v676 = vld [vmem:[#allocation6 + $0x130] sm:$0xff]
    %v677 = vld [vmem:[#allocation6 + $0x138] sm:$0xff]
    %v678 = vld [vmem:[#allocation6 + $0x140] sm:$0xff]
    %v679 = vld [vmem:[#allocation6 + $0x148] sm:$0xff]
    %v680 = vld [vmem:[#allocation6 + $0x150] sm:$0xff]
    %v681 = vld [vmem:[#allocation6 + $0x158] sm:$0xff]
    %v682 = vld [vmem:[#allocation6 + $0x160] sm:$0xff]
    %v683 = vld [vmem:[#allocation6 + $0x168] sm:$0xff]
    %v684 = vld [vmem:[#allocation6 + $0x170] sm:$0xff]
    %v685 = vld [vmem:[#allocation6 + $0x178] sm:$0xff]
    %v686 = vld [vmem:[#allocation6 + $0x180] sm:$0xff]
    %v687 = vld [vmem:[#allocation6 + $0x188] sm:$0xff]
    %v688 = vld [vmem:[#allocation6 + $0x190] sm:$0xff]
    %v689 = vld [vmem:[#allocation6 + $0x198] sm:$0xff]
    %v690 = vld [vmem:[#allocation6 + $0x1a0] sm:$0xff]
    %v691 = vld [vmem:[#allocation6 + $0x1a8] sm:$0xff]
    %v692 = vld [vmem:[#allocation6 + $0x1b0] sm:$0xff]
    %v693 = vld [vmem:[#allocation6 + $0x1b8] sm:$0xff]
    %v694 = vld [vmem:[#allocation6 + $0x1c0] sm:$0xff]
    %v695 = vld [vmem:[#allocation6 + $0x1c8] sm:$0xff]
    %v696 = vld [vmem:[#allocation6 + $0x1d0] sm:$0xff]
    %v697 = vld [vmem:[#allocation6 + $0x1d8] sm:$0xff]
    %v698 = vld [vmem:[#allocation6 + $0x1e0] sm:$0xff]
    %v699 = vld [vmem:[#allocation6 + $0x1e8] sm:$0xff]
    %v700 = vld [vmem:[#allocation6 + $0x1f0] sm:$0xff]
    %v701 = vld [vmem:[#allocation6 + $0x1f8] sm:$0xff]
    %v702 = vld [vmem:[#allocation6 + $0x200] sm:$0xff]
    %v703 = vld [vmem:[#allocation6 + $0x208] sm:$0xff]
    %v704 = vld [vmem:[#allocation6 + $0x210] sm:$0xff]
    %v705 = vld [vmem:[#allocation6 + $0x218] sm:$0xff]
    %v706 = vld [vmem:[#allocation6 + $0x220] sm:$0xff]
    %v707 = vld [vmem:[#allocation6 + $0x228] sm:$0xff]
    %v708 = vld [vmem:[#allocation6 + $0x230] sm:$0xff]
    %v709 = vld [vmem:[#allocation6 + $0x238] sm:$0xff]
    %v710 = vld [vmem:[#allocation6 + $0x240] sm:$0xff]
    %v711 = vld [vmem:[#allocation6 + $0x248] sm:$0xff]
    %v712 = vld [vmem:[#allocation6 + $0x250] sm:$0xff]
    %v713 = vld [vmem:[#allocation6 + $0x258] sm:$0xff]
    %v714 = vld [vmem:[#allocation6 + $0x260] sm:$0xff]
    %v715 = vld [vmem:[#allocation6 + $0x268] sm:$0xff]
    %v716 = vld [vmem:[#allocation6 + $0x270] sm:$0xff]
    %v717 = vld [vmem:[#allocation6 + $0x278] sm:$0xff]
    %v718 = vld [vmem:[#allocation6 + $0x280] sm:$0xff]
    %v719 = vld [vmem:[#allocation6 + $0x288] sm:$0xff]
    %v720 = vld [vmem:[#allocation6 + $0x290] sm:$0xff]
    %v721 = vld [vmem:[#allocation6 + $0x298] sm:$0xff]
    %v722 = vld [vmem:[#allocation6 + $0x2a0] sm:$0xff]
    %v723 = vld [vmem:[#allocation6 + $0x2a8] sm:$0xff]
    %v724 = vld [vmem:[#allocation6 + $0x2b0] sm:$0xff]
    %v725 = vld [vmem:[#allocation6 + $0x2b8] sm:$0xff]
    %v726 = vld [vmem:[#allocation6 + $0x2c0] sm:$0xff]
    %v727 = vld [vmem:[#allocation6 + $0x2c8] sm:$0xff]
    %v728 = vld [vmem:[#allocation6 + $0x2d0] sm:$0xff]
    %v729 = vld [vmem:[#allocation6 + $0x2d8] sm:$0xff]
    %v730 = vld [vmem:[#allocation6 + $0x2e0] sm:$0xff]
    %v731 = vld [vmem:[#allocation6 + $0x2e8] sm:$0xff]
    %v732 = vld [vmem:[#allocation6 + $0x2f0] sm:$0xff]
    %v733 = vld [vmem:[#allocation6 + $0x2f8] sm:$0xff]
    %v734 = vld [vmem:[#allocation6 + $0x300] sm:$0xff]
    %v735 = vld [vmem:[#allocation6 + $0x308] sm:$0xff]
    %v736 = vld [vmem:[#allocation6 + $0x310] sm:$0xff]
    %v737 = vld [vmem:[#allocation6 + $0x318] sm:$0xff]
    %v738 = vld [vmem:[#allocation6 + $0x320] sm:$0xff]
    %v739 = vld [vmem:[#allocation6 + $0x328] sm:$0xff]
    %v740 = vld [vmem:[#allocation6 + $0x330] sm:$0xff]
    %v741 = vld [vmem:[#allocation6 + $0x338] sm:$0xff]
    %v742 = vld [vmem:[#allocation6 + $0x340] sm:$0xff]
    %v743 = vld [vmem:[#allocation6 + $0x348] sm:$0xff]
    %v744 = vld [vmem:[#allocation6 + $0x350] sm:$0xff]
    %v745 = vld [vmem:[#allocation6 + $0x358] sm:$0xff]
    %v746 = vld [vmem:[#allocation6 + $0x360] sm:$0xff]
    %v747 = vld [vmem:[#allocation6 + $0x368] sm:$0xff]
    %v748 = vld [vmem:[#allocation6 + $0x370] sm:$0xff]
    %v749 = vld [vmem:[#allocation6 + $0x378] sm:$0xff]
    %v750 = vld [vmem:[#allocation6 + $0x380] sm:$0xff]
    %v751 = vld [vmem:[#allocation6 + $0x388] sm:$0xff]
    %v752 = vld [vmem:[#allocation6 + $0x390] sm:$0xff]
    %v753 = vld [vmem:[#allocation6 + $0x398] sm:$0xff]
    %v754 = vld [vmem:[#allocation6 + $0x3a0] sm:$0xff]
    %v755 = vld [vmem:[#allocation6 + $0x3a8] sm:$0xff]
    %v756 = vld [vmem:[#allocation6 + $0x3b0] sm:$0xff]
    %v757 = vld [vmem:[#allocation6 + $0x3b8] sm:$0xff]
    %v758 = vld [vmem:[#allocation6 + $0x3c0] sm:$0xff]
    %v759 = vld [vmem:[#allocation6 + $0x3c8] sm:$0xff]
    %v760 = vld [vmem:[#allocation6 + $0x3d0] sm:$0xff]
    %v761 = vld [vmem:[#allocation6 + $0x3d8] sm:$0xff]
    %v762 = vld [vmem:[#allocation6 + $0x3e0] sm:$0xff]
    %v763 = vld [vmem:[#allocation6 + $0x3e8] sm:$0xff]
    %v764 = vld [vmem:[#allocation6 + $0x3f0] sm:$0xff]
    %v765 = vld [vmem:[#allocation6 + $0x3f8] sm:$0xff]
    %v766 = vld [vmem:[#allocation7] sm:$0xf]
    %v768 = vlaneseq
    %v769 = vshrl.u32 %v768, 7
    %v770 = vsub.s32 0, %v769
    %v771 = vrot.slane %v766, %v770
    %v772 = vlaneseq
    %v773 = vshrl.u32 %v772, 7
    %v774 = vsub.s32 1, %v773
    %v775 = vrot.slane %v766, %v774
    %v776 = vlaneseq
    %v777 = vshrl.u32 %v776, 7
    %v778 = vsub.s32 2, %v777
    %v779 = vrot.slane %v766, %v778
    %v780 = vlaneseq
    %v781 = vshrl.u32 %v780, 7
    %v782 = vsub.s32 3, %v781
    %v783 = vrot.slane %v766, %v782
    %v916 = vunpack.c.l.b16 %v638
    %v917 = vunpack.c.h.b16 %v638
    %v918 = vunpack.c.l.b16 %v639
    %v919 = vunpack.c.h.b16 %v639
    %v920 = vunpack.c.l.b16 %v640
    %v921 = vunpack.c.h.b16 %v640
    %v922 = vunpack.c.l.b16 %v641
    %v923 = vunpack.c.h.b16 %v641
    %v924 = vunpack.c.l.b16 %v642
    %v925 = vunpack.c.h.b16 %v642
    %v926 = vunpack.c.l.b16 %v643
    %v927 = vunpack.c.h.b16 %v643
    %v928 = vunpack.c.l.b16 %v644
    %v929 = vunpack.c.h.b16 %v644
    %v930 = vunpack.c.l.b16 %v645
    %v931 = vunpack.c.h.b16 %v645
    %v932 = vunpack.c.l.b16 %v646
    %v933 = vunpack.c.h.b16 %v646
    %v934 = vunpack.c.l.b16 %v647
    %v935 = vunpack.c.h.b16 %v647
    %v936 = vunpack.c.l.b16 %v648
    %v937 = vunpack.c.h.b16 %v648
    %v938 = vunpack.c.l.b16 %v649
    %v939 = vunpack.c.h.b16 %v649
    %v940 = vunpack.c.l.b16 %v650
    %v941 = vunpack.c.h.b16 %v650
    %v942 = vunpack.c.l.b16 %v651
    %v943 = vunpack.c.h.b16 %v651
    %v944 = vunpack.c.l.b16 %v652
    %v945 = vunpack.c.h.b16 %v652
    %v946 = vunpack.c.l.b16 %v653
    %v947 = vunpack.c.h.b16 %v653
    %v948 = vunpack.c.l.b16 %v654
    %v949 = vunpack.c.h.b16 %v654
    %v950 = vunpack.c.l.b16 %v655
    %v951 = vunpack.c.h.b16 %v655
    %v952 = vunpack.c.l.b16 %v656
    %v953 = vunpack.c.h.b16 %v656
    %v954 = vunpack.c.l.b16 %v657
    %v955 = vunpack.c.h.b16 %v657
    %v956 = vunpack.c.l.b16 %v658
    %v957 = vunpack.c.h.b16 %v658
    %v958 = vunpack.c.l.b16 %v659
    %v959 = vunpack.c.h.b16 %v659
    %v960 = vunpack.c.l.b16 %v660
    %v961 = vunpack.c.h.b16 %v660
    %v962 = vunpack.c.l.b16 %v661
    %v963 = vunpack.c.h.b16 %v661
    %v964 = vunpack.c.l.b16 %v662
    %v965 = vunpack.c.h.b16 %v662
    %v966 = vunpack.c.l.b16 %v663
    %v967 = vunpack.c.h.b16 %v663
    %v968 = vunpack.c.l.b16 %v664
    %v969 = vunpack.c.h.b16 %v664
    %v970 = vunpack.c.l.b16 %v665
    %v971 = vunpack.c.h.b16 %v665
    %v972 = vunpack.c.l.b16 %v666
    %v973 = vunpack.c.h.b16 %v666
    %v974 = vunpack.c.l.b16 %v667
    %v975 = vunpack.c.h.b16 %v667
    %v976 = vunpack.c.l.b16 %v668
    %v977 = vunpack.c.h.b16 %v668
    %v978 = vunpack.c.l.b16 %v669
    %v979 = vunpack.c.h.b16 %v669
    %v980 = vunpack.c.l.b16 %v670
    %v981 = vunpack.c.h.b16 %v670
    %v982 = vunpack.c.l.b16 %v671
    %v983 = vunpack.c.h.b16 %v671
    %v984 = vunpack.c.l.b16 %v672
    %v985 = vunpack.c.h.b16 %v672
    %v986 = vunpack.c.l.b16 %v673
    %v987 = vunpack.c.h.b16 %v673
    %v988 = vunpack.c.l.b16 %v674
    %v989 = vunpack.c.h.b16 %v674
    %v990 = vunpack.c.l.b16 %v675
    %v991 = vunpack.c.h.b16 %v675
    %v992 = vunpack.c.l.b16 %v676
    %v993 = vunpack.c.h.b16 %v676
    %v994 = vunpack.c.l.b16 %v677
    %v995 = vunpack.c.h.b16 %v677
    %v996 = vunpack.c.l.b16 %v678
    %v997 = vunpack.c.h.b16 %v678
    %v998 = vunpack.c.l.b16 %v679
    %v999 = vunpack.c.h.b16 %v679
    %v1000 = vunpack.c.l.b16 %v680
    %v1001 = vunpack.c.h.b16 %v680
    %v1002 = vunpack.c.l.b16 %v681
    %v1003 = vunpack.c.h.b16 %v681
    %v1004 = vunpack.c.l.b16 %v682
    %v1005 = vunpack.c.h.b16 %v682
    %v1006 = vunpack.c.l.b16 %v683
    %v1007 = vunpack.c.h.b16 %v683
    %v1008 = vunpack.c.l.b16 %v684
    %v1009 = vunpack.c.h.b16 %v684
    %v1010 = vunpack.c.l.b16 %v685
    %v1011 = vunpack.c.h.b16 %v685
    %v1012 = vunpack.c.l.b16 %v686
    %v1013 = vunpack.c.h.b16 %v686
    %v1014 = vunpack.c.l.b16 %v687
    %v1015 = vunpack.c.h.b16 %v687
    %v1016 = vunpack.c.l.b16 %v688
    %v1017 = vunpack.c.h.b16 %v688
    %v1018 = vunpack.c.l.b16 %v689
    %v1019 = vunpack.c.h.b16 %v689
    %v1020 = vunpack.c.l.b16 %v690
    %v1021 = vunpack.c.h.b16 %v690
    %v1022 = vunpack.c.l.b16 %v691
    %v1023 = vunpack.c.h.b16 %v691
    %v1024 = vunpack.c.l.b16 %v692
    %v1025 = vunpack.c.h.b16 %v692
    %v1026 = vunpack.c.l.b16 %v693
    %v1027 = vunpack.c.h.b16 %v693
    %v1028 = vunpack.c.l.b16 %v694
    %v1029 = vunpack.c.h.b16 %v694
    %v1030 = vunpack.c.l.b16 %v695
    %v1031 = vunpack.c.h.b16 %v695
    %v1032 = vunpack.c.l.b16 %v696
    %v1033 = vunpack.c.h.b16 %v696
    %v1034 = vunpack.c.l.b16 %v697
    %v1035 = vunpack.c.h.b16 %v697
    %v1036 = vunpack.c.l.b16 %v698
    %v1037 = vunpack.c.h.b16 %v698
    %v1038 = vunpack.c.l.b16 %v699
    %v1039 = vunpack.c.h.b16 %v699
    %v1040 = vunpack.c.l.b16 %v700
    %v1041 = vunpack.c.h.b16 %v700
    %v1042 = vunpack.c.l.b16 %v701
    %v1043 = vunpack.c.h.b16 %v701
    %v1044 = vunpack.c.l.b16 %v702
    %v1045 = vunpack.c.h.b16 %v702
    %v1046 = vunpack.c.l.b16 %v703
    %v1047 = vunpack.c.h.b16 %v703
    %v1048 = vunpack.c.l.b16 %v704
    %v1049 = vunpack.c.h.b16 %v704
    %v1050 = vunpack.c.l.b16 %v705
    %v1051 = vunpack.c.h.b16 %v705
    %v1052 = vunpack.c.l.b16 %v706
    %v1053 = vunpack.c.h.b16 %v706
    %v1054 = vunpack.c.l.b16 %v707
    %v1055 = vunpack.c.h.b16 %v707
    %v1056 = vunpack.c.l.b16 %v708
    %v1057 = vunpack.c.h.b16 %v708
    %v1058 = vunpack.c.l.b16 %v709
    %v1059 = vunpack.c.h.b16 %v709
    %v1060 = vunpack.c.l.b16 %v710
    %v1061 = vunpack.c.h.b16 %v710
    %v1062 = vunpack.c.l.b16 %v711
    %v1063 = vunpack.c.h.b16 %v711
    %v1064 = vunpack.c.l.b16 %v712
    %v1065 = vunpack.c.h.b16 %v712
    %v1066 = vunpack.c.l.b16 %v713
    %v1067 = vunpack.c.h.b16 %v713
    %v1068 = vunpack.c.l.b16 %v714
    %v1069 = vunpack.c.h.b16 %v714
    %v1070 = vunpack.c.l.b16 %v715
    %v1071 = vunpack.c.h.b16 %v715
    %v1072 = vunpack.c.l.b16 %v716
    %v1073 = vunpack.c.h.b16 %v716
    %v1074 = vunpack.c.l.b16 %v717
    %v1075 = vunpack.c.h.b16 %v717
    %v1076 = vunpack.c.l.b16 %v718
    %v1077 = vunpack.c.h.b16 %v718
    %v1078 = vunpack.c.l.b16 %v719
    %v1079 = vunpack.c.h.b16 %v719
    %v1080 = vunpack.c.l.b16 %v720
    %v1081 = vunpack.c.h.b16 %v720
    %v1082 = vunpack.c.l.b16 %v721
    %v1083 = vunpack.c.h.b16 %v721
    %v1084 = vunpack.c.l.b16 %v722
    %v1085 = vunpack.c.h.b16 %v722
    %v1086 = vunpack.c.l.b16 %v723
    %v1087 = vunpack.c.h.b16 %v723
    %v1088 = vunpack.c.l.b16 %v724
    %v1089 = vunpack.c.h.b16 %v724
    %v1090 = vunpack.c.l.b16 %v725
    %v1091 = vunpack.c.h.b16 %v725
    %v1092 = vunpack.c.l.b16 %v726
    %v1093 = vunpack.c.h.b16 %v726
    %v1094 = vunpack.c.l.b16 %v727
    %v1095 = vunpack.c.h.b16 %v727
    %v1096 = vunpack.c.l.b16 %v728
    %v1097 = vunpack.c.h.b16 %v728
    %v1098 = vunpack.c.l.b16 %v729
    %v1099 = vunpack.c.h.b16 %v729
    %v1100 = vunpack.c.l.b16 %v730
    %v1101 = vunpack.c.h.b16 %v730
    %v1102 = vunpack.c.l.b16 %v731
    %v1103 = vunpack.c.h.b16 %v731
    %v1104 = vunpack.c.l.b16 %v732
    %v1105 = vunpack.c.h.b16 %v732
    %v1106 = vunpack.c.l.b16 %v733
    %v1107 = vunpack.c.h.b16 %v733
    %v1108 = vunpack.c.l.b16 %v734
    %v1109 = vunpack.c.h.b16 %v734
    %v1110 = vunpack.c.l.b16 %v735
    %v1111 = vunpack.c.h.b16 %v735
    %v1112 = vunpack.c.l.b16 %v736
    %v1113 = vunpack.c.h.b16 %v736
    %v1114 = vunpack.c.l.b16 %v737
    %v1115 = vunpack.c.h.b16 %v737
    %v1116 = vunpack.c.l.b16 %v738
    %v1117 = vunpack.c.h.b16 %v738
    %v1118 = vunpack.c.l.b16 %v739
    %v1119 = vunpack.c.h.b16 %v739
    %v1120 = vunpack.c.l.b16 %v740
    %v1121 = vunpack.c.h.b16 %v740
    %v1122 = vunpack.c.l.b16 %v741
    %v1123 = vunpack.c.h.b16 %v741
    %v1124 = vunpack.c.l.b16 %v742
    %v1125 = vunpack.c.h.b16 %v742
    %v1126 = vunpack.c.l.b16 %v743
    %v1127 = vunpack.c.h.b16 %v743
    %v1128 = vunpack.c.l.b16 %v744
    %v1129 = vunpack.c.h.b16 %v744
    %v1130 = vunpack.c.l.b16 %v745
    %v1131 = vunpack.c.h.b16 %v745
    %v1132 = vunpack.c.l.b16 %v746
    %v1133 = vunpack.c.h.b16 %v746
    %v1134 = vunpack.c.l.b16 %v747
    %v1135 = vunpack.c.h.b16 %v747
    %v1136 = vunpack.c.l.b16 %v748
    %v1137 = vunpack.c.h.b16 %v748
    %v1138 = vunpack.c.l.b16 %v749
    %v1139 = vunpack.c.h.b16 %v749
    %v1140 = vunpack.c.l.b16 %v750
    %v1141 = vunpack.c.h.b16 %v750
    %v1142 = vunpack.c.l.b16 %v751
    %v1143 = vunpack.c.h.b16 %v751
    %v1144 = vunpack.c.l.b16 %v752
    %v1145 = vunpack.c.h.b16 %v752
    %v1146 = vunpack.c.l.b16 %v753
    %v1147 = vunpack.c.h.b16 %v753
    %v1148 = vunpack.c.l.b16 %v754
    %v1149 = vunpack.c.h.b16 %v754
    %v1150 = vunpack.c.l.b16 %v755
    %v1151 = vunpack.c.h.b16 %v755
    %v1152 = vunpack.c.l.b16 %v756
    %v1153 = vunpack.c.h.b16 %v756
    %v1154 = vunpack.c.l.b16 %v757
    %v1155 = vunpack.c.h.b16 %v757
    %v1156 = vunpack.c.l.b16 %v758
    %v1157 = vunpack.c.h.b16 %v758
    %v1158 = vunpack.c.l.b16 %v759
    %v1159 = vunpack.c.h.b16 %v759
    %v1160 = vunpack.c.l.b16 %v760
    %v1161 = vunpack.c.h.b16 %v760
    %v1162 = vunpack.c.l.b16 %v761
    %v1163 = vunpack.c.h.b16 %v761
    %v1164 = vunpack.c.l.b16 %v762
    %v1165 = vunpack.c.h.b16 %v762
    %v1166 = vunpack.c.l.b16 %v763
    %v1167 = vunpack.c.h.b16 %v763
    %v1168 = vunpack.c.l.b16 %v764
    %v1169 = vunpack.c.h.b16 %v764
    %v1170 = vunpack.c.l.b16 %v765
    %v1171 = vunpack.c.h.b16 %v765
    %v1172 = vpack.c.b16 %v920, %v916
    %v1173 = vpack.c.b16 %v921, %v917
    %v1174 = vpack.c.b16 %v922, %v918
    %v1175 = vpack.c.b16 %v923, %v919
    %v1176 = vpack.c.b16 %v928, %v924
    %v1177 = vpack.c.b16 %v929, %v925
    %v1178 = vpack.c.b16 %v930, %v926
    %v1179 = vpack.c.b16 %v931, %v927
    %v1180 = vpack.c.b16 %v936, %v932
    %v1181 = vpack.c.b16 %v937, %v933
    %v1182 = vpack.c.b16 %v938, %v934
    %v1183 = vpack.c.b16 %v939, %v935
    %v1184 = vpack.c.b16 %v944, %v940
    %v1185 = vpack.c.b16 %v945, %v941
    %v1186 = vpack.c.b16 %v946, %v942
    %v1187 = vpack.c.b16 %v947, %v943
    %v1188 = vpack.c.b16 %v952, %v948
    %v1189 = vpack.c.b16 %v953, %v949
    %v1190 = vpack.c.b16 %v954, %v950
    %v1191 = vpack.c.b16 %v955, %v951
    %v1192 = vpack.c.b16 %v960, %v956
    %v1193 = vpack.c.b16 %v961, %v957
    %v1194 = vpack.c.b16 %v962, %v958
    %v1195 = vpack.c.b16 %v963, %v959
    %v1196 = vpack.c.b16 %v968, %v964
    %v1197 = vpack.c.b16 %v969, %v965
    %v1198 = vpack.c.b16 %v970, %v966
    %v1199 = vpack.c.b16 %v971, %v967
    %v1200 = vpack.c.b16 %v976, %v972
    %v1201 = vpack.c.b16 %v977, %v973
    %v1202 = vpack.c.b16 %v978, %v974
    %v1203 = vpack.c.b16 %v979, %v975
    %v1204 = vpack.c.b16 %v984, %v980
    %v1205 = vpack.c.b16 %v985, %v981
    %v1206 = vpack.c.b16 %v986, %v982
    %v1207 = vpack.c.b16 %v987, %v983
    %v1208 = vpack.c.b16 %v992, %v988
    %v1209 = vpack.c.b16 %v993, %v989
    %v1210 = vpack.c.b16 %v994, %v990
    %v1211 = vpack.c.b16 %v995, %v991
    %v1212 = vpack.c.b16 %v1000, %v996
    %v1213 = vpack.c.b16 %v1001, %v997
    %v1214 = vpack.c.b16 %v1002, %v998
    %v1215 = vpack.c.b16 %v1003, %v999
    %v1216 = vpack.c.b16 %v1008, %v1004
    %v1217 = vpack.c.b16 %v1009, %v1005
    %v1218 = vpack.c.b16 %v1010, %v1006
    %v1219 = vpack.c.b16 %v1011, %v1007
    %v1220 = vpack.c.b16 %v1016, %v1012
    %v1221 = vpack.c.b16 %v1017, %v1013
    %v1222 = vpack.c.b16 %v1018, %v1014
    %v1223 = vpack.c.b16 %v1019, %v1015
    %v1224 = vpack.c.b16 %v1024, %v1020
    %v1225 = vpack.c.b16 %v1025, %v1021
    %v1226 = vpack.c.b16 %v1026, %v1022
    %v1227 = vpack.c.b16 %v1027, %v1023
    %v1228 = vpack.c.b16 %v1032, %v1028
    %v1229 = vpack.c.b16 %v1033, %v1029
    %v1230 = vpack.c.b16 %v1034, %v1030
    %v1231 = vpack.c.b16 %v1035, %v1031
    %v1232 = vpack.c.b16 %v1040, %v1036
    %v1233 = vpack.c.b16 %v1041, %v1037
    %v1234 = vpack.c.b16 %v1042, %v1038
    %v1235 = vpack.c.b16 %v1043, %v1039
    %v1236 = vpack.c.b16 %v1048, %v1044
    %v1237 = vpack.c.b16 %v1049, %v1045
    %v1238 = vpack.c.b16 %v1050, %v1046
    %v1239 = vpack.c.b16 %v1051, %v1047
    %v1240 = vpack.c.b16 %v1056, %v1052
    %v1241 = vpack.c.b16 %v1057, %v1053
    %v1242 = vpack.c.b16 %v1058, %v1054
    %v1243 = vpack.c.b16 %v1059, %v1055
    %v1244 = vpack.c.b16 %v1064, %v1060
    %v1245 = vpack.c.b16 %v1065, %v1061
    %v1246 = vpack.c.b16 %v1066, %v1062
    %v1247 = vpack.c.b16 %v1067, %v1063
    %v1248 = vpack.c.b16 %v1072, %v1068
    %v1249 = vpack.c.b16 %v1073, %v1069
    %v1250 = vpack.c.b16 %v1074, %v1070
    %v1251 = vpack.c.b16 %v1075, %v1071
    %v1252 = vpack.c.b16 %v1080, %v1076
    %v1253 = vpack.c.b16 %v1081, %v1077
    %v1254 = vpack.c.b16 %v1082, %v1078
    %v1255 = vpack.c.b16 %v1083, %v1079
    %v1256 = vpack.c.b16 %v1088, %v1084
    %v1257 = vpack.c.b16 %v1089, %v1085
    %v1258 = vpack.c.b16 %v1090, %v1086
    %v1259 = vpack.c.b16 %v1091, %v1087
    %v1260 = vpack.c.b16 %v1096, %v1092
    %v1261 = vpack.c.b16 %v1097, %v1093
    %v1262 = vpack.c.b16 %v1098, %v1094
    %v1263 = vpack.c.b16 %v1099, %v1095
    %v1264 = vpack.c.b16 %v1104, %v1100
    %v1265 = vpack.c.b16 %v1105, %v1101
    %v1266 = vpack.c.b16 %v1106, %v1102
    %v1267 = vpack.c.b16 %v1107, %v1103
    %v1268 = vpack.c.b16 %v1112, %v1108
    %v1269 = vpack.c.b16 %v1113, %v1109
    %v1270 = vpack.c.b16 %v1114, %v1110
    %v1271 = vpack.c.b16 %v1115, %v1111
    %v1272 = vpack.c.b16 %v1120, %v1116
    %v1273 = vpack.c.b16 %v1121, %v1117
    %v1274 = vpack.c.b16 %v1122, %v1118
    %v1275 = vpack.c.b16 %v1123, %v1119
    %v1276 = vpack.c.b16 %v1128, %v1124
    %v1277 = vpack.c.b16 %v1129, %v1125
    %v1278 = vpack.c.b16 %v1130, %v1126
    %v1279 = vpack.c.b16 %v1131, %v1127
    %v1280 = vpack.c.b16 %v1136, %v1132
    %v1281 = vpack.c.b16 %v1137, %v1133
    %v1282 = vpack.c.b16 %v1138, %v1134
    %v1283 = vpack.c.b16 %v1139, %v1135
    %v1284 = vpack.c.b16 %v1144, %v1140
    %v1285 = vpack.c.b16 %v1145, %v1141
    %v1286 = vpack.c.b16 %v1146, %v1142
    %v1287 = vpack.c.b16 %v1147, %v1143
    %v1288 = vpack.c.b16 %v1152, %v1148
    %v1289 = vpack.c.b16 %v1153, %v1149
    %v1290 = vpack.c.b16 %v1154, %v1150
    %v1291 = vpack.c.b16 %v1155, %v1151
    %v1292 = vpack.c.b16 %v1160, %v1156
    %v1293 = vpack.c.b16 %v1161, %v1157
    %v1294 = vpack.c.b16 %v1162, %v1158
    %v1295 = vpack.c.b16 %v1163, %v1159
    %v1296 = vpack.c.b16 %v1168, %v1164
    %v1297 = vpack.c.b16 %v1169, %v1165
    %v1298 = vpack.c.b16 %v1170, %v1166
    %v1299 = vpack.c.b16 %v1171, %v1167
    %1428 = vmatprep.subr.bf16.mxu0 %v1173
    %1429 = vmatpush1.bf16.msra.mxu0 %v1172
    %1430 = vmatprep.subr.bf16.mxu0 %v1177
    %1431 = vmatpush1.bf16.msra.mxu0 %v1176
    %1432 = vmatprep.subr.bf16.mxu0 %v1181
    %1433 = vmatpush1.bf16.msra.mxu0 %v1180
    %1434 = vmatprep.subr.bf16.mxu0 %v1185
    %1435 = vmatpush1.bf16.msra.mxu0 %v1184
    %1436 = vmatprep.subr.bf16.mxu0 %v1189
    %1437 = vmatpush1.bf16.msra.mxu0 %v1188
    %1438 = vmatprep.subr.bf16.mxu0 %v1193
    %1439 = vmatpush1.bf16.msra.mxu0 %v1192
    %1440 = vmatprep.subr.bf16.mxu0 %v1197
    %1441 = vmatpush1.bf16.msra.mxu0 %v1196
    %1442 = vmatprep.subr.bf16.mxu0 %v1201
    %1443 = vmatpush1.bf16.msra.mxu0 %v1200
    %1444 = vmatprep.subr.bf16.mxu0 %v1205
    %1445 = vmatpush1.bf16.msra.mxu0 %v1204
    %1446 = vmatprep.subr.bf16.mxu0 %v1209
    %1447 = vmatpush1.bf16.msra.mxu0 %v1208
    %1448 = vmatprep.subr.bf16.mxu0 %v1213
    %1449 = vmatpush1.bf16.msra.mxu0 %v1212
    %1450 = vmatprep.subr.bf16.mxu0 %v1217
    %1451 = vmatpush1.bf16.msra.mxu0 %v1216
    %1452 = vmatprep.subr.bf16.mxu0 %v1221
    %1453 = vmatpush1.bf16.msra.mxu0 %v1220
    %1454 = vmatprep.subr.bf16.mxu0 %v1225
    %1455 = vmatpush1.bf16.msra.mxu0 %v1224
    %1456 = vmatprep.subr.bf16.mxu0 %v1229
    %1457 = vmatpush1.bf16.msra.mxu0 %v1228
    %1458 = vmatprep.subr.bf16.mxu0 %v1233
    %1459 = vmatpush1.bf16.msra.mxu0 %v1232
    %1460 = vmatprep.mubr.bf16.mxu0 %v635
    %1461 = vmatmul.mubr.bf16.gmra.mrb[0].mxu0 %v634
    %v1462 = vpop.f32.mrb[0].mxu0
    %v1463 = vadd.f32 %v771, %v1462
    %v1464 = vpop.f32.mrb[0].mxu0
    %v1465 = vadd.f32 %v775, %v1464
    %v1466 = vpop.f32.mrb[0].mxu0
    %v1467 = vpop.f32.mrb[0].mxu0
    %1468 = vdwg.mxu0
    %1469 = vmatprep.subr.bf16.mxu0 %v1237
    %1470 = vmatpush1.bf16.msra.mxu0 %v1236
    %1471 = vmatprep.subr.bf16.mxu0 %v1241
    %1472 = vmatpush1.bf16.msra.mxu0 %v1240
    %1473 = vmatprep.subr.bf16.mxu0 %v1245
    %1474 = vmatpush1.bf16.msra.mxu0 %v1244
    %1475 = vmatprep.subr.bf16.mxu0 %v1249
    %1476 = vmatpush1.bf16.msra.mxu0 %v1248
    %1477 = vmatprep.subr.bf16.mxu0 %v1253
    %1478 = vmatpush1.bf16.msra.mxu0 %v1252
    %1479 = vmatprep.subr.bf16.mxu0 %v1257
    %1480 = vmatpush1.bf16.msra.mxu0 %v1256
    %1481 = vmatprep.subr.bf16.mxu0 %v1261
    %1482 = vmatpush1.bf16.msra.mxu0 %v1260
    %1483 = vmatprep.subr.bf16.mxu0 %v1265
    %1484 = vmatpush1.bf16.msra.mxu0 %v1264
    %1485 = vmatprep.subr.bf16.mxu0 %v1269
    %1486 = vmatpush1.bf16.msra.mxu0 %v1268
    %1487 = vmatprep.subr.bf16.mxu0 %v1273
    %1488 = vmatpush1.bf16.msra.mxu0 %v1272
    %1489 = vmatprep.subr.bf16.mxu0 %v1277
    %1490 = vmatpush1.bf16.msra.mxu0 %v1276
    %1491 = vmatprep.subr.bf16.mxu0 %v1281
    %1492 = vmatpush1.bf16.msra.mxu0 %v1280
    %1493 = vmatprep.subr.bf16.mxu0 %v1285
    %1494 = vmatpush1.bf16.msra.mxu0 %v1284
    %1495 = vmatprep.subr.bf16.mxu0 %v1289
    %1496 = vmatpush1.bf16.msra.mxu0 %v1288
    %1497 = vmatprep.subr.bf16.mxu0 %v1293
    %1498 = vmatpush1.bf16.msra.mxu0 %v1292
    %1499 = vmatprep.subr.bf16.mxu0 %v1297
    %1500 = vmatpush1.bf16.msra.mxu0 %v1296
    %1501 = vmatprep.mubr.bf16.mxu0 %v637
    %1502 = vmatmul.mubr.bf16.gmra.mrb[0].mxu0 %v636
    %v1503 = vpop.f32.mrb[0].mxu0
    %v1504 = vadd.f32 %v1463, %v1503
    %v1505 = vpop.f32.mrb[0].mxu0
    %v1506 = vadd.f32 %v1465, %v1505
    %v1507 = vpop.f32.mrb[0].mxu0
    %v1508 = vpop.f32.mrb[0].mxu0
    %1509 = vdwg.mxu0
    %1510 = vmatprep.subr.bf16.mxu0 %v1175
    %1511 = vmatpush1.bf16.msra.mxu0 %v1174
    %1512 = vmatprep.subr.bf16.mxu0 %v1179
    %1513 = vmatpush1.bf16.msra.mxu0 %v1178
    %1514 = vmatprep.subr.bf16.mxu0 %v1183
    %1515 = vmatpush1.bf16.msra.mxu0 %v1182
    %1516 = vmatprep.subr.bf16.mxu0 %v1187
    %1517 = vmatpush1.bf16.msra.mxu0 %v1186
    %1518 = vmatprep.subr.bf16.mxu0 %v1191
    %1519 = vmatpush1.bf16.msra.mxu0 %v1190
    %1520 = vmatprep.subr.bf16.mxu0 %v1195
    %1521 = vmatpush1.bf16.msra.mxu0 %v1194
    %1522 = vmatprep.subr.bf16.mxu0 %v1199
    %1523 = vmatpush1.bf16.msra.mxu0 %v1198
    %1524 = vmatprep.subr.bf16.mxu0 %v1203
    %1525 = vmatpush1.bf16.msra.mxu0 %v1202
    %1526 = vmatprep.subr.bf16.mxu0 %v1207
    %1527 = vmatpush1.bf16.msra.mxu0 %v1206
    %1528 = vmatprep.subr.bf16.mxu0 %v1211
    %1529 = vmatpush1.bf16.msra.mxu0 %v1210
    %1530 = vmatprep.subr.bf16.mxu0 %v1215
    %1531 = vmatpush1.bf16.msra.mxu0 %v1214
    %1532 = vmatprep.subr.bf16.mxu0 %v1219
    %1533 = vmatpush1.bf16.msra.mxu0 %v1218
    %1534 = vmatprep.subr.bf16.mxu0 %v1223
    %1535 = vmatpush1.bf16.msra.mxu0 %v1222
    %1536 = vmatprep.subr.bf16.mxu0 %v1227
    %1537 = vmatpush1.bf16.msra.mxu0 %v1226
    %1538 = vmatprep.subr.bf16.mxu0 %v1231
    %1539 = vmatpush1.bf16.msra.mxu0 %v1230
    %1540 = vmatprep.subr.bf16.mxu0 %v1235
    %1541 = vmatpush1.bf16.msra.mxu0 %v1234
    %1542 = vmatprep.mubr.bf16.mxu0 %v635
    %1543 = vmatmul.mubr.bf16.gmra.mrb[0].mxu0 %v634
    %v1544 = vpop.f32.mrb[0].mxu0
    %v1545 = vadd.f32 %v779, %v1544
    %v1546 = vpop.f32.mrb[0].mxu0
    %v1547 = vadd.f32 %v783, %v1546
    %v1548 = vpop.f32.mrb[0].mxu0
    %v1549 = vpop.f32.mrb[0].mxu0
    %1550 = vdwg.mxu0
    %1551 = vmatprep.subr.bf16.mxu0 %v1239
    %1552 = vmatpush1.bf16.msra.mxu0 %v1238
    %1553 = vmatprep.subr.bf16.mxu0 %v1243
    %1554 = vmatpush1.bf16.msra.mxu0 %v1242
    %1555 = vmatprep.subr.bf16.mxu0 %v1247
    %1556 = vmatpush1.bf16.msra.mxu0 %v1246
    %1557 = vmatprep.subr.bf16.mxu0 %v1251
    %1558 = vmatpush1.bf16.msra.mxu0 %v1250
    %1559 = vmatprep.subr.bf16.mxu0 %v1255
    %1560 = vmatpush1.bf16.msra.mxu0 %v1254
    %1561 = vmatprep.subr.bf16.mxu0 %v1259
    %1562 = vmatpush1.bf16.msra.mxu0 %v1258
    %1563 = vmatprep.subr.bf16.mxu0 %v1263
    %1564 = vmatpush1.bf16.msra.mxu0 %v1262
    %1565 = vmatprep.subr.bf16.mxu0 %v1267
    %1566 = vmatpush1.bf16.msra.mxu0 %v1266
    %1567 = vmatprep.subr.bf16.mxu0 %v1271
    %1568 = vmatpush1.bf16.msra.mxu0 %v1270
    %1569 = vmatprep.subr.bf16.mxu0 %v1275
    %1570 = vmatpush1.bf16.msra.mxu0 %v1274
    %1571 = vmatprep.subr.bf16.mxu0 %v1279
    %1572 = vmatpush1.bf16.msra.mxu0 %v1278
    %1573 = vmatprep.subr.bf16.mxu0 %v1283
    %1574 = vmatpush1.bf16.msra.mxu0 %v1282
    %1575 = vmatprep.subr.bf16.mxu0 %v1287
    %1576 = vmatpush1.bf16.msra.mxu0 %v1286
    %1577 = vmatprep.subr.bf16.mxu0 %v1291
    %1578 = vmatpush1.bf16.msra.mxu0 %v1290
    %1579 = vmatprep.subr.bf16.mxu0 %v1295
    %1580 = vmatpush1.bf16.msra.mxu0 %v1294
    %1581 = vmatprep.subr.bf16.mxu0 %v1299
    %1582 = vmatpush1.bf16.msra.mxu0 %v1298
    %1583 = vmatprep.mubr.bf16.mxu0 %v637
    %1584 = vmatmul.mubr.bf16.gmra.mrb[0].mxu0 %v636
    %v1585 = vpop.f32.mrb[0].mxu0
    %v1586 = vadd.f32 %v1545, %v1585
    %v1587 = vpop.f32.mrb[0].mxu0
    %v1588 = vadd.f32 %v1547, %v1587
    %v1589 = vpop.f32.mrb[0].mxu0
    %v1590 = vpop.f32.mrb[0].mxu0
    %1591 = vdwg.mxu0
    %v1592 = vmax.f32 %v1504, 0.0
    %v1593 = vmax.f32 %v1506, 0.0
    %v1594 = vmax.f32 %v1586, 0.0
    %v1595 = vmax.f32 %v1588, 0.0
    %v1596 = vpack.c.bf16 %v1592, %v1592
    %v1597 = vpack.c.bf16 %v1593, %v1593
    %v1598 = vpack.c.bf16 %v1594, %v1594
    %v1599 = vpack.c.bf16 %v1595, %v1595
    %v1600 = vld [vmem:[#allocation9] sm:$0xff]
    %v1601 = vld [vmem:[#allocation9 + $0x8] sm:$0xff]
    %v1602 = vld [vmem:[#allocation9 + $0x10] sm:$0xff]
    %v1603 = vld [vmem:[#allocation9 + $0x18] sm:$0xff]
    %v1604 = vld [vmem:[#allocation9 + $0x20] sm:$0xff]
    %v1605 = vld [vmem:[#allocation9 + $0x28] sm:$0xff]
    %v1606 = vld [vmem:[#allocation9 + $0x30] sm:$0xff]
    %v1607 = vld [vmem:[#allocation9 + $0x38] sm:$0xff]
    %v1608 = vld [vmem:[#allocation9 + $0x40] sm:$0xff]
    %v1609 = vld [vmem:[#allocation9 + $0x48] sm:$0xff]
    %v1610 = vld [vmem:[#allocation9 + $0x50] sm:$0xff]
    %v1611 = vld [vmem:[#allocation9 + $0x58] sm:$0xff]
    %v1612 = vld [vmem:[#allocation9 + $0x60] sm:$0xff]
    %v1613 = vld [vmem:[#allocation9 + $0x68] sm:$0xff]
    %v1614 = vld [vmem:[#allocation9 + $0x70] sm:$0xff]
    %v1615 = vld [vmem:[#allocation9 + $0x78] sm:$0xff]
    %v1616 = vld [vmem:[#allocation9 + $0x80] sm:$0xff]
    %v1617 = vld [vmem:[#allocation9 + $0x88] sm:$0xff]
    %v1618 = vld [vmem:[#allocation9 + $0x90] sm:$0xff]
    %v1619 = vld [vmem:[#allocation9 + $0x98] sm:$0xff]
    %v1620 = vld [vmem:[#allocation9 + $0xa0] sm:$0xff]
    %v1621 = vld [vmem:[#allocation9 + $0xa8] sm:$0xff]
    %v1622 = vld [vmem:[#allocation9 + $0xb0] sm:$0xff]
    %v1623 = vld [vmem:[#allocation9 + $0xb8] sm:$0xff]
    %v1624 = vld [vmem:[#allocation9 + $0xc0] sm:$0xff]
    %v1625 = vld [vmem:[#allocation9 + $0xc8] sm:$0xff]
    %v1626 = vld [vmem:[#allocation9 + $0xd0] sm:$0xff]
    %v1627 = vld [vmem:[#allocation9 + $0xd8] sm:$0xff]
    %v1628 = vld [vmem:[#allocation9 + $0xe0] sm:$0xff]
    %v1629 = vld [vmem:[#allocation9 + $0xe8] sm:$0xff]
    %v1630 = vld [vmem:[#allocation9 + $0xf0] sm:$0xff]
    %v1631 = vld [vmem:[#allocation9 + $0xf8] sm:$0xff]
    %v1632 = vld [vmem:[#allocation9 + $0x100] sm:$0xff]
    %v1633 = vld [vmem:[#allocation9 + $0x108] sm:$0xff]
    %v1634 = vld [vmem:[#allocation9 + $0x110] sm:$0xff]
    %v1635 = vld [vmem:[#allocation9 + $0x118] sm:$0xff]
    %v1636 = vld [vmem:[#allocation9 + $0x120] sm:$0xff]
    %v1637 = vld [vmem:[#allocation9 + $0x128] sm:$0xff]
    %v1638 = vld [vmem:[#allocation9 + $0x130] sm:$0xff]
    %v1639 = vld [vmem:[#allocation9 + $0x138] sm:$0xff]
    %v1640 = vld [vmem:[#allocation9 + $0x140] sm:$0xff]
    %v1641 = vld [vmem:[#allocation9 + $0x148] sm:$0xff]
    %v1642 = vld [vmem:[#allocation9 + $0x150] sm:$0xff]
    %v1643 = vld [vmem:[#allocation9 + $0x158] sm:$0xff]
    %v1644 = vld [vmem:[#allocation9 + $0x160] sm:$0xff]
    %v1645 = vld [vmem:[#allocation9 + $0x168] sm:$0xff]
    %v1646 = vld [vmem:[#allocation9 + $0x170] sm:$0xff]
    %v1647 = vld [vmem:[#allocation9 + $0x178] sm:$0xff]
    %v1648 = vld [vmem:[#allocation9 + $0x180] sm:$0xff]
    %v1649 = vld [vmem:[#allocation9 + $0x188] sm:$0xff]
    %v1650 = vld [vmem:[#allocation9 + $0x190] sm:$0xff]
    %v1651 = vld [vmem:[#allocation9 + $0x198] sm:$0xff]
    %v1652 = vld [vmem:[#allocation9 + $0x1a0] sm:$0xff]
    %v1653 = vld [vmem:[#allocation9 + $0x1a8] sm:$0xff]
    %v1654 = vld [vmem:[#allocation9 + $0x1b0] sm:$0xff]
    %v1655 = vld [vmem:[#allocation9 + $0x1b8] sm:$0xff]
    %v1656 = vld [vmem:[#allocation9 + $0x1c0] sm:$0xff]
    %v1657 = vld [vmem:[#allocation9 + $0x1c8] sm:$0xff]
    %v1658 = vld [vmem:[#allocation9 + $0x1d0] sm:$0xff]
    %v1659 = vld [vmem:[#allocation9 + $0x1d8] sm:$0xff]
    %v1660 = vld [vmem:[#allocation9 + $0x1e0] sm:$0xff]
    %v1661 = vld [vmem:[#allocation9 + $0x1e8] sm:$0xff]
    %v1662 = vld [vmem:[#allocation9 + $0x1f0] sm:$0xff]
    %v1663 = vld [vmem:[#allocation9 + $0x1f8] sm:$0xff]
    %v1664 = vld [vmem:[#allocation9 + $0x200] sm:$0xff]
    %v1665 = vld [vmem:[#allocation9 + $0x208] sm:$0xff]
    %v1666 = vld [vmem:[#allocation9 + $0x210] sm:$0xff]
    %v1667 = vld [vmem:[#allocation9 + $0x218] sm:$0xff]
    %v1668 = vld [vmem:[#allocation9 + $0x220] sm:$0xff]
    %v1669 = vld [vmem:[#allocation9 + $0x228] sm:$0xff]
    %v1670 = vld [vmem:[#allocation9 + $0x230] sm:$0xff]
    %v1671 = vld [vmem:[#allocation9 + $0x238] sm:$0xff]
    %v1672 = vld [vmem:[#allocation9 + $0x240] sm:$0xff]
    %v1673 = vld [vmem:[#allocation9 + $0x248] sm:$0xff]
    %v1674 = vld [vmem:[#allocation9 + $0x250] sm:$0xff]
    %v1675 = vld [vmem:[#allocation9 + $0x258] sm:$0xff]
    %v1676 = vld [vmem:[#allocation9 + $0x260] sm:$0xff]
    %v1677 = vld [vmem:[#allocation9 + $0x268] sm:$0xff]
    %v1678 = vld [vmem:[#allocation9 + $0x270] sm:$0xff]
    %v1679 = vld [vmem:[#allocation9 + $0x278] sm:$0xff]
    %v1680 = vld [vmem:[#allocation9 + $0x280] sm:$0xff]
    %v1681 = vld [vmem:[#allocation9 + $0x288] sm:$0xff]
    %v1682 = vld [vmem:[#allocation9 + $0x290] sm:$0xff]
    %v1683 = vld [vmem:[#allocation9 + $0x298] sm:$0xff]
    %v1684 = vld [vmem:[#allocation9 + $0x2a0] sm:$0xff]
    %v1685 = vld [vmem:[#allocation9 + $0x2a8] sm:$0xff]
    %v1686 = vld [vmem:[#allocation9 + $0x2b0] sm:$0xff]
    %v1687 = vld [vmem:[#allocation9 + $0x2b8] sm:$0xff]
    %v1688 = vld [vmem:[#allocation9 + $0x2c0] sm:$0xff]
    %v1689 = vld [vmem:[#allocation9 + $0x2c8] sm:$0xff]
    %v1690 = vld [vmem:[#allocation9 + $0x2d0] sm:$0xff]
    %v1691 = vld [vmem:[#allocation9 + $0x2d8] sm:$0xff]
    %v1692 = vld [vmem:[#allocation9 + $0x2e0] sm:$0xff]
    %v1693 = vld [vmem:[#allocation9 + $0x2e8] sm:$0xff]
    %v1694 = vld [vmem:[#allocation9 + $0x2f0] sm:$0xff]
    %v1695 = vld [vmem:[#allocation9 + $0x2f8] sm:$0xff]
    %v1696 = vld [vmem:[#allocation9 + $0x300] sm:$0xff]
    %v1697 = vld [vmem:[#allocation9 + $0x308] sm:$0xff]
    %v1698 = vld [vmem:[#allocation9 + $0x310] sm:$0xff]
    %v1699 = vld [vmem:[#allocation9 + $0x318] sm:$0xff]
    %v1700 = vld [vmem:[#allocation9 + $0x320] sm:$0xff]
    %v1701 = vld [vmem:[#allocation9 + $0x328] sm:$0xff]
    %v1702 = vld [vmem:[#allocation9 + $0x330] sm:$0xff]
    %v1703 = vld [vmem:[#allocation9 + $0x338] sm:$0xff]
    %v1704 = vld [vmem:[#allocation9 + $0x340] sm:$0xff]
    %v1705 = vld [vmem:[#allocation9 + $0x348] sm:$0xff]
    %v1706 = vld [vmem:[#allocation9 + $0x350] sm:$0xff]
    %v1707 = vld [vmem:[#allocation9 + $0x358] sm:$0xff]
    %v1708 = vld [vmem:[#allocation9 + $0x360] sm:$0xff]
    %v1709 = vld [vmem:[#allocation9 + $0x368] sm:$0xff]
    %v1710 = vld [vmem:[#allocation9 + $0x370] sm:$0xff]
    %v1711 = vld [vmem:[#allocation9 + $0x378] sm:$0xff]
    %v1712 = vld [vmem:[#allocation9 + $0x380] sm:$0xff]
    %v1713 = vld [vmem:[#allocation9 + $0x388] sm:$0xff]
    %v1714 = vld [vmem:[#allocation9 + $0x390] sm:$0xff]
    %v1715 = vld [vmem:[#allocation9 + $0x398] sm:$0xff]
    %v1716 = vld [vmem:[#allocation9 + $0x3a0] sm:$0xff]
    %v1717 = vld [vmem:[#allocation9 + $0x3a8] sm:$0xff]
    %v1718 = vld [vmem:[#allocation9 + $0x3b0] sm:$0xff]
    %v1719 = vld [vmem:[#allocation9 + $0x3b8] sm:$0xff]
    %v1720 = vld [vmem:[#allocation9 + $0x3c0] sm:$0xff]
    %v1721 = vld [vmem:[#allocation9 + $0x3c8] sm:$0xff]
    %v1722 = vld [vmem:[#allocation9 + $0x3d0] sm:$0xff]
    %v1723 = vld [vmem:[#allocation9 + $0x3d8] sm:$0xff]
    %v1724 = vld [vmem:[#allocation9 + $0x3e0] sm:$0xff]
    %v1725 = vld [vmem:[#allocation9 + $0x3e8] sm:$0xff]
    %v1726 = vld [vmem:[#allocation9 + $0x3f0] sm:$0xff]
    %v1727 = vld [vmem:[#allocation9 + $0x3f8] sm:$0xff]
    %v1728 = vld [vmem:[#allocation9 + $0x400] sm:$0xff]
    %v1729 = vld [vmem:[#allocation9 + $0x408] sm:$0xff]
    %v1730 = vld [vmem:[#allocation9 + $0x410] sm:$0xff]
    %v1731 = vld [vmem:[#allocation9 + $0x418] sm:$0xff]
    %v1732 = vld [vmem:[#allocation9 + $0x420] sm:$0xff]
    %v1733 = vld [vmem:[#allocation9 + $0x428] sm:$0xff]
    %v1734 = vld [vmem:[#allocation9 + $0x430] sm:$0xff]
    %v1735 = vld [vmem:[#allocation9 + $0x438] sm:$0xff]
    %v1736 = vld [vmem:[#allocation9 + $0x440] sm:$0xff]
    %v1737 = vld [vmem:[#allocation9 + $0x448] sm:$0xff]
    %v1738 = vld [vmem:[#allocation9 + $0x450] sm:$0xff]
    %v1739 = vld [vmem:[#allocation9 + $0x458] sm:$0xff]
    %v1740 = vld [vmem:[#allocation9 + $0x460] sm:$0xff]
    %v1741 = vld [vmem:[#allocation9 + $0x468] sm:$0xff]
    %v1742 = vld [vmem:[#allocation9 + $0x470] sm:$0xff]
    %v1743 = vld [vmem:[#allocation9 + $0x478] sm:$0xff]
    %v1744 = vld [vmem:[#allocation9 + $0x480] sm:$0xff]
    %v1745 = vld [vmem:[#allocation9 + $0x488] sm:$0xff]
    %v1746 = vld [vmem:[#allocation9 + $0x490] sm:$0xff]
    %v1747 = vld [vmem:[#allocation9 + $0x498] sm:$0xff]
    %v1748 = vld [vmem:[#allocation9 + $0x4a0] sm:$0xff]
    %v1749 = vld [vmem:[#allocation9 + $0x4a8] sm:$0xff]
    %v1750 = vld [vmem:[#allocation9 + $0x4b0] sm:$0xff]
    %v1751 = vld [vmem:[#allocation9 + $0x4b8] sm:$0xff]
    %v1752 = vld [vmem:[#allocation9 + $0x4c0] sm:$0xff]
    %v1753 = vld [vmem:[#allocation9 + $0x4c8] sm:$0xff]
    %v1754 = vld [vmem:[#allocation9 + $0x4d0] sm:$0xff]
    %v1755 = vld [vmem:[#allocation9 + $0x4d8] sm:$0xff]
    %v1756 = vld [vmem:[#allocation9 + $0x4e0] sm:$0xff]
    %v1757 = vld [vmem:[#allocation9 + $0x4e8] sm:$0xff]
    %v1758 = vld [vmem:[#allocation9 + $0x4f0] sm:$0xff]
    %v1759 = vld [vmem:[#allocation9 + $0x4f8] sm:$0xff]
    %v1760 = vld [vmem:[#allocation9 + $0x500] sm:$0xff]
    %v1761 = vld [vmem:[#allocation9 + $0x508] sm:$0xff]
    %v1762 = vld [vmem:[#allocation9 + $0x510] sm:$0xff]
    %v1763 = vld [vmem:[#allocation9 + $0x518] sm:$0xff]
    %v1764 = vld [vmem:[#allocation9 + $0x520] sm:$0xff]
    %v1765 = vld [vmem:[#allocation9 + $0x528] sm:$0xff]
    %v1766 = vld [vmem:[#allocation9 + $0x530] sm:$0xff]
    %v1767 = vld [vmem:[#allocation9 + $0x538] sm:$0xff]
    %v1768 = vld [vmem:[#allocation9 + $0x540] sm:$0xff]
    %v1769 = vld [vmem:[#allocation9 + $0x548] sm:$0xff]
    %v1770 = vld [vmem:[#allocation9 + $0x550] sm:$0xff]
    %v1771 = vld [vmem:[#allocation9 + $0x558] sm:$0xff]
    %v1772 = vld [vmem:[#allocation9 + $0x560] sm:$0xff]
    %v1773 = vld [vmem:[#allocation9 + $0x568] sm:$0xff]
    %v1774 = vld [vmem:[#allocation9 + $0x570] sm:$0xff]
    %v1775 = vld [vmem:[#allocation9 + $0x578] sm:$0xff]
    %v1776 = vld [vmem:[#allocation9 + $0x580] sm:$0xff]
    %v1777 = vld [vmem:[#allocation9 + $0x588] sm:$0xff]
    %v1778 = vld [vmem:[#allocation9 + $0x590] sm:$0xff]
    %v1779 = vld [vmem:[#allocation9 + $0x598] sm:$0xff]
    %v1780 = vld [vmem:[#allocation9 + $0x5a0] sm:$0xff]
    %v1781 = vld [vmem:[#allocation9 + $0x5a8] sm:$0xff]
    %v1782 = vld [vmem:[#allocation9 + $0x5b0] sm:$0xff]
    %v1783 = vld [vmem:[#allocation9 + $0x5b8] sm:$0xff]
    %v1784 = vld [vmem:[#allocation9 + $0x5c0] sm:$0xff]
    %v1785 = vld [vmem:[#allocation9 + $0x5c8] sm:$0xff]
    %v1786 = vld [vmem:[#allocation9 + $0x5d0] sm:$0xff]
    %v1787 = vld [vmem:[#allocation9 + $0x5d8] sm:$0xff]
    %v1788 = vld [vmem:[#allocation9 + $0x5e0] sm:$0xff]
    %v1789 = vld [vmem:[#allocation9 + $0x5e8] sm:$0xff]
    %v1790 = vld [vmem:[#allocation9 + $0x5f0] sm:$0xff]
    %v1791 = vld [vmem:[#allocation9 + $0x5f8] sm:$0xff]
    %v1792 = vld [vmem:[#allocation9 + $0x600] sm:$0xff]
    %v1793 = vld [vmem:[#allocation9 + $0x608] sm:$0xff]
    %v1794 = vld [vmem:[#allocation9 + $0x610] sm:$0xff]
    %v1795 = vld [vmem:[#allocation9 + $0x618] sm:$0xff]
    %v1796 = vld [vmem:[#allocation9 + $0x620] sm:$0xff]
    %v1797 = vld [vmem:[#allocation9 + $0x628] sm:$0xff]
    %v1798 = vld [vmem:[#allocation9 + $0x630] sm:$0xff]
    %v1799 = vld [vmem:[#allocation9 + $0x638] sm:$0xff]
    %v1800 = vld [vmem:[#allocation9 + $0x640] sm:$0xff]
    %v1801 = vld [vmem:[#allocation9 + $0x648] sm:$0xff]
    %v1802 = vld [vmem:[#allocation9 + $0x650] sm:$0xff]
    %v1803 = vld [vmem:[#allocation9 + $0x658] sm:$0xff]
    %v1804 = vld [vmem:[#allocation9 + $0x660] sm:$0xff]
    %v1805 = vld [vmem:[#allocation9 + $0x668] sm:$0xff]
    %v1806 = vld [vmem:[#allocation9 + $0x670] sm:$0xff]
    %v1807 = vld [vmem:[#allocation9 + $0x678] sm:$0xff]
    %v1808 = vld [vmem:[#allocation9 + $0x680] sm:$0xff]
    %v1809 = vld [vmem:[#allocation9 + $0x688] sm:$0xff]
    %v1810 = vld [vmem:[#allocation9 + $0x690] sm:$0xff]
    %v1811 = vld [vmem:[#allocation9 + $0x698] sm:$0xff]
    %v1812 = vld [vmem:[#allocation9 + $0x6a0] sm:$0xff]
    %v1813 = vld [vmem:[#allocation9 + $0x6a8] sm:$0xff]
    %v1814 = vld [vmem:[#allocation9 + $0x6b0] sm:$0xff]
    %v1815 = vld [vmem:[#allocation9 + $0x6b8] sm:$0xff]
    %v1816 = vld [vmem:[#allocation9 + $0x6c0] sm:$0xff]
    %v1817 = vld [vmem:[#allocation9 + $0x6c8] sm:$0xff]
    %v1818 = vld [vmem:[#allocation9 + $0x6d0] sm:$0xff]
    %v1819 = vld [vmem:[#allocation9 + $0x6d8] sm:$0xff]
    %v1820 = vld [vmem:[#allocation9 + $0x6e0] sm:$0xff]
    %v1821 = vld [vmem:[#allocation9 + $0x6e8] sm:$0xff]
    %v1822 = vld [vmem:[#allocation9 + $0x6f0] sm:$0xff]
    %v1823 = vld [vmem:[#allocation9 + $0x6f8] sm:$0xff]
    %v1824 = vld [vmem:[#allocation9 + $0x700] sm:$0xff]
    %v1825 = vld [vmem:[#allocation9 + $0x708] sm:$0xff]
    %v1826 = vld [vmem:[#allocation9 + $0x710] sm:$0xff]
    %v1827 = vld [vmem:[#allocation9 + $0x718] sm:$0xff]
    %v1828 = vld [vmem:[#allocation9 + $0x720] sm:$0xff]
    %v1829 = vld [vmem:[#allocation9 + $0x728] sm:$0xff]
    %v1830 = vld [vmem:[#allocation9 + $0x730] sm:$0xff]
    %v1831 = vld [vmem:[#allocation9 + $0x738] sm:$0xff]
    %v1832 = vld [vmem:[#allocation9 + $0x740] sm:$0xff]
    %v1833 = vld [vmem:[#allocation9 + $0x748] sm:$0xff]
    %v1834 = vld [vmem:[#allocation9 + $0x750] sm:$0xff]
    %v1835 = vld [vmem:[#allocation9 + $0x758] sm:$0xff]
    %v1836 = vld [vmem:[#allocation9 + $0x760] sm:$0xff]
    %v1837 = vld [vmem:[#allocation9 + $0x768] sm:$0xff]
    %v1838 = vld [vmem:[#allocation9 + $0x770] sm:$0xff]
    %v1839 = vld [vmem:[#allocation9 + $0x778] sm:$0xff]
    %v1840 = vld [vmem:[#allocation9 + $0x780] sm:$0xff]
    %v1841 = vld [vmem:[#allocation9 + $0x788] sm:$0xff]
    %v1842 = vld [vmem:[#allocation9 + $0x790] sm:$0xff]
    %v1843 = vld [vmem:[#allocation9 + $0x798] sm:$0xff]
    %v1844 = vld [vmem:[#allocation9 + $0x7a0] sm:$0xff]
    %v1845 = vld [vmem:[#allocation9 + $0x7a8] sm:$0xff]
    %v1846 = vld [vmem:[#allocation9 + $0x7b0] sm:$0xff]
    %v1847 = vld [vmem:[#allocation9 + $0x7b8] sm:$0xff]
    %v1848 = vld [vmem:[#allocation9 + $0x7c0] sm:$0xff]
    %v1849 = vld [vmem:[#allocation9 + $0x7c8] sm:$0xff]
    %v1850 = vld [vmem:[#allocation9 + $0x7d0] sm:$0xff]
    %v1851 = vld [vmem:[#allocation9 + $0x7d8] sm:$0xff]
    %v1852 = vld [vmem:[#allocation9 + $0x7e0] sm:$0xff]
    %v1853 = vld [vmem:[#allocation9 + $0x7e8] sm:$0xff]
    %v1854 = vld [vmem:[#allocation9 + $0x7f0] sm:$0xff]
    %v1855 = vld [vmem:[#allocation9 + $0x7f8] sm:$0xff]
    %v1856 = vld [vmem:[#allocation9 + $0x800] sm:$0xff]
    %v1857 = vld [vmem:[#allocation9 + $0x808] sm:$0xff]
    %v1858 = vld [vmem:[#allocation9 + $0x810] sm:$0xff]
    %v1859 = vld [vmem:[#allocation9 + $0x818] sm:$0xff]
    %v1860 = vld [vmem:[#allocation9 + $0x820] sm:$0xff]
    %v1861 = vld [vmem:[#allocation9 + $0x828] sm:$0xff]
    %v1862 = vld [vmem:[#allocation9 + $0x830] sm:$0xff]
    %v1863 = vld [vmem:[#allocation9 + $0x838] sm:$0xff]
    %v1864 = vld [vmem:[#allocation9 + $0x840] sm:$0xff]
    %v1865 = vld [vmem:[#allocation9 + $0x848] sm:$0xff]
    %v1866 = vld [vmem:[#allocation9 + $0x850] sm:$0xff]
    %v1867 = vld [vmem:[#allocation9 + $0x858] sm:$0xff]
    %v1868 = vld [vmem:[#allocation9 + $0x860] sm:$0xff]
    %v1869 = vld [vmem:[#allocation9 + $0x868] sm:$0xff]
    %v1870 = vld [vmem:[#allocation9 + $0x870] sm:$0xff]
    %v1871 = vld [vmem:[#allocation9 + $0x878] sm:$0xff]
    %v1872 = vld [vmem:[#allocation9 + $0x880] sm:$0xff]
    %v1873 = vld [vmem:[#allocation9 + $0x888] sm:$0xff]
    %v1874 = vld [vmem:[#allocation9 + $0x890] sm:$0xff]
    %v1875 = vld [vmem:[#allocation9 + $0x898] sm:$0xff]
    %v1876 = vld [vmem:[#allocation9 + $0x8a0] sm:$0xff]
    %v1877 = vld [vmem:[#allocation9 + $0x8a8] sm:$0xff]
    %v1878 = vld [vmem:[#allocation9 + $0x8b0] sm:$0xff]
    %v1879 = vld [vmem:[#allocation9 + $0x8b8] sm:$0xff]
    %v1880 = vld [vmem:[#allocation9 + $0x8c0] sm:$0xff]
    %v1881 = vld [vmem:[#allocation9 + $0x8c8] sm:$0xff]
    %v1882 = vld [vmem:[#allocation9 + $0x8d0] sm:$0xff]
    %v1883 = vld [vmem:[#allocation9 + $0x8d8] sm:$0xff]
    %v1884 = vld [vmem:[#allocation9 + $0x8e0] sm:$0xff]
    %v1885 = vld [vmem:[#allocation9 + $0x8e8] sm:$0xff]
    %v1886 = vld [vmem:[#allocation9 + $0x8f0] sm:$0xff]
    %v1887 = vld [vmem:[#allocation9 + $0x8f8] sm:$0xff]
    %v1888 = vld [vmem:[#allocation9 + $0x900] sm:$0xff]
    %v1889 = vld [vmem:[#allocation9 + $0x908] sm:$0xff]
    %v1890 = vld [vmem:[#allocation9 + $0x910] sm:$0xff]
    %v1891 = vld [vmem:[#allocation9 + $0x918] sm:$0xff]
    %v1892 = vld [vmem:[#allocation9 + $0x920] sm:$0xff]
    %v1893 = vld [vmem:[#allocation9 + $0x928] sm:$0xff]
    %v1894 = vld [vmem:[#allocation9 + $0x930] sm:$0xff]
    %v1895 = vld [vmem:[#allocation9 + $0x938] sm:$0xff]
    %v1896 = vld [vmem:[#allocation9 + $0x940] sm:$0xff]
    %v1897 = vld [vmem:[#allocation9 + $0x948] sm:$0xff]
    %v1898 = vld [vmem:[#allocation9 + $0x950] sm:$0xff]
    %v1899 = vld [vmem:[#allocation9 + $0x958] sm:$0xff]
    %v1900 = vld [vmem:[#allocation9 + $0x960] sm:$0xff]
    %v1901 = vld [vmem:[#allocation9 + $0x968] sm:$0xff]
    %v1902 = vld [vmem:[#allocation9 + $0x970] sm:$0xff]
    %v1903 = vld [vmem:[#allocation9 + $0x978] sm:$0xff]
    %v1904 = vld [vmem:[#allocation9 + $0x980] sm:$0xff]
    %v1905 = vld [vmem:[#allocation9 + $0x988] sm:$0xff]
    %v1906 = vld [vmem:[#allocation9 + $0x990] sm:$0xff]
    %v1907 = vld [vmem:[#allocation9 + $0x998] sm:$0xff]
    %v1908 = vld [vmem:[#allocation9 + $0x9a0] sm:$0xff]
    %v1909 = vld [vmem:[#allocation9 + $0x9a8] sm:$0xff]
    %v1910 = vld [vmem:[#allocation9 + $0x9b0] sm:$0xff]
    %v1911 = vld [vmem:[#allocation9 + $0x9b8] sm:$0xff]
    %v1912 = vld [vmem:[#allocation9 + $0x9c0] sm:$0xff]
    %v1913 = vld [vmem:[#allocation9 + $0x9c8] sm:$0xff]
    %v1914 = vld [vmem:[#allocation9 + $0x9d0] sm:$0xff]
    %v1915 = vld [vmem:[#allocation9 + $0x9d8] sm:$0xff]
    %v1916 = vld [vmem:[#allocation9 + $0x9e0] sm:$0xff]
    %v1917 = vld [vmem:[#allocation9 + $0x9e8] sm:$0xff]
    %v1918 = vld [vmem:[#allocation9 + $0x9f0] sm:$0xff]
    %v1919 = vld [vmem:[#allocation9 + $0x9f8] sm:$0xff]
    %v1920 = vld [vmem:[#allocation9 + $0xa00] sm:$0xff]
    %v1921 = vld [vmem:[#allocation9 + $0xa08] sm:$0xff]
    %v1922 = vld [vmem:[#allocation9 + $0xa10] sm:$0xff]
    %v1923 = vld [vmem:[#allocation9 + $0xa18] sm:$0xff]
    %v1924 = vld [vmem:[#allocation9 + $0xa20] sm:$0xff]
    %v1925 = vld [vmem:[#allocation9 + $0xa28] sm:$0xff]
    %v1926 = vld [vmem:[#allocation9 + $0xa30] sm:$0xff]
    %v1927 = vld [vmem:[#allocation9 + $0xa38] sm:$0xff]
    %v1928 = vld [vmem:[#allocation9 + $0xa40] sm:$0xff]
    %v1929 = vld [vmem:[#allocation9 + $0xa48] sm:$0xff]
    %v1930 = vld [vmem:[#allocation9 + $0xa50] sm:$0xff]
    %v1931 = vld [vmem:[#allocation9 + $0xa58] sm:$0xff]
    %v1932 = vld [vmem:[#allocation9 + $0xa60] sm:$0xff]
    %v1933 = vld [vmem:[#allocation9 + $0xa68] sm:$0xff]
    %v1934 = vld [vmem:[#allocation9 + $0xa70] sm:$0xff]
    %v1935 = vld [vmem:[#allocation9 + $0xa78] sm:$0xff]
    %v1936 = vld [vmem:[#allocation9 + $0xa80] sm:$0xff]
    %v1937 = vld [vmem:[#allocation9 + $0xa88] sm:$0xff]
    %v1938 = vld [vmem:[#allocation9 + $0xa90] sm:$0xff]
    %v1939 = vld [vmem:[#allocation9 + $0xa98] sm:$0xff]
    %v1940 = vld [vmem:[#allocation9 + $0xaa0] sm:$0xff]
    %v1941 = vld [vmem:[#allocation9 + $0xaa8] sm:$0xff]
    %v1942 = vld [vmem:[#allocation9 + $0xab0] sm:$0xff]
    %v1943 = vld [vmem:[#allocation9 + $0xab8] sm:$0xff]
    %v1944 = vld [vmem:[#allocation9 + $0xac0] sm:$0xff]
    %v1945 = vld [vmem:[#allocation9 + $0xac8] sm:$0xff]
    %v1946 = vld [vmem:[#allocation9 + $0xad0] sm:$0xff]
    %v1947 = vld [vmem:[#allocation9 + $0xad8] sm:$0xff]
    %v1948 = vld [vmem:[#allocation9 + $0xae0] sm:$0xff]
    %v1949 = vld [vmem:[#allocation9 + $0xae8] sm:$0xff]
    %v1950 = vld [vmem:[#allocation9 + $0xaf0] sm:$0xff]
    %v1951 = vld [vmem:[#allocation9 + $0xaf8] sm:$0xff]
    %v1952 = vld [vmem:[#allocation9 + $0xb00] sm:$0xff]
    %v1953 = vld [vmem:[#allocation9 + $0xb08] sm:$0xff]
    %v1954 = vld [vmem:[#allocation9 + $0xb10] sm:$0xff]
    %v1955 = vld [vmem:[#allocation9 + $0xb18] sm:$0xff]
    %v1956 = vld [vmem:[#allocation9 + $0xb20] sm:$0xff]
    %v1957 = vld [vmem:[#allocation9 + $0xb28] sm:$0xff]
    %v1958 = vld [vmem:[#allocation9 + $0xb30] sm:$0xff]
    %v1959 = vld [vmem:[#allocation9 + $0xb38] sm:$0xff]
    %v1960 = vld [vmem:[#allocation9 + $0xb40] sm:$0xff]
    %v1961 = vld [vmem:[#allocation9 + $0xb48] sm:$0xff]
    %v1962 = vld [vmem:[#allocation9 + $0xb50] sm:$0xff]
    %v1963 = vld [vmem:[#allocation9 + $0xb58] sm:$0xff]
    %v1964 = vld [vmem:[#allocation9 + $0xb60] sm:$0xff]
    %v1965 = vld [vmem:[#allocation9 + $0xb68] sm:$0xff]
    %v1966 = vld [vmem:[#allocation9 + $0xb70] sm:$0xff]
    %v1967 = vld [vmem:[#allocation9 + $0xb78] sm:$0xff]
    %v1968 = vld [vmem:[#allocation9 + $0xb80] sm:$0xff]
    %v1969 = vld [vmem:[#allocation9 + $0xb88] sm:$0xff]
    %v1970 = vld [vmem:[#allocation9 + $0xb90] sm:$0xff]
    %v1971 = vld [vmem:[#allocation9 + $0xb98] sm:$0xff]
    %v1972 = vld [vmem:[#allocation9 + $0xba0] sm:$0xff]
    %v1973 = vld [vmem:[#allocation9 + $0xba8] sm:$0xff]
    %v1974 = vld [vmem:[#allocation9 + $0xbb0] sm:$0xff]
    %v1975 = vld [vmem:[#allocation9 + $0xbb8] sm:$0xff]
    %v1976 = vld [vmem:[#allocation9 + $0xbc0] sm:$0xff]
    %v1977 = vld [vmem:[#allocation9 + $0xbc8] sm:$0xff]
    %v1978 = vld [vmem:[#allocation9 + $0xbd0] sm:$0xff]
    %v1979 = vld [vmem:[#allocation9 + $0xbd8] sm:$0xff]
    %v1980 = vld [vmem:[#allocation9 + $0xbe0] sm:$0xff]
    %v1981 = vld [vmem:[#allocation9 + $0xbe8] sm:$0xff]
    %v1982 = vld [vmem:[#allocation9 + $0xbf0] sm:$0xff]
    %v1983 = vld [vmem:[#allocation9 + $0xbf8] sm:$0xff]
    %v1984 = vld [vmem:[#allocation9 + $0xc00] sm:$0xff]
    %v1985 = vld [vmem:[#allocation9 + $0xc08] sm:$0xff]
    %v1986 = vld [vmem:[#allocation9 + $0xc10] sm:$0xff]
    %v1987 = vld [vmem:[#allocation9 + $0xc18] sm:$0xff]
    %v1988 = vld [vmem:[#allocation9 + $0xc20] sm:$0xff]
    %v1989 = vld [vmem:[#allocation9 + $0xc28] sm:$0xff]
    %v1990 = vld [vmem:[#allocation9 + $0xc30] sm:$0xff]
    %v1991 = vld [vmem:[#allocation9 + $0xc38] sm:$0xff]
    %v1992 = vld [vmem:[#allocation9 + $0xc40] sm:$0xff]
    %v1993 = vld [vmem:[#allocation9 + $0xc48] sm:$0xff]
    %v1994 = vld [vmem:[#allocation9 + $0xc50] sm:$0xff]
    %v1995 = vld [vmem:[#allocation9 + $0xc58] sm:$0xff]
    %v1996 = vld [vmem:[#allocation9 + $0xc60] sm:$0xff]
    %v1997 = vld [vmem:[#allocation9 + $0xc68] sm:$0xff]
    %v1998 = vld [vmem:[#allocation9 + $0xc70] sm:$0xff]
    %v1999 = vld [vmem:[#allocation9 + $0xc78] sm:$0xff]
    %v2000 = vld [vmem:[#allocation9 + $0xc80] sm:$0xff]
    %v2001 = vld [vmem:[#allocation9 + $0xc88] sm:$0xff]
    %v2002 = vld [vmem:[#allocation9 + $0xc90] sm:$0xff]
    %v2003 = vld [vmem:[#allocation9 + $0xc98] sm:$0xff]
    %v2004 = vld [vmem:[#allocation9 + $0xca0] sm:$0xff]
    %v2005 = vld [vmem:[#allocation9 + $0xca8] sm:$0xff]
    %v2006 = vld [vmem:[#allocation9 + $0xcb0] sm:$0xff]
    %v2007 = vld [vmem:[#allocation9 + $0xcb8] sm:$0xff]
    %v2008 = vld [vmem:[#allocation9 + $0xcc0] sm:$0xff]
    %v2009 = vld [vmem:[#allocation9 + $0xcc8] sm:$0xff]
    %v2010 = vld [vmem:[#allocation9 + $0xcd0] sm:$0xff]
    %v2011 = vld [vmem:[#allocation9 + $0xcd8] sm:$0xff]
    %v2012 = vld [vmem:[#allocation9 + $0xce0] sm:$0xff]
    %v2013 = vld [vmem:[#allocation9 + $0xce8] sm:$0xff]
    %v2014 = vld [vmem:[#allocation9 + $0xcf0] sm:$0xff]
    %v2015 = vld [vmem:[#allocation9 + $0xcf8] sm:$0xff]
    %v2016 = vld [vmem:[#allocation9 + $0xd00] sm:$0xff]
    %v2017 = vld [vmem:[#allocation9 + $0xd08] sm:$0xff]
    %v2018 = vld [vmem:[#allocation9 + $0xd10] sm:$0xff]
    %v2019 = vld [vmem:[#allocation9 + $0xd18] sm:$0xff]
    %v2020 = vld [vmem:[#allocation9 + $0xd20] sm:$0xff]
    %v2021 = vld [vmem:[#allocation9 + $0xd28] sm:$0xff]
    %v2022 = vld [vmem:[#allocation9 + $0xd30] sm:$0xff]
    %v2023 = vld [vmem:[#allocation9 + $0xd38] sm:$0xff]
    %v2024 = vld [vmem:[#allocation9 + $0xd40] sm:$0xff]
    %v2025 = vld [vmem:[#allocation9 + $0xd48] sm:$0xff]
    %v2026 = vld [vmem:[#allocation9 + $0xd50] sm:$0xff]
    %v2027 = vld [vmem:[#allocation9 + $0xd58] sm:$0xff]
    %v2028 = vld [vmem:[#allocation9 + $0xd60] sm:$0xff]
    %v2029 = vld [vmem:[#allocation9 + $0xd68] sm:$0xff]
    %v2030 = vld [vmem:[#allocation9 + $0xd70] sm:$0xff]
    %v2031 = vld [vmem:[#allocation9 + $0xd78] sm:$0xff]
    %v2032 = vld [vmem:[#allocation9 + $0xd80] sm:$0xff]
    %v2033 = vld [vmem:[#allocation9 + $0xd88] sm:$0xff]
    %v2034 = vld [vmem:[#allocation9 + $0xd90] sm:$0xff]
    %v2035 = vld [vmem:[#allocation9 + $0xd98] sm:$0xff]
    %v2036 = vld [vmem:[#allocation9 + $0xda0] sm:$0xff]
    %v2037 = vld [vmem:[#allocation9 + $0xda8] sm:$0xff]
    %v2038 = vld [vmem:[#allocation9 + $0xdb0] sm:$0xff]
    %v2039 = vld [vmem:[#allocation9 + $0xdb8] sm:$0xff]
    %v2040 = vld [vmem:[#allocation9 + $0xdc0] sm:$0xff]
    %v2041 = vld [vmem:[#allocation9 + $0xdc8] sm:$0xff]
    %v2042 = vld [vmem:[#allocation9 + $0xdd0] sm:$0xff]
    %v2043 = vld [vmem:[#allocation9 + $0xdd8] sm:$0xff]
    %v2044 = vld [vmem:[#allocation9 + $0xde0] sm:$0xff]
    %v2045 = vld [vmem:[#allocation9 + $0xde8] sm:$0xff]
    %v2046 = vld [vmem:[#allocation9 + $0xdf0] sm:$0xff]
    %v2047 = vld [vmem:[#allocation9 + $0xdf8] sm:$0xff]
    %v2048 = vld [vmem:[#allocation9 + $0xe00] sm:$0xff]
    %v2049 = vld [vmem:[#allocation9 + $0xe08] sm:$0xff]
    %v2050 = vld [vmem:[#allocation9 + $0xe10] sm:$0xff]
    %v2051 = vld [vmem:[#allocation9 + $0xe18] sm:$0xff]
    %v2052 = vld [vmem:[#allocation9 + $0xe20] sm:$0xff]
    %v2053 = vld [vmem:[#allocation9 + $0xe28] sm:$0xff]
    %v2054 = vld [vmem:[#allocation9 + $0xe30] sm:$0xff]
    %v2055 = vld [vmem:[#allocation9 + $0xe38] sm:$0xff]
    %v2056 = vld [vmem:[#allocation9 + $0xe40] sm:$0xff]
    %v2057 = vld [vmem:[#allocation9 + $0xe48] sm:$0xff]
    %v2058 = vld [vmem:[#allocation9 + $0xe50] sm:$0xff]
    %v2059 = vld [vmem:[#allocation9 + $0xe58] sm:$0xff]
    %v2060 = vld [vmem:[#allocation9 + $0xe60] sm:$0xff]
    %v2061 = vld [vmem:[#allocation9 + $0xe68] sm:$0xff]
    %v2062 = vld [vmem:[#allocation9 + $0xe70] sm:$0xff]
    %v2063 = vld [vmem:[#allocation9 + $0xe78] sm:$0xff]
    %v2064 = vld [vmem:[#allocation9 + $0xe80] sm:$0xff]
    %v2065 = vld [vmem:[#allocation9 + $0xe88] sm:$0xff]
    %v2066 = vld [vmem:[#allocation9 + $0xe90] sm:$0xff]
    %v2067 = vld [vmem:[#allocation9 + $0xe98] sm:$0xff]
    %v2068 = vld [vmem:[#allocation9 + $0xea0] sm:$0xff]
    %v2069 = vld [vmem:[#allocation9 + $0xea8] sm:$0xff]
    %v2070 = vld [vmem:[#allocation9 + $0xeb0] sm:$0xff]
    %v2071 = vld [vmem:[#allocation9 + $0xeb8] sm:$0xff]
    %v2072 = vld [vmem:[#allocation9 + $0xec0] sm:$0xff]
    %v2073 = vld [vmem:[#allocation9 + $0xec8] sm:$0xff]
    %v2074 = vld [vmem:[#allocation9 + $0xed0] sm:$0xff]
    %v2075 = vld [vmem:[#allocation9 + $0xed8] sm:$0xff]
    %v2076 = vld [vmem:[#allocation9 + $0xee0] sm:$0xff]
    %v2077 = vld [vmem:[#allocation9 + $0xee8] sm:$0xff]
    %v2078 = vld [vmem:[#allocation9 + $0xef0] sm:$0xff]
    %v2079 = vld [vmem:[#allocation9 + $0xef8] sm:$0xff]
    %v2080 = vld [vmem:[#allocation9 + $0xf00] sm:$0xff]
    %v2081 = vld [vmem:[#allocation9 + $0xf08] sm:$0xff]
    %v2082 = vld [vmem:[#allocation9 + $0xf10] sm:$0xff]
    %v2083 = vld [vmem:[#allocation9 + $0xf18] sm:$0xff]
    %v2084 = vld [vmem:[#allocation9 + $0xf20] sm:$0xff]
    %v2085 = vld [vmem:[#allocation9 + $0xf28] sm:$0xff]
    %v2086 = vld [vmem:[#allocation9 + $0xf30] sm:$0xff]
    %v2087 = vld [vmem:[#allocation9 + $0xf38] sm:$0xff]
    %v2088 = vld [vmem:[#allocation9 + $0xf40] sm:$0xff]
    %v2089 = vld [vmem:[#allocation9 + $0xf48] sm:$0xff]
    %v2090 = vld [vmem:[#allocation9 + $0xf50] sm:$0xff]
    %v2091 = vld [vmem:[#allocation9 + $0xf58] sm:$0xff]
    %v2092 = vld [vmem:[#allocation9 + $0xf60] sm:$0xff]
    %v2093 = vld [vmem:[#allocation9 + $0xf68] sm:$0xff]
    %v2094 = vld [vmem:[#allocation9 + $0xf70] sm:$0xff]
    %v2095 = vld [vmem:[#allocation9 + $0xf78] sm:$0xff]
    %v2096 = vld [vmem:[#allocation9 + $0xf80] sm:$0xff]
    %v2097 = vld [vmem:[#allocation9 + $0xf88] sm:$0xff]
    %v2098 = vld [vmem:[#allocation9 + $0xf90] sm:$0xff]
    %v2099 = vld [vmem:[#allocation9 + $0xf98] sm:$0xff]
    %v2100 = vld [vmem:[#allocation9 + $0xfa0] sm:$0xff]
    %v2101 = vld [vmem:[#allocation9 + $0xfa8] sm:$0xff]
    %v2102 = vld [vmem:[#allocation9 + $0xfb0] sm:$0xff]
    %v2103 = vld [vmem:[#allocation9 + $0xfb8] sm:$0xff]
    %v2104 = vld [vmem:[#allocation9 + $0xfc0] sm:$0xff]
    %v2105 = vld [vmem:[#allocation9 + $0xfc8] sm:$0xff]
    %v2106 = vld [vmem:[#allocation9 + $0xfd0] sm:$0xff]
    %v2107 = vld [vmem:[#allocation9 + $0xfd8] sm:$0xff]
    %v2108 = vld [vmem:[#allocation9 + $0xfe0] sm:$0xff]
    %v2109 = vld [vmem:[#allocation9 + $0xfe8] sm:$0xff]
    %v2110 = vld [vmem:[#allocation9 + $0xff0] sm:$0xff]
    %v2111 = vld [vmem:[#allocation9 + $0xff8] sm:$0xff]
    %v2112 = vld [vmem:[#allocation10] sm:$0xff]
    %v2113 = vld [vmem:[#allocation10 + $0x8] sm:$0xff]
    %v2116 = vlaneseq
    %v2117 = vshrl.u32 %v2116, 7
    %v2118 = vsub.s32 0, %v2117
    %v2119 = vrot.slane %v2112, %v2118
    %v2120 = vlaneseq
    %v2121 = vshrl.u32 %v2120, 7
    %v2122 = vsub.s32 1, %v2121
    %v2123 = vrot.slane %v2112, %v2122
    %v2124 = vlaneseq
    %v2125 = vshrl.u32 %v2124, 7
    %v2126 = vsub.s32 2, %v2125
    %v2127 = vrot.slane %v2112, %v2126
    %v2128 = vlaneseq
    %v2129 = vshrl.u32 %v2128, 7
    %v2130 = vsub.s32 3, %v2129
    %v2131 = vrot.slane %v2112, %v2130
    %v2132 = vlaneseq
    %v2133 = vshrl.u32 %v2132, 7
    %v2134 = vsub.s32 4, %v2133
    %v2135 = vrot.slane %v2112, %v2134
    %v2136 = vlaneseq
    %v2137 = vshrl.u32 %v2136, 7
    %v2138 = vsub.s32 5, %v2137
    %v2139 = vrot.slane %v2112, %v2138
    %v2140 = vlaneseq
    %v2141 = vshrl.u32 %v2140, 7
    %v2142 = vsub.s32 6, %v2141
    %v2143 = vrot.slane %v2112, %v2142
    %v2144 = vlaneseq
    %v2145 = vshrl.u32 %v2144, 7
    %v2146 = vsub.s32 7, %v2145
    %v2147 = vrot.slane %v2112, %v2146
    %v2148 = vlaneseq
    %v2149 = vshrl.u32 %v2148, 7
    %v2150 = vsub.s32 0, %v2149
    %v2151 = vrot.slane %v2113, %v2150
    %v2152 = vlaneseq
    %v2153 = vshrl.u32 %v2152, 7
    %v2154 = vsub.s32 1, %v2153
    %v2155 = vrot.slane %v2113, %v2154
    %v2156 = vlaneseq
    %v2157 = vshrl.u32 %v2156, 7
    %v2158 = vsub.s32 2, %v2157
    %v2159 = vrot.slane %v2113, %v2158
    %v2160 = vlaneseq
    %v2161 = vshrl.u32 %v2160, 7
    %v2162 = vsub.s32 3, %v2161
    %v2163 = vrot.slane %v2113, %v2162
    %v2164 = vlaneseq
    %v2165 = vshrl.u32 %v2164, 7
    %v2166 = vsub.s32 4, %v2165
    %v2167 = vrot.slane %v2113, %v2166
    %v2168 = vlaneseq
    %v2169 = vshrl.u32 %v2168, 7
    %v2170 = vsub.s32 5, %v2169
    %v2171 = vrot.slane %v2113, %v2170
    %v2172 = vlaneseq
    %v2173 = vshrl.u32 %v2172, 7
    %v2174 = vsub.s32 6, %v2173
    %v2175 = vrot.slane %v2113, %v2174
    %v2176 = vlaneseq
    %v2177 = vshrl.u32 %v2176, 7
    %v2178 = vsub.s32 7, %v2177
    %v2179 = vrot.slane %v2113, %v2178
    %v2708 = vunpack.c.l.b16 %v1600
    %v2709 = vunpack.c.h.b16 %v1600
    %v2710 = vunpack.c.l.b16 %v1601
    %v2711 = vunpack.c.h.b16 %v1601
    %v2712 = vunpack.c.l.b16 %v1602
    %v2713 = vunpack.c.h.b16 %v1602
    %v2714 = vunpack.c.l.b16 %v1603
    %v2715 = vunpack.c.h.b16 %v1603
    %v2716 = vunpack.c.l.b16 %v1604
    %v2717 = vunpack.c.h.b16 %v1604
    %v2718 = vunpack.c.l.b16 %v1605
    %v2719 = vunpack.c.h.b16 %v1605
    %v2720 = vunpack.c.l.b16 %v1606
    %v2721 = vunpack.c.h.b16 %v1606
    %v2722 = vunpack.c.l.b16 %v1607
    %v2723 = vunpack.c.h.b16 %v1607
    %v2724 = vunpack.c.l.b16 %v1608
    %v2725 = vunpack.c.h.b16 %v1608
    %v2726 = vunpack.c.l.b16 %v1609
    %v2727 = vunpack.c.h.b16 %v1609
    %v2728 = vunpack.c.l.b16 %v1610
    %v2729 = vunpack.c.h.b16 %v1610
    %v2730 = vunpack.c.l.b16 %v1611
    %v2731 = vunpack.c.h.b16 %v1611
    %v2732 = vunpack.c.l.b16 %v1612
    %v2733 = vunpack.c.h.b16 %v1612
    %v2734 = vunpack.c.l.b16 %v1613
    %v2735 = vunpack.c.h.b16 %v1613
    %v2736 = vunpack.c.l.b16 %v1614
    %v2737 = vunpack.c.h.b16 %v1614
    %v2738 = vunpack.c.l.b16 %v1615
    %v2739 = vunpack.c.h.b16 %v1615
    %v2740 = vunpack.c.l.b16 %v1616
    %v2741 = vunpack.c.h.b16 %v1616
    %v2742 = vunpack.c.l.b16 %v1617
    %v2743 = vunpack.c.h.b16 %v1617
    %v2744 = vunpack.c.l.b16 %v1618
    %v2745 = vunpack.c.h.b16 %v1618
    %v2746 = vunpack.c.l.b16 %v1619
    %v2747 = vunpack.c.h.b16 %v1619
    %v2748 = vunpack.c.l.b16 %v1620
    %v2749 = vunpack.c.h.b16 %v1620
    %v2750 = vunpack.c.l.b16 %v1621
    %v2751 = vunpack.c.h.b16 %v1621
    %v2752 = vunpack.c.l.b16 %v1622
    %v2753 = vunpack.c.h.b16 %v1622
    %v2754 = vunpack.c.l.b16 %v1623
    %v2755 = vunpack.c.h.b16 %v1623
    %v2756 = vunpack.c.l.b16 %v1624
    %v2757 = vunpack.c.h.b16 %v1624
    %v2758 = vunpack.c.l.b16 %v1625
    %v2759 = vunpack.c.h.b16 %v1625
    %v2760 = vunpack.c.l.b16 %v1626
    %v2761 = vunpack.c.h.b16 %v1626
    %v2762 = vunpack.c.l.b16 %v1627
    %v2763 = vunpack.c.h.b16 %v1627
    %v2764 = vunpack.c.l.b16 %v1628
    %v2765 = vunpack.c.h.b16 %v1628
    %v2766 = vunpack.c.l.b16 %v1629
    %v2767 = vunpack.c.h.b16 %v1629
    %v2768 = vunpack.c.l.b16 %v1630
    %v2769 = vunpack.c.h.b16 %v1630
    %v2770 = vunpack.c.l.b16 %v1631
    %v2771 = vunpack.c.h.b16 %v1631
    %v2772 = vunpack.c.l.b16 %v1632
    %v2773 = vunpack.c.h.b16 %v1632
    %v2774 = vunpack.c.l.b16 %v1633
    %v2775 = vunpack.c.h.b16 %v1633
    %v2776 = vunpack.c.l.b16 %v1634
    %v2777 = vunpack.c.h.b16 %v1634
    %v2778 = vunpack.c.l.b16 %v1635
    %v2779 = vunpack.c.h.b16 %v1635
    %v2780 = vunpack.c.l.b16 %v1636
    %v2781 = vunpack.c.h.b16 %v1636
    %v2782 = vunpack.c.l.b16 %v1637
    %v2783 = vunpack.c.h.b16 %v1637
    %v2784 = vunpack.c.l.b16 %v1638
    %v2785 = vunpack.c.h.b16 %v1638
    %v2786 = vunpack.c.l.b16 %v1639
    %v2787 = vunpack.c.h.b16 %v1639
    %v2788 = vunpack.c.l.b16 %v1640
    %v2789 = vunpack.c.h.b16 %v1640
    %v2790 = vunpack.c.l.b16 %v1641
    %v2791 = vunpack.c.h.b16 %v1641
    %v2792 = vunpack.c.l.b16 %v1642
    %v2793 = vunpack.c.h.b16 %v1642
    %v2794 = vunpack.c.l.b16 %v1643
    %v2795 = vunpack.c.h.b16 %v1643
    %v2796 = vunpack.c.l.b16 %v1644
    %v2797 = vunpack.c.h.b16 %v1644
    %v2798 = vunpack.c.l.b16 %v1645
    %v2799 = vunpack.c.h.b16 %v1645
    %v2800 = vunpack.c.l.b16 %v1646
    %v2801 = vunpack.c.h.b16 %v1646
    %v2802 = vunpack.c.l.b16 %v1647
    %v2803 = vunpack.c.h.b16 %v1647
    %v2804 = vunpack.c.l.b16 %v1648
    %v2805 = vunpack.c.h.b16 %v1648
    %v2806 = vunpack.c.l.b16 %v1649
    %v2807 = vunpack.c.h.b16 %v1649
    %v2808 = vunpack.c.l.b16 %v1650
    %v2809 = vunpack.c.h.b16 %v1650
    %v2810 = vunpack.c.l.b16 %v1651
    %v2811 = vunpack.c.h.b16 %v1651
    %v2812 = vunpack.c.l.b16 %v1652
    %v2813 = vunpack.c.h.b16 %v1652
    %v2814 = vunpack.c.l.b16 %v1653
    %v2815 = vunpack.c.h.b16 %v1653
    %v2816 = vunpack.c.l.b16 %v1654
    %v2817 = vunpack.c.h.b16 %v1654
    %v2818 = vunpack.c.l.b16 %v1655
    %v2819 = vunpack.c.h.b16 %v1655
    %v2820 = vunpack.c.l.b16 %v1656
    %v2821 = vunpack.c.h.b16 %v1656
    %v2822 = vunpack.c.l.b16 %v1657
    %v2823 = vunpack.c.h.b16 %v1657
    %v2824 = vunpack.c.l.b16 %v1658
    %v2825 = vunpack.c.h.b16 %v1658
    %v2826 = vunpack.c.l.b16 %v1659
    %v2827 = vunpack.c.h.b16 %v1659
    %v2828 = vunpack.c.l.b16 %v1660
    %v2829 = vunpack.c.h.b16 %v1660
    %v2830 = vunpack.c.l.b16 %v1661
    %v2831 = vunpack.c.h.b16 %v1661
    %v2832 = vunpack.c.l.b16 %v1662
    %v2833 = vunpack.c.h.b16 %v1662
    %v2834 = vunpack.c.l.b16 %v1663
    %v2835 = vunpack.c.h.b16 %v1663
    %v2836 = vunpack.c.l.b16 %v1664
    %v2837 = vunpack.c.h.b16 %v1664
    %v2838 = vunpack.c.l.b16 %v1665
    %v2839 = vunpack.c.h.b16 %v1665
    %v2840 = vunpack.c.l.b16 %v1666
    %v2841 = vunpack.c.h.b16 %v1666
    %v2842 = vunpack.c.l.b16 %v1667
    %v2843 = vunpack.c.h.b16 %v1667
    %v2844 = vunpack.c.l.b16 %v1668
    %v2845 = vunpack.c.h.b16 %v1668
    %v2846 = vunpack.c.l.b16 %v1669
    %v2847 = vunpack.c.h.b16 %v1669
    %v2848 = vunpack.c.l.b16 %v1670
    %v2849 = vunpack.c.h.b16 %v1670
    %v2850 = vunpack.c.l.b16 %v1671
    %v2851 = vunpack.c.h.b16 %v1671
    %v2852 = vunpack.c.l.b16 %v1672
    %v2853 = vunpack.c.h.b16 %v1672
    %v2854 = vunpack.c.l.b16 %v1673
    %v2855 = vunpack.c.h.b16 %v1673
    %v2856 = vunpack.c.l.b16 %v1674
    %v2857 = vunpack.c.h.b16 %v1674
    %v2858 = vunpack.c.l.b16 %v1675
    %v2859 = vunpack.c.h.b16 %v1675
    %v2860 = vunpack.c.l.b16 %v1676
    %v2861 = vunpack.c.h.b16 %v1676
    %v2862 = vunpack.c.l.b16 %v1677
    %v2863 = vunpack.c.h.b16 %v1677
    %v2864 = vunpack.c.l.b16 %v1678
    %v2865 = vunpack.c.h.b16 %v1678
    %v2866 = vunpack.c.l.b16 %v1679
    %v2867 = vunpack.c.h.b16 %v1679
    %v2868 = vunpack.c.l.b16 %v1680
    %v2869 = vunpack.c.h.b16 %v1680
    %v2870 = vunpack.c.l.b16 %v1681
    %v2871 = vunpack.c.h.b16 %v1681
    %v2872 = vunpack.c.l.b16 %v1682
    %v2873 = vunpack.c.h.b16 %v1682
    %v2874 = vunpack.c.l.b16 %v1683
    %v2875 = vunpack.c.h.b16 %v1683
    %v2876 = vunpack.c.l.b16 %v1684
    %v2877 = vunpack.c.h.b16 %v1684
    %v2878 = vunpack.c.l.b16 %v1685
    %v2879 = vunpack.c.h.b16 %v1685
    %v2880 = vunpack.c.l.b16 %v1686
    %v2881 = vunpack.c.h.b16 %v1686
    %v2882 = vunpack.c.l.b16 %v1687
    %v2883 = vunpack.c.h.b16 %v1687
    %v2884 = vunpack.c.l.b16 %v1688
    %v2885 = vunpack.c.h.b16 %v1688
    %v2886 = vunpack.c.l.b16 %v1689
    %v2887 = vunpack.c.h.b16 %v1689
    %v2888 = vunpack.c.l.b16 %v1690
    %v2889 = vunpack.c.h.b16 %v1690
    %v2890 = vunpack.c.l.b16 %v1691
    %v2891 = vunpack.c.h.b16 %v1691
    %v2892 = vunpack.c.l.b16 %v1692
    %v2893 = vunpack.c.h.b16 %v1692
    %v2894 = vunpack.c.l.b16 %v1693
    %v2895 = vunpack.c.h.b16 %v1693
    %v2896 = vunpack.c.l.b16 %v1694
    %v2897 = vunpack.c.h.b16 %v1694
    %v2898 = vunpack.c.l.b16 %v1695
    %v2899 = vunpack.c.h.b16 %v1695
    %v2900 = vunpack.c.l.b16 %v1696
    %v2901 = vunpack.c.h.b16 %v1696
    %v2902 = vunpack.c.l.b16 %v1697
    %v2903 = vunpack.c.h.b16 %v1697
    %v2904 = vunpack.c.l.b16 %v1698
    %v2905 = vunpack.c.h.b16 %v1698
    %v2906 = vunpack.c.l.b16 %v1699
    %v2907 = vunpack.c.h.b16 %v1699
    %v2908 = vunpack.c.l.b16 %v1700
    %v2909 = vunpack.c.h.b16 %v1700
    %v2910 = vunpack.c.l.b16 %v1701
    %v2911 = vunpack.c.h.b16 %v1701
    %v2912 = vunpack.c.l.b16 %v1702
    %v2913 = vunpack.c.h.b16 %v1702
    %v2914 = vunpack.c.l.b16 %v1703
    %v2915 = vunpack.c.h.b16 %v1703
    %v2916 = vunpack.c.l.b16 %v1704
    %v2917 = vunpack.c.h.b16 %v1704
    %v2918 = vunpack.c.l.b16 %v1705
    %v2919 = vunpack.c.h.b16 %v1705
    %v2920 = vunpack.c.l.b16 %v1706
    %v2921 = vunpack.c.h.b16 %v1706
    %v2922 = vunpack.c.l.b16 %v1707
    %v2923 = vunpack.c.h.b16 %v1707
    %v2924 = vunpack.c.l.b16 %v1708
    %v2925 = vunpack.c.h.b16 %v1708
    %v2926 = vunpack.c.l.b16 %v1709
    %v2927 = vunpack.c.h.b16 %v1709
    %v2928 = vunpack.c.l.b16 %v1710
    %v2929 = vunpack.c.h.b16 %v1710
    %v2930 = vunpack.c.l.b16 %v1711
    %v2931 = vunpack.c.h.b16 %v1711
    %v2932 = vunpack.c.l.b16 %v1712
    %v2933 = vunpack.c.h.b16 %v1712
    %v2934 = vunpack.c.l.b16 %v1713
    %v2935 = vunpack.c.h.b16 %v1713
    %v2936 = vunpack.c.l.b16 %v1714
    %v2937 = vunpack.c.h.b16 %v1714
    %v2938 = vunpack.c.l.b16 %v1715
    %v2939 = vunpack.c.h.b16 %v1715
    %v2940 = vunpack.c.l.b16 %v1716
    %v2941 = vunpack.c.h.b16 %v1716
    %v2942 = vunpack.c.l.b16 %v1717
    %v2943 = vunpack.c.h.b16 %v1717
    %v2944 = vunpack.c.l.b16 %v1718
    %v2945 = vunpack.c.h.b16 %v1718
    %v2946 = vunpack.c.l.b16 %v1719
    %v2947 = vunpack.c.h.b16 %v1719
    %v2948 = vunpack.c.l.b16 %v1720
    %v2949 = vunpack.c.h.b16 %v1720
    %v2950 = vunpack.c.l.b16 %v1721
    %v2951 = vunpack.c.h.b16 %v1721
    %v2952 = vunpack.c.l.b16 %v1722
    %v2953 = vunpack.c.h.b16 %v1722
    %v2954 = vunpack.c.l.b16 %v1723
    %v2955 = vunpack.c.h.b16 %v1723
    %v2956 = vunpack.c.l.b16 %v1724
    %v2957 = vunpack.c.h.b16 %v1724
    %v2958 = vunpack.c.l.b16 %v1725
    %v2959 = vunpack.c.h.b16 %v1725
    %v2960 = vunpack.c.l.b16 %v1726
    %v2961 = vunpack.c.h.b16 %v1726
    %v2962 = vunpack.c.l.b16 %v1727
    %v2963 = vunpack.c.h.b16 %v1727
    %v2964 = vunpack.c.l.b16 %v1728
    %v2965 = vunpack.c.h.b16 %v1728
    %v2966 = vunpack.c.l.b16 %v1729
    %v2967 = vunpack.c.h.b16 %v1729
    %v2968 = vunpack.c.l.b16 %v1730
    %v2969 = vunpack.c.h.b16 %v1730
    %v2970 = vunpack.c.l.b16 %v1731
    %v2971 = vunpack.c.h.b16 %v1731
    %v2972 = vunpack.c.l.b16 %v1732
    %v2973 = vunpack.c.h.b16 %v1732
    %v2974 = vunpack.c.l.b16 %v1733
    %v2975 = vunpack.c.h.b16 %v1733
    %v2976 = vunpack.c.l.b16 %v1734
    %v2977 = vunpack.c.h.b16 %v1734
    %v2978 = vunpack.c.l.b16 %v1735
    %v2979 = vunpack.c.h.b16 %v1735
    %v2980 = vunpack.c.l.b16 %v1736
    %v2981 = vunpack.c.h.b16 %v1736
    %v2982 = vunpack.c.l.b16 %v1737
    %v2983 = vunpack.c.h.b16 %v1737
    %v2984 = vunpack.c.l.b16 %v1738
    %v2985 = vunpack.c.h.b16 %v1738
    %v2986 = vunpack.c.l.b16 %v1739
    %v2987 = vunpack.c.h.b16 %v1739
    %v2988 = vunpack.c.l.b16 %v1740
    %v2989 = vunpack.c.h.b16 %v1740
    %v2990 = vunpack.c.l.b16 %v1741
    %v2991 = vunpack.c.h.b16 %v1741
    %v2992 = vunpack.c.l.b16 %v1742
    %v2993 = vunpack.c.h.b16 %v1742
    %v2994 = vunpack.c.l.b16 %v1743
    %v2995 = vunpack.c.h.b16 %v1743
    %v2996 = vunpack.c.l.b16 %v1744
    %v2997 = vunpack.c.h.b16 %v1744
    %v2998 = vunpack.c.l.b16 %v1745
    %v2999 = vunpack.c.h.b16 %v1745
    %v3000 = vunpack.c.l.b16 %v1746
    %v3001 = vunpack.c.h.b16 %v1746
    %v3002 = vunpack.c.l.b16 %v1747
    %v3003 = vunpack.c.h.b16 %v1747
    %v3004 = vunpack.c.l.b16 %v1748
    %v3005 = vunpack.c.h.b16 %v1748
    %v3006 = vunpack.c.l.b16 %v1749
    %v3007 = vunpack.c.h.b16 %v1749
    %v3008 = vunpack.c.l.b16 %v1750
    %v3009 = vunpack.c.h.b16 %v1750
    %v3010 = vunpack.c.l.b16 %v1751
    %v3011 = vunpack.c.h.b16 %v1751
    %v3012 = vunpack.c.l.b16 %v1752
    %v3013 = vunpack.c.h.b16 %v1752
    %v3014 = vunpack.c.l.b16 %v1753
    %v3015 = vunpack.c.h.b16 %v1753
    %v3016 = vunpack.c.l.b16 %v1754
    %v3017 = vunpack.c.h.b16 %v1754
    %v3018 = vunpack.c.l.b16 %v1755
    %v3019 = vunpack.c.h.b16 %v1755
    %v3020 = vunpack.c.l.b16 %v1756
    %v3021 = vunpack.c.h.b16 %v1756
    %v3022 = vunpack.c.l.b16 %v1757
    %v3023 = vunpack.c.h.b16 %v1757
    %v3024 = vunpack.c.l.b16 %v1758
    %v3025 = vunpack.c.h.b16 %v1758
    %v3026 = vunpack.c.l.b16 %v1759
    %v3027 = vunpack.c.h.b16 %v1759
    %v3028 = vunpack.c.l.b16 %v1760
    %v3029 = vunpack.c.h.b16 %v1760
    %v3030 = vunpack.c.l.b16 %v1761
    %v3031 = vunpack.c.h.b16 %v1761
    %v3032 = vunpack.c.l.b16 %v1762
    %v3033 = vunpack.c.h.b16 %v1762
    %v3034 = vunpack.c.l.b16 %v1763
    %v3035 = vunpack.c.h.b16 %v1763
    %v3036 = vunpack.c.l.b16 %v1764
    %v3037 = vunpack.c.h.b16 %v1764
    %v3038 = vunpack.c.l.b16 %v1765
    %v3039 = vunpack.c.h.b16 %v1765
    %v3040 = vunpack.c.l.b16 %v1766
    %v3041 = vunpack.c.h.b16 %v1766
    %v3042 = vunpack.c.l.b16 %v1767
    %v3043 = vunpack.c.h.b16 %v1767
    %v3044 = vunpack.c.l.b16 %v1768
    %v3045 = vunpack.c.h.b16 %v1768
    %v3046 = vunpack.c.l.b16 %v1769
    %v3047 = vunpack.c.h.b16 %v1769
    %v3048 = vunpack.c.l.b16 %v1770
    %v3049 = vunpack.c.h.b16 %v1770
    %v3050 = vunpack.c.l.b16 %v1771
    %v3051 = vunpack.c.h.b16 %v1771
    %v3052 = vunpack.c.l.b16 %v1772
    %v3053 = vunpack.c.h.b16 %v1772
    %v3054 = vunpack.c.l.b16 %v1773
    %v3055 = vunpack.c.h.b16 %v1773
    %v3056 = vunpack.c.l.b16 %v1774
    %v3057 = vunpack.c.h.b16 %v1774
    %v3058 = vunpack.c.l.b16 %v1775
    %v3059 = vunpack.c.h.b16 %v1775
    %v3060 = vunpack.c.l.b16 %v1776
    %v3061 = vunpack.c.h.b16 %v1776
    %v3062 = vunpack.c.l.b16 %v1777
    %v3063 = vunpack.c.h.b16 %v1777
    %v3064 = vunpack.c.l.b16 %v1778
    %v3065 = vunpack.c.h.b16 %v1778
    %v3066 = vunpack.c.l.b16 %v1779
    %v3067 = vunpack.c.h.b16 %v1779
    %v3068 = vunpack.c.l.b16 %v1780
    %v3069 = vunpack.c.h.b16 %v1780
    %v3070 = vunpack.c.l.b16 %v1781
    %v3071 = vunpack.c.h.b16 %v1781
    %v3072 = vunpack.c.l.b16 %v1782
    %v3073 = vunpack.c.h.b16 %v1782
    %v3074 = vunpack.c.l.b16 %v1783
    %v3075 = vunpack.c.h.b16 %v1783
    %v3076 = vunpack.c.l.b16 %v1784
    %v3077 = vunpack.c.h.b16 %v1784
    %v3078 = vunpack.c.l.b16 %v1785
    %v3079 = vunpack.c.h.b16 %v1785
    %v3080 = vunpack.c.l.b16 %v1786
    %v3081 = vunpack.c.h.b16 %v1786
    %v3082 = vunpack.c.l.b16 %v1787
    %v3083 = vunpack.c.h.b16 %v1787
    %v3084 = vunpack.c.l.b16 %v1788
    %v3085 = vunpack.c.h.b16 %v1788
    %v3086 = vunpack.c.l.b16 %v1789
    %v3087 = vunpack.c.h.b16 %v1789
    %v3088 = vunpack.c.l.b16 %v1790
    %v3089 = vunpack.c.h.b16 %v1790
    %v3090 = vunpack.c.l.b16 %v1791
    %v3091 = vunpack.c.h.b16 %v1791
    %v3092 = vunpack.c.l.b16 %v1792
    %v3093 = vunpack.c.h.b16 %v1792
    %v3094 = vunpack.c.l.b16 %v1793
    %v3095 = vunpack.c.h.b16 %v1793
    %v3096 = vunpack.c.l.b16 %v1794
    %v3097 = vunpack.c.h.b16 %v1794
    %v3098 = vunpack.c.l.b16 %v1795
    %v3099 = vunpack.c.h.b16 %v1795
    %v3100 = vunpack.c.l.b16 %v1796
    %v3101 = vunpack.c.h.b16 %v1796
    %v3102 = vunpack.c.l.b16 %v1797
    %v3103 = vunpack.c.h.b16 %v1797
    %v3104 = vunpack.c.l.b16 %v1798
    %v3105 = vunpack.c.h.b16 %v1798
    %v3106 = vunpack.c.l.b16 %v1799
    %v3107 = vunpack.c.h.b16 %v1799
    %v3108 = vunpack.c.l.b16 %v1800
    %v3109 = vunpack.c.h.b16 %v1800
    %v3110 = vunpack.c.l.b16 %v1801
    %v3111 = vunpack.c.h.b16 %v1801
    %v3112 = vunpack.c.l.b16 %v1802
    %v3113 = vunpack.c.h.b16 %v1802
    %v3114 = vunpack.c.l.b16 %v1803
    %v3115 = vunpack.c.h.b16 %v1803
    %v3116 = vunpack.c.l.b16 %v1804
    %v3117 = vunpack.c.h.b16 %v1804
    %v3118 = vunpack.c.l.b16 %v1805
    %v3119 = vunpack.c.h.b16 %v1805
    %v3120 = vunpack.c.l.b16 %v1806
    %v3121 = vunpack.c.h.b16 %v1806
    %v3122 = vunpack.c.l.b16 %v1807
    %v3123 = vunpack.c.h.b16 %v1807
    %v3124 = vunpack.c.l.b16 %v1808
    %v3125 = vunpack.c.h.b16 %v1808
    %v3126 = vunpack.c.l.b16 %v1809
    %v3127 = vunpack.c.h.b16 %v1809
    %v3128 = vunpack.c.l.b16 %v1810
    %v3129 = vunpack.c.h.b16 %v1810
    %v3130 = vunpack.c.l.b16 %v1811
    %v3131 = vunpack.c.h.b16 %v1811
    %v3132 = vunpack.c.l.b16 %v1812
    %v3133 = vunpack.c.h.b16 %v1812
    %v3134 = vunpack.c.l.b16 %v1813
    %v3135 = vunpack.c.h.b16 %v1813
    %v3136 = vunpack.c.l.b16 %v1814
    %v3137 = vunpack.c.h.b16 %v1814
    %v3138 = vunpack.c.l.b16 %v1815
    %v3139 = vunpack.c.h.b16 %v1815
    %v3140 = vunpack.c.l.b16 %v1816
    %v3141 = vunpack.c.h.b16 %v1816
    %v3142 = vunpack.c.l.b16 %v1817
    %v3143 = vunpack.c.h.b16 %v1817
    %v3144 = vunpack.c.l.b16 %v1818
    %v3145 = vunpack.c.h.b16 %v1818
    %v3146 = vunpack.c.l.b16 %v1819
    %v3147 = vunpack.c.h.b16 %v1819
    %v3148 = vunpack.c.l.b16 %v1820
    %v3149 = vunpack.c.h.b16 %v1820
    %v3150 = vunpack.c.l.b16 %v1821
    %v3151 = vunpack.c.h.b16 %v1821
    %v3152 = vunpack.c.l.b16 %v1822
    %v3153 = vunpack.c.h.b16 %v1822
    %v3154 = vunpack.c.l.b16 %v1823
    %v3155 = vunpack.c.h.b16 %v1823
    %v3156 = vunpack.c.l.b16 %v1824
    %v3157 = vunpack.c.h.b16 %v1824
    %v3158 = vunpack.c.l.b16 %v1825
    %v3159 = vunpack.c.h.b16 %v1825
    %v3160 = vunpack.c.l.b16 %v1826
    %v3161 = vunpack.c.h.b16 %v1826
    %v3162 = vunpack.c.l.b16 %v1827
    %v3163 = vunpack.c.h.b16 %v1827
    %v3164 = vunpack.c.l.b16 %v1828
    %v3165 = vunpack.c.h.b16 %v1828
    %v3166 = vunpack.c.l.b16 %v1829
    %v3167 = vunpack.c.h.b16 %v1829
    %v3168 = vunpack.c.l.b16 %v1830
    %v3169 = vunpack.c.h.b16 %v1830
    %v3170 = vunpack.c.l.b16 %v1831
    %v3171 = vunpack.c.h.b16 %v1831
    %v3172 = vunpack.c.l.b16 %v1832
    %v3173 = vunpack.c.h.b16 %v1832
    %v3174 = vunpack.c.l.b16 %v1833
    %v3175 = vunpack.c.h.b16 %v1833
    %v3176 = vunpack.c.l.b16 %v1834
    %v3177 = vunpack.c.h.b16 %v1834
    %v3178 = vunpack.c.l.b16 %v1835
    %v3179 = vunpack.c.h.b16 %v1835
    %v3180 = vunpack.c.l.b16 %v1836
    %v3181 = vunpack.c.h.b16 %v1836
    %v3182 = vunpack.c.l.b16 %v1837
    %v3183 = vunpack.c.h.b16 %v1837
    %v3184 = vunpack.c.l.b16 %v1838
    %v3185 = vunpack.c.h.b16 %v1838
    %v3186 = vunpack.c.l.b16 %v1839
    %v3187 = vunpack.c.h.b16 %v1839
    %v3188 = vunpack.c.l.b16 %v1840
    %v3189 = vunpack.c.h.b16 %v1840
    %v3190 = vunpack.c.l.b16 %v1841
    %v3191 = vunpack.c.h.b16 %v1841
    %v3192 = vunpack.c.l.b16 %v1842
    %v3193 = vunpack.c.h.b16 %v1842
    %v3194 = vunpack.c.l.b16 %v1843
    %v3195 = vunpack.c.h.b16 %v1843
    %v3196 = vunpack.c.l.b16 %v1844
    %v3197 = vunpack.c.h.b16 %v1844
    %v3198 = vunpack.c.l.b16 %v1845
    %v3199 = vunpack.c.h.b16 %v1845
    %v3200 = vunpack.c.l.b16 %v1846
    %v3201 = vunpack.c.h.b16 %v1846
    %v3202 = vunpack.c.l.b16 %v1847
    %v3203 = vunpack.c.h.b16 %v1847
    %v3204 = vunpack.c.l.b16 %v1848
    %v3205 = vunpack.c.h.b16 %v1848
    %v3206 = vunpack.c.l.b16 %v1849
    %v3207 = vunpack.c.h.b16 %v1849
    %v3208 = vunpack.c.l.b16 %v1850
    %v3209 = vunpack.c.h.b16 %v1850
    %v3210 = vunpack.c.l.b16 %v1851
    %v3211 = vunpack.c.h.b16 %v1851
    %v3212 = vunpack.c.l.b16 %v1852
    %v3213 = vunpack.c.h.b16 %v1852
    %v3214 = vunpack.c.l.b16 %v1853
    %v3215 = vunpack.c.h.b16 %v1853
    %v3216 = vunpack.c.l.b16 %v1854
    %v3217 = vunpack.c.h.b16 %v1854
    %v3218 = vunpack.c.l.b16 %v1855
    %v3219 = vunpack.c.h.b16 %v1855
    %v3220 = vunpack.c.l.b16 %v1856
    %v3221 = vunpack.c.h.b16 %v1856
    %v3222 = vunpack.c.l.b16 %v1857
    %v3223 = vunpack.c.h.b16 %v1857
    %v3224 = vunpack.c.l.b16 %v1858
    %v3225 = vunpack.c.h.b16 %v1858
    %v3226 = vunpack.c.l.b16 %v1859
    %v3227 = vunpack.c.h.b16 %v1859
    %v3228 = vunpack.c.l.b16 %v1860
    %v3229 = vunpack.c.h.b16 %v1860
    %v3230 = vunpack.c.l.b16 %v1861
    %v3231 = vunpack.c.h.b16 %v1861
    %v3232 = vunpack.c.l.b16 %v1862
    %v3233 = vunpack.c.h.b16 %v1862
    %v3234 = vunpack.c.l.b16 %v1863
    %v3235 = vunpack.c.h.b16 %v1863
    %v3236 = vunpack.c.l.b16 %v1864
    %v3237 = vunpack.c.h.b16 %v1864
    %v3238 = vunpack.c.l.b16 %v1865
    %v3239 = vunpack.c.h.b16 %v1865
    %v3240 = vunpack.c.l.b16 %v1866
    %v3241 = vunpack.c.h.b16 %v1866
    %v3242 = vunpack.c.l.b16 %v1867
    %v3243 = vunpack.c.h.b16 %v1867
    %v3244 = vunpack.c.l.b16 %v1868
    %v3245 = vunpack.c.h.b16 %v1868
    %v3246 = vunpack.c.l.b16 %v1869
    %v3247 = vunpack.c.h.b16 %v1869
    %v3248 = vunpack.c.l.b16 %v1870
    %v3249 = vunpack.c.h.b16 %v1870
    %v3250 = vunpack.c.l.b16 %v1871
    %v3251 = vunpack.c.h.b16 %v1871
    %v3252 = vunpack.c.l.b16 %v1872
    %v3253 = vunpack.c.h.b16 %v1872
    %v3254 = vunpack.c.l.b16 %v1873
    %v3255 = vunpack.c.h.b16 %v1873
    %v3256 = vunpack.c.l.b16 %v1874
    %v3257 = vunpack.c.h.b16 %v1874
    %v3258 = vunpack.c.l.b16 %v1875
    %v3259 = vunpack.c.h.b16 %v1875
    %v3260 = vunpack.c.l.b16 %v1876
    %v3261 = vunpack.c.h.b16 %v1876
    %v3262 = vunpack.c.l.b16 %v1877
    %v3263 = vunpack.c.h.b16 %v1877
    %v3264 = vunpack.c.l.b16 %v1878
    %v3265 = vunpack.c.h.b16 %v1878
    %v3266 = vunpack.c.l.b16 %v1879
    %v3267 = vunpack.c.h.b16 %v1879
    %v3268 = vunpack.c.l.b16 %v1880
    %v3269 = vunpack.c.h.b16 %v1880
    %v3270 = vunpack.c.l.b16 %v1881
    %v3271 = vunpack.c.h.b16 %v1881
    %v3272 = vunpack.c.l.b16 %v1882
    %v3273 = vunpack.c.h.b16 %v1882
    %v3274 = vunpack.c.l.b16 %v1883
    %v3275 = vunpack.c.h.b16 %v1883
    %v3276 = vunpack.c.l.b16 %v1884
    %v3277 = vunpack.c.h.b16 %v1884
    %v3278 = vunpack.c.l.b16 %v1885
    %v3279 = vunpack.c.h.b16 %v1885
    %v3280 = vunpack.c.l.b16 %v1886
    %v3281 = vunpack.c.h.b16 %v1886
    %v3282 = vunpack.c.l.b16 %v1887
    %v3283 = vunpack.c.h.b16 %v1887
    %v3284 = vunpack.c.l.b16 %v1888
    %v3285 = vunpack.c.h.b16 %v1888
    %v3286 = vunpack.c.l.b16 %v1889
    %v3287 = vunpack.c.h.b16 %v1889
    %v3288 = vunpack.c.l.b16 %v1890
    %v3289 = vunpack.c.h.b16 %v1890
    %v3290 = vunpack.c.l.b16 %v1891
    %v3291 = vunpack.c.h.b16 %v1891
    %v3292 = vunpack.c.l.b16 %v1892
    %v3293 = vunpack.c.h.b16 %v1892
    %v3294 = vunpack.c.l.b16 %v1893
    %v3295 = vunpack.c.h.b16 %v1893
    %v3296 = vunpack.c.l.b16 %v1894
    %v3297 = vunpack.c.h.b16 %v1894
    %v3298 = vunpack.c.l.b16 %v1895
    %v3299 = vunpack.c.h.b16 %v1895
    %v3300 = vunpack.c.l.b16 %v1896
    %v3301 = vunpack.c.h.b16 %v1896
    %v3302 = vunpack.c.l.b16 %v1897
    %v3303 = vunpack.c.h.b16 %v1897
    %v3304 = vunpack.c.l.b16 %v1898
    %v3305 = vunpack.c.h.b16 %v1898
    %v3306 = vunpack.c.l.b16 %v1899
    %v3307 = vunpack.c.h.b16 %v1899
    %v3308 = vunpack.c.l.b16 %v1900
    %v3309 = vunpack.c.h.b16 %v1900
    %v3310 = vunpack.c.l.b16 %v1901
    %v3311 = vunpack.c.h.b16 %v1901
    %v3312 = vunpack.c.l.b16 %v1902
    %v3313 = vunpack.c.h.b16 %v1902
    %v3314 = vunpack.c.l.b16 %v1903
    %v3315 = vunpack.c.h.b16 %v1903
    %v3316 = vunpack.c.l.b16 %v1904
    %v3317 = vunpack.c.h.b16 %v1904
    %v3318 = vunpack.c.l.b16 %v1905
    %v3319 = vunpack.c.h.b16 %v1905
    %v3320 = vunpack.c.l.b16 %v1906
    %v3321 = vunpack.c.h.b16 %v1906
    %v3322 = vunpack.c.l.b16 %v1907
    %v3323 = vunpack.c.h.b16 %v1907
    %v3324 = vunpack.c.l.b16 %v1908
    %v3325 = vunpack.c.h.b16 %v1908
    %v3326 = vunpack.c.l.b16 %v1909
    %v3327 = vunpack.c.h.b16 %v1909
    %v3328 = vunpack.c.l.b16 %v1910
    %v3329 = vunpack.c.h.b16 %v1910
    %v3330 = vunpack.c.l.b16 %v1911
    %v3331 = vunpack.c.h.b16 %v1911
    %v3332 = vunpack.c.l.b16 %v1912
    %v3333 = vunpack.c.h.b16 %v1912
    %v3334 = vunpack.c.l.b16 %v1913
    %v3335 = vunpack.c.h.b16 %v1913
    %v3336 = vunpack.c.l.b16 %v1914
    %v3337 = vunpack.c.h.b16 %v1914
    %v3338 = vunpack.c.l.b16 %v1915
    %v3339 = vunpack.c.h.b16 %v1915
    %v3340 = vunpack.c.l.b16 %v1916
    %v3341 = vunpack.c.h.b16 %v1916
    %v3342 = vunpack.c.l.b16 %v1917
    %v3343 = vunpack.c.h.b16 %v1917
    %v3344 = vunpack.c.l.b16 %v1918
    %v3345 = vunpack.c.h.b16 %v1918
    %v3346 = vunpack.c.l.b16 %v1919
    %v3347 = vunpack.c.h.b16 %v1919
    %v3348 = vunpack.c.l.b16 %v1920
    %v3349 = vunpack.c.h.b16 %v1920
    %v3350 = vunpack.c.l.b16 %v1921
    %v3351 = vunpack.c.h.b16 %v1921
    %v3352 = vunpack.c.l.b16 %v1922
    %v3353 = vunpack.c.h.b16 %v1922
    %v3354 = vunpack.c.l.b16 %v1923
    %v3355 = vunpack.c.h.b16 %v1923
    %v3356 = vunpack.c.l.b16 %v1924
    %v3357 = vunpack.c.h.b16 %v1924
    %v3358 = vunpack.c.l.b16 %v1925
    %v3359 = vunpack.c.h.b16 %v1925
    %v3360 = vunpack.c.l.b16 %v1926
    %v3361 = vunpack.c.h.b16 %v1926
    %v3362 = vunpack.c.l.b16 %v1927
    %v3363 = vunpack.c.h.b16 %v1927
    %v3364 = vunpack.c.l.b16 %v1928
    %v3365 = vunpack.c.h.b16 %v1928
    %v3366 = vunpack.c.l.b16 %v1929
    %v3367 = vunpack.c.h.b16 %v1929
    %v3368 = vunpack.c.l.b16 %v1930
    %v3369 = vunpack.c.h.b16 %v1930
    %v3370 = vunpack.c.l.b16 %v1931
    %v3371 = vunpack.c.h.b16 %v1931
    %v3372 = vunpack.c.l.b16 %v1932
    %v3373 = vunpack.c.h.b16 %v1932
    %v3374 = vunpack.c.l.b16 %v1933
    %v3375 = vunpack.c.h.b16 %v1933
    %v3376 = vunpack.c.l.b16 %v1934
    %v3377 = vunpack.c.h.b16 %v1934
    %v3378 = vunpack.c.l.b16 %v1935
    %v3379 = vunpack.c.h.b16 %v1935
    %v3380 = vunpack.c.l.b16 %v1936
    %v3381 = vunpack.c.h.b16 %v1936
    %v3382 = vunpack.c.l.b16 %v1937
    %v3383 = vunpack.c.h.b16 %v1937
    %v3384 = vunpack.c.l.b16 %v1938
    %v3385 = vunpack.c.h.b16 %v1938
    %v3386 = vunpack.c.l.b16 %v1939
    %v3387 = vunpack.c.h.b16 %v1939
    %v3388 = vunpack.c.l.b16 %v1940
    %v3389 = vunpack.c.h.b16 %v1940
    %v3390 = vunpack.c.l.b16 %v1941
    %v3391 = vunpack.c.h.b16 %v1941
    %v3392 = vunpack.c.l.b16 %v1942
    %v3393 = vunpack.c.h.b16 %v1942
    %v3394 = vunpack.c.l.b16 %v1943
    %v3395 = vunpack.c.h.b16 %v1943
    %v3396 = vunpack.c.l.b16 %v1944
    %v3397 = vunpack.c.h.b16 %v1944
    %v3398 = vunpack.c.l.b16 %v1945
    %v3399 = vunpack.c.h.b16 %v1945
    %v3400 = vunpack.c.l.b16 %v1946
    %v3401 = vunpack.c.h.b16 %v1946
    %v3402 = vunpack.c.l.b16 %v1947
    %v3403 = vunpack.c.h.b16 %v1947
    %v3404 = vunpack.c.l.b16 %v1948
    %v3405 = vunpack.c.h.b16 %v1948
    %v3406 = vunpack.c.l.b16 %v1949
    %v3407 = vunpack.c.h.b16 %v1949
    %v3408 = vunpack.c.l.b16 %v1950
    %v3409 = vunpack.c.h.b16 %v1950
    %v3410 = vunpack.c.l.b16 %v1951
    %v3411 = vunpack.c.h.b16 %v1951
    %v3412 = vunpack.c.l.b16 %v1952
    %v3413 = vunpack.c.h.b16 %v1952
    %v3414 = vunpack.c.l.b16 %v1953
    %v3415 = vunpack.c.h.b16 %v1953
    %v3416 = vunpack.c.l.b16 %v1954
    %v3417 = vunpack.c.h.b16 %v1954
    %v3418 = vunpack.c.l.b16 %v1955
    %v3419 = vunpack.c.h.b16 %v1955
    %v3420 = vunpack.c.l.b16 %v1956
    %v3421 = vunpack.c.h.b16 %v1956
    %v3422 = vunpack.c.l.b16 %v1957
    %v3423 = vunpack.c.h.b16 %v1957
    %v3424 = vunpack.c.l.b16 %v1958
    %v3425 = vunpack.c.h.b16 %v1958
    %v3426 = vunpack.c.l.b16 %v1959
    %v3427 = vunpack.c.h.b16 %v1959
    %v3428 = vunpack.c.l.b16 %v1960
    %v3429 = vunpack.c.h.b16 %v1960
    %v3430 = vunpack.c.l.b16 %v1961
    %v3431 = vunpack.c.h.b16 %v1961
    %v3432 = vunpack.c.l.b16 %v1962
    %v3433 = vunpack.c.h.b16 %v1962
    %v3434 = vunpack.c.l.b16 %v1963
    %v3435 = vunpack.c.h.b16 %v1963
    %v3436 = vunpack.c.l.b16 %v1964
    %v3437 = vunpack.c.h.b16 %v1964
    %v3438 = vunpack.c.l.b16 %v1965
    %v3439 = vunpack.c.h.b16 %v1965
    %v3440 = vunpack.c.l.b16 %v1966
    %v3441 = vunpack.c.h.b16 %v1966
    %v3442 = vunpack.c.l.b16 %v1967
    %v3443 = vunpack.c.h.b16 %v1967
    %v3444 = vunpack.c.l.b16 %v1968
    %v3445 = vunpack.c.h.b16 %v1968
    %v3446 = vunpack.c.l.b16 %v1969
    %v3447 = vunpack.c.h.b16 %v1969
    %v3448 = vunpack.c.l.b16 %v1970
    %v3449 = vunpack.c.h.b16 %v1970
    %v3450 = vunpack.c.l.b16 %v1971
    %v3451 = vunpack.c.h.b16 %v1971
    %v3452 = vunpack.c.l.b16 %v1972
    %v3453 = vunpack.c.h.b16 %v1972
    %v3454 = vunpack.c.l.b16 %v1973
    %v3455 = vunpack.c.h.b16 %v1973
    %v3456 = vunpack.c.l.b16 %v1974
    %v3457 = vunpack.c.h.b16 %v1974
    %v3458 = vunpack.c.l.b16 %v1975
    %v3459 = vunpack.c.h.b16 %v1975
    %v3460 = vunpack.c.l.b16 %v1976
    %v3461 = vunpack.c.h.b16 %v1976
    %v3462 = vunpack.c.l.b16 %v1977
    %v3463 = vunpack.c.h.b16 %v1977
    %v3464 = vunpack.c.l.b16 %v1978
    %v3465 = vunpack.c.h.b16 %v1978
    %v3466 = vunpack.c.l.b16 %v1979
    %v3467 = vunpack.c.h.b16 %v1979
    %v3468 = vunpack.c.l.b16 %v1980
    %v3469 = vunpack.c.h.b16 %v1980
    %v3470 = vunpack.c.l.b16 %v1981
    %v3471 = vunpack.c.h.b16 %v1981
    %v3472 = vunpack.c.l.b16 %v1982
    %v3473 = vunpack.c.h.b16 %v1982
    %v3474 = vunpack.c.l.b16 %v1983
    %v3475 = vunpack.c.h.b16 %v1983
    %v3476 = vunpack.c.l.b16 %v1984
    %v3477 = vunpack.c.h.b16 %v1984
    %v3478 = vunpack.c.l.b16 %v1985
    %v3479 = vunpack.c.h.b16 %v1985
    %v3480 = vunpack.c.l.b16 %v1986
    %v3481 = vunpack.c.h.b16 %v1986
    %v3482 = vunpack.c.l.b16 %v1987
    %v3483 = vunpack.c.h.b16 %v1987
    %v3484 = vunpack.c.l.b16 %v1988
    %v3485 = vunpack.c.h.b16 %v1988
    %v3486 = vunpack.c.l.b16 %v1989
    %v3487 = vunpack.c.h.b16 %v1989
    %v3488 = vunpack.c.l.b16 %v1990
    %v3489 = vunpack.c.h.b16 %v1990
    %v3490 = vunpack.c.l.b16 %v1991
    %v3491 = vunpack.c.h.b16 %v1991
    %v3492 = vunpack.c.l.b16 %v1992
    %v3493 = vunpack.c.h.b16 %v1992
    %v3494 = vunpack.c.l.b16 %v1993
    %v3495 = vunpack.c.h.b16 %v1993
    %v3496 = vunpack.c.l.b16 %v1994
    %v3497 = vunpack.c.h.b16 %v1994
    %v3498 = vunpack.c.l.b16 %v1995
    %v3499 = vunpack.c.h.b16 %v1995
    %v3500 = vunpack.c.l.b16 %v1996
    %v3501 = vunpack.c.h.b16 %v1996
    %v3502 = vunpack.c.l.b16 %v1997
    %v3503 = vunpack.c.h.b16 %v1997
    %v3504 = vunpack.c.l.b16 %v1998
    %v3505 = vunpack.c.h.b16 %v1998
    %v3506 = vunpack.c.l.b16 %v1999
    %v3507 = vunpack.c.h.b16 %v1999
    %v3508 = vunpack.c.l.b16 %v2000
    %v3509 = vunpack.c.h.b16 %v2000
    %v3510 = vunpack.c.l.b16 %v2001
    %v3511 = vunpack.c.h.b16 %v2001
    %v3512 = vunpack.c.l.b16 %v2002
    %v3513 = vunpack.c.h.b16 %v2002
    %v3514 = vunpack.c.l.b16 %v2003
    %v3515 = vunpack.c.h.b16 %v2003
    %v3516 = vunpack.c.l.b16 %v2004
    %v3517 = vunpack.c.h.b16 %v2004
    %v3518 = vunpack.c.l.b16 %v2005
    %v3519 = vunpack.c.h.b16 %v2005
    %v3520 = vunpack.c.l.b16 %v2006
    %v3521 = vunpack.c.h.b16 %v2006
    %v3522 = vunpack.c.l.b16 %v2007
    %v3523 = vunpack.c.h.b16 %v2007
    %v3524 = vunpack.c.l.b16 %v2008
    %v3525 = vunpack.c.h.b16 %v2008
    %v3526 = vunpack.c.l.b16 %v2009
    %v3527 = vunpack.c.h.b16 %v2009
    %v3528 = vunpack.c.l.b16 %v2010
    %v3529 = vunpack.c.h.b16 %v2010
    %v3530 = vunpack.c.l.b16 %v2011
    %v3531 = vunpack.c.h.b16 %v2011
    %v3532 = vunpack.c.l.b16 %v2012
    %v3533 = vunpack.c.h.b16 %v2012
    %v3534 = vunpack.c.l.b16 %v2013
    %v3535 = vunpack.c.h.b16 %v2013
    %v3536 = vunpack.c.l.b16 %v2014
    %v3537 = vunpack.c.h.b16 %v2014
    %v3538 = vunpack.c.l.b16 %v2015
    %v3539 = vunpack.c.h.b16 %v2015
    %v3540 = vunpack.c.l.b16 %v2016
    %v3541 = vunpack.c.h.b16 %v2016
    %v3542 = vunpack.c.l.b16 %v2017
    %v3543 = vunpack.c.h.b16 %v2017
    %v3544 = vunpack.c.l.b16 %v2018
    %v3545 = vunpack.c.h.b16 %v2018
    %v3546 = vunpack.c.l.b16 %v2019
    %v3547 = vunpack.c.h.b16 %v2019
    %v3548 = vunpack.c.l.b16 %v2020
    %v3549 = vunpack.c.h.b16 %v2020
    %v3550 = vunpack.c.l.b16 %v2021
    %v3551 = vunpack.c.h.b16 %v2021
    %v3552 = vunpack.c.l.b16 %v2022
    %v3553 = vunpack.c.h.b16 %v2022
    %v3554 = vunpack.c.l.b16 %v2023
    %v3555 = vunpack.c.h.b16 %v2023
    %v3556 = vunpack.c.l.b16 %v2024
    %v3557 = vunpack.c.h.b16 %v2024
    %v3558 = vunpack.c.l.b16 %v2025
    %v3559 = vunpack.c.h.b16 %v2025
    %v3560 = vunpack.c.l.b16 %v2026
    %v3561 = vunpack.c.h.b16 %v2026
    %v3562 = vunpack.c.l.b16 %v2027
    %v3563 = vunpack.c.h.b16 %v2027
    %v3564 = vunpack.c.l.b16 %v2028
    %v3565 = vunpack.c.h.b16 %v2028
    %v3566 = vunpack.c.l.b16 %v2029
    %v3567 = vunpack.c.h.b16 %v2029
    %v3568 = vunpack.c.l.b16 %v2030
    %v3569 = vunpack.c.h.b16 %v2030
    %v3570 = vunpack.c.l.b16 %v2031
    %v3571 = vunpack.c.h.b16 %v2031
    %v3572 = vunpack.c.l.b16 %v2032
    %v3573 = vunpack.c.h.b16 %v2032
    %v3574 = vunpack.c.l.b16 %v2033
    %v3575 = vunpack.c.h.b16 %v2033
    %v3576 = vunpack.c.l.b16 %v2034
    %v3577 = vunpack.c.h.b16 %v2034
    %v3578 = vunpack.c.l.b16 %v2035
    %v3579 = vunpack.c.h.b16 %v2035
    %v3580 = vunpack.c.l.b16 %v2036
    %v3581 = vunpack.c.h.b16 %v2036
    %v3582 = vunpack.c.l.b16 %v2037
    %v3583 = vunpack.c.h.b16 %v2037
    %v3584 = vunpack.c.l.b16 %v2038
    %v3585 = vunpack.c.h.b16 %v2038
    %v3586 = vunpack.c.l.b16 %v2039
    %v3587 = vunpack.c.h.b16 %v2039
    %v3588 = vunpack.c.l.b16 %v2040
    %v3589 = vunpack.c.h.b16 %v2040
    %v3590 = vunpack.c.l.b16 %v2041
    %v3591 = vunpack.c.h.b16 %v2041
    %v3592 = vunpack.c.l.b16 %v2042
    %v3593 = vunpack.c.h.b16 %v2042
    %v3594 = vunpack.c.l.b16 %v2043
    %v3595 = vunpack.c.h.b16 %v2043
    %v3596 = vunpack.c.l.b16 %v2044
    %v3597 = vunpack.c.h.b16 %v2044
    %v3598 = vunpack.c.l.b16 %v2045
    %v3599 = vunpack.c.h.b16 %v2045
    %v3600 = vunpack.c.l.b16 %v2046
    %v3601 = vunpack.c.h.b16 %v2046
    %v3602 = vunpack.c.l.b16 %v2047
    %v3603 = vunpack.c.h.b16 %v2047
    %v3604 = vunpack.c.l.b16 %v2048
    %v3605 = vunpack.c.h.b16 %v2048
    %v3606 = vunpack.c.l.b16 %v2049
    %v3607 = vunpack.c.h.b16 %v2049
    %v3608 = vunpack.c.l.b16 %v2050
    %v3609 = vunpack.c.h.b16 %v2050
    %v3610 = vunpack.c.l.b16 %v2051
    %v3611 = vunpack.c.h.b16 %v2051
    %v3612 = vunpack.c.l.b16 %v2052
    %v3613 = vunpack.c.h.b16 %v2052
    %v3614 = vunpack.c.l.b16 %v2053
    %v3615 = vunpack.c.h.b16 %v2053
    %v3616 = vunpack.c.l.b16 %v2054
    %v3617 = vunpack.c.h.b16 %v2054
    %v3618 = vunpack.c.l.b16 %v2055
    %v3619 = vunpack.c.h.b16 %v2055
    %v3620 = vunpack.c.l.b16 %v2056
    %v3621 = vunpack.c.h.b16 %v2056
    %v3622 = vunpack.c.l.b16 %v2057
    %v3623 = vunpack.c.h.b16 %v2057
    %v3624 = vunpack.c.l.b16 %v2058
    %v3625 = vunpack.c.h.b16 %v2058
    %v3626 = vunpack.c.l.b16 %v2059
    %v3627 = vunpack.c.h.b16 %v2059
    %v3628 = vunpack.c.l.b16 %v2060
    %v3629 = vunpack.c.h.b16 %v2060
    %v3630 = vunpack.c.l.b16 %v2061
    %v3631 = vunpack.c.h.b16 %v2061
    %v3632 = vunpack.c.l.b16 %v2062
    %v3633 = vunpack.c.h.b16 %v2062
    %v3634 = vunpack.c.l.b16 %v2063
    %v3635 = vunpack.c.h.b16 %v2063
    %v3636 = vunpack.c.l.b16 %v2064
    %v3637 = vunpack.c.h.b16 %v2064
    %v3638 = vunpack.c.l.b16 %v2065
    %v3639 = vunpack.c.h.b16 %v2065
    %v3640 = vunpack.c.l.b16 %v2066
    %v3641 = vunpack.c.h.b16 %v2066
    %v3642 = vunpack.c.l.b16 %v2067
    %v3643 = vunpack.c.h.b16 %v2067
    %v3644 = vunpack.c.l.b16 %v2068
    %v3645 = vunpack.c.h.b16 %v2068
    %v3646 = vunpack.c.l.b16 %v2069
    %v3647 = vunpack.c.h.b16 %v2069
    %v3648 = vunpack.c.l.b16 %v2070
    %v3649 = vunpack.c.h.b16 %v2070
    %v3650 = vunpack.c.l.b16 %v2071
    %v3651 = vunpack.c.h.b16 %v2071
    %v3652 = vunpack.c.l.b16 %v2072
    %v3653 = vunpack.c.h.b16 %v2072
    %v3654 = vunpack.c.l.b16 %v2073
    %v3655 = vunpack.c.h.b16 %v2073
    %v3656 = vunpack.c.l.b16 %v2074
    %v3657 = vunpack.c.h.b16 %v2074
    %v3658 = vunpack.c.l.b16 %v2075
    %v3659 = vunpack.c.h.b16 %v2075
    %v3660 = vunpack.c.l.b16 %v2076
    %v3661 = vunpack.c.h.b16 %v2076
    %v3662 = vunpack.c.l.b16 %v2077
    %v3663 = vunpack.c.h.b16 %v2077
    %v3664 = vunpack.c.l.b16 %v2078
    %v3665 = vunpack.c.h.b16 %v2078
    %v3666 = vunpack.c.l.b16 %v2079
    %v3667 = vunpack.c.h.b16 %v2079
    %v3668 = vunpack.c.l.b16 %v2080
    %v3669 = vunpack.c.h.b16 %v2080
    %v3670 = vunpack.c.l.b16 %v2081
    %v3671 = vunpack.c.h.b16 %v2081
    %v3672 = vunpack.c.l.b16 %v2082
    %v3673 = vunpack.c.h.b16 %v2082
    %v3674 = vunpack.c.l.b16 %v2083
    %v3675 = vunpack.c.h.b16 %v2083
    %v3676 = vunpack.c.l.b16 %v2084
    %v3677 = vunpack.c.h.b16 %v2084
    %v3678 = vunpack.c.l.b16 %v2085
    %v3679 = vunpack.c.h.b16 %v2085
    %v3680 = vunpack.c.l.b16 %v2086
    %v3681 = vunpack.c.h.b16 %v2086
    %v3682 = vunpack.c.l.b16 %v2087
    %v3683 = vunpack.c.h.b16 %v2087
    %v3684 = vunpack.c.l.b16 %v2088
    %v3685 = vunpack.c.h.b16 %v2088
    %v3686 = vunpack.c.l.b16 %v2089
    %v3687 = vunpack.c.h.b16 %v2089
    %v3688 = vunpack.c.l.b16 %v2090
    %v3689 = vunpack.c.h.b16 %v2090
    %v3690 = vunpack.c.l.b16 %v2091
    %v3691 = vunpack.c.h.b16 %v2091
    %v3692 = vunpack.c.l.b16 %v2092
    %v3693 = vunpack.c.h.b16 %v2092
    %v3694 = vunpack.c.l.b16 %v2093
    %v3695 = vunpack.c.h.b16 %v2093
    %v3696 = vunpack.c.l.b16 %v2094
    %v3697 = vunpack.c.h.b16 %v2094
    %v3698 = vunpack.c.l.b16 %v2095
    %v3699 = vunpack.c.h.b16 %v2095
    %v3700 = vunpack.c.l.b16 %v2096
    %v3701 = vunpack.c.h.b16 %v2096
    %v3702 = vunpack.c.l.b16 %v2097
    %v3703 = vunpack.c.h.b16 %v2097
    %v3704 = vunpack.c.l.b16 %v2098
    %v3705 = vunpack.c.h.b16 %v2098
    %v3706 = vunpack.c.l.b16 %v2099
    %v3707 = vunpack.c.h.b16 %v2099
    %v3708 = vunpack.c.l.b16 %v2100
    %v3709 = vunpack.c.h.b16 %v2100
    %v3710 = vunpack.c.l.b16 %v2101
    %v3711 = vunpack.c.h.b16 %v2101
    %v3712 = vunpack.c.l.b16 %v2102
    %v3713 = vunpack.c.h.b16 %v2102
    %v3714 = vunpack.c.l.b16 %v2103
    %v3715 = vunpack.c.h.b16 %v2103
    %v3716 = vunpack.c.l.b16 %v2104
    %v3717 = vunpack.c.h.b16 %v2104
    %v3718 = vunpack.c.l.b16 %v2105
    %v3719 = vunpack.c.h.b16 %v2105
    %v3720 = vunpack.c.l.b16 %v2106
    %v3721 = vunpack.c.h.b16 %v2106
    %v3722 = vunpack.c.l.b16 %v2107
    %v3723 = vunpack.c.h.b16 %v2107
    %v3724 = vunpack.c.l.b16 %v2108
    %v3725 = vunpack.c.h.b16 %v2108
    %v3726 = vunpack.c.l.b16 %v2109
    %v3727 = vunpack.c.h.b16 %v2109
    %v3728 = vunpack.c.l.b16 %v2110
    %v3729 = vunpack.c.h.b16 %v2110
    %v3730 = vunpack.c.l.b16 %v2111
    %v3731 = vunpack.c.h.b16 %v2111
    %v3732 = vpack.c.b16 %v2724, %v2708
    %v3733 = vpack.c.b16 %v2725, %v2709
    %v3734 = vpack.c.b16 %v2726, %v2710
    %v3735 = vpack.c.b16 %v2727, %v2711
    %v3736 = vpack.c.b16 %v2728, %v2712
    %v3737 = vpack.c.b16 %v2729, %v2713
    %v3738 = vpack.c.b16 %v2730, %v2714
    %v3739 = vpack.c.b16 %v2731, %v2715
    %v3740 = vpack.c.b16 %v2732, %v2716
    %v3741 = vpack.c.b16 %v2733, %v2717
    %v3742 = vpack.c.b16 %v2734, %v2718
    %v3743 = vpack.c.b16 %v2735, %v2719
    %v3744 = vpack.c.b16 %v2736, %v2720
    %v3745 = vpack.c.b16 %v2737, %v2721
    %v3746 = vpack.c.b16 %v2738, %v2722
    %v3747 = vpack.c.b16 %v2739, %v2723
    %v3748 = vpack.c.b16 %v2756, %v2740
    %v3749 = vpack.c.b16 %v2757, %v2741
    %v3750 = vpack.c.b16 %v2758, %v2742
    %v3751 = vpack.c.b16 %v2759, %v2743
    %v3752 = vpack.c.b16 %v2760, %v2744
    %v3753 = vpack.c.b16 %v2761, %v2745
    %v3754 = vpack.c.b16 %v2762, %v2746
    %v3755 = vpack.c.b16 %v2763, %v2747
    %v3756 = vpack.c.b16 %v2764, %v2748
    %v3757 = vpack.c.b16 %v2765, %v2749
    %v3758 = vpack.c.b16 %v2766, %v2750
    %v3759 = vpack.c.b16 %v2767, %v2751
    %v3760 = vpack.c.b16 %v2768, %v2752
    %v3761 = vpack.c.b16 %v2769, %v2753
    %v3762 = vpack.c.b16 %v2770, %v2754
    %v3763 = vpack.c.b16 %v2771, %v2755
    %v3764 = vpack.c.b16 %v2788, %v2772
    %v3765 = vpack.c.b16 %v2789, %v2773
    %v3766 = vpack.c.b16 %v2790, %v2774
    %v3767 = vpack.c.b16 %v2791, %v2775
    %v3768 = vpack.c.b16 %v2792, %v2776
    %v3769 = vpack.c.b16 %v2793, %v2777
    %v3770 = vpack.c.b16 %v2794, %v2778
    %v3771 = vpack.c.b16 %v2795, %v2779
    %v3772 = vpack.c.b16 %v2796, %v2780
    %v3773 = vpack.c.b16 %v2797, %v2781
    %v3774 = vpack.c.b16 %v2798, %v2782
    %v3775 = vpack.c.b16 %v2799, %v2783
    %v3776 = vpack.c.b16 %v2800, %v2784
    %v3777 = vpack.c.b16 %v2801, %v2785
    %v3778 = vpack.c.b16 %v2802, %v2786
    %v3779 = vpack.c.b16 %v2803, %v2787
    %v3780 = vpack.c.b16 %v2820, %v2804
    %v3781 = vpack.c.b16 %v2821, %v2805
    %v3782 = vpack.c.b16 %v2822, %v2806
    %v3783 = vpack.c.b16 %v2823, %v2807
    %v3784 = vpack.c.b16 %v2824, %v2808
    %v3785 = vpack.c.b16 %v2825, %v2809
    %v3786 = vpack.c.b16 %v2826, %v2810
    %v3787 = vpack.c.b16 %v2827, %v2811
    %v3788 = vpack.c.b16 %v2828, %v2812
    %v3789 = vpack.c.b16 %v2829, %v2813
    %v3790 = vpack.c.b16 %v2830, %v2814
    %v3791 = vpack.c.b16 %v2831, %v2815
    %v3792 = vpack.c.b16 %v2832, %v2816
    %v3793 = vpack.c.b16 %v2833, %v2817
    %v3794 = vpack.c.b16 %v2834, %v2818
    %v3795 = vpack.c.b16 %v2835, %v2819
    %v3796 = vpack.c.b16 %v2852, %v2836
    %v3797 = vpack.c.b16 %v2853, %v2837
    %v3798 = vpack.c.b16 %v2854, %v2838
    %v3799 = vpack.c.b16 %v2855, %v2839
    %v3800 = vpack.c.b16 %v2856, %v2840
    %v3801 = vpack.c.b16 %v2857, %v2841
    %v3802 = vpack.c.b16 %v2858, %v2842
    %v3803 = vpack.c.b16 %v2859, %v2843
    %v3804 = vpack.c.b16 %v2860, %v2844
    %v3805 = vpack.c.b16 %v2861, %v2845
    %v3806 = vpack.c.b16 %v2862, %v2846
    %v3807 = vpack.c.b16 %v2863, %v2847
    %v3808 = vpack.c.b16 %v2864, %v2848
    %v3809 = vpack.c.b16 %v2865, %v2849
    %v3810 = vpack.c.b16 %v2866, %v2850
    %v3811 = vpack.c.b16 %v2867, %v2851
    %v3812 = vpack.c.b16 %v2884, %v2868
    %v3813 = vpack.c.b16 %v2885, %v2869
    %v3814 = vpack.c.b16 %v2886, %v2870
    %v3815 = vpack.c.b16 %v2887, %v2871
    %v3816 = vpack.c.b16 %v2888, %v2872
    %v3817 = vpack.c.b16 %v2889, %v2873
    %v3818 = vpack.c.b16 %v2890, %v2874
    %v3819 = vpack.c.b16 %v2891, %v2875
    %v3820 = vpack.c.b16 %v2892, %v2876
    %v3821 = vpack.c.b16 %v2893, %v2877
    %v3822 = vpack.c.b16 %v2894, %v2878
    %v3823 = vpack.c.b16 %v2895, %v2879
    %v3824 = vpack.c.b16 %v2896, %v2880
    %v3825 = vpack.c.b16 %v2897, %v2881
    %v3826 = vpack.c.b16 %v2898, %v2882
    %v3827 = vpack.c.b16 %v2899, %v2883
    %v3828 = vpack.c.b16 %v2916, %v2900
    %v3829 = vpack.c.b16 %v2917, %v2901
    %v3830 = vpack.c.b16 %v2918, %v2902
    %v3831 = vpack.c.b16 %v2919, %v2903
    %v3832 = vpack.c.b16 %v2920, %v2904
    %v3833 = vpack.c.b16 %v2921, %v2905
    %v3834 = vpack.c.b16 %v2922, %v2906
    %v3835 = vpack.c.b16 %v2923, %v2907
    %v3836 = vpack.c.b16 %v2924, %v2908
    %v3837 = vpack.c.b16 %v2925, %v2909
    %v3838 = vpack.c.b16 %v2926, %v2910
    %v3839 = vpack.c.b16 %v2927, %v2911
    %v3840 = vpack.c.b16 %v2928, %v2912
    %v3841 = vpack.c.b16 %v2929, %v2913
    %v3842 = vpack.c.b16 %v2930, %v2914
    %v3843 = vpack.c.b16 %v2931, %v2915
    %v3844 = vpack.c.b16 %v2948, %v2932
    %v3845 = vpack.c.b16 %v2949, %v2933
    %v3846 = vpack.c.b16 %v2950, %v2934
    %v3847 = vpack.c.b16 %v2951, %v2935
    %v3848 = vpack.c.b16 %v2952, %v2936
    %v3849 = vpack.c.b16 %v2953, %v2937
    %v3850 = vpack.c.b16 %v2954, %v2938
    %v3851 = vpack.c.b16 %v2955, %v2939
    %v3852 = vpack.c.b16 %v2956, %v2940
    %v3853 = vpack.c.b16 %v2957, %v2941
    %v3854 = vpack.c.b16 %v2958, %v2942
    %v3855 = vpack.c.b16 %v2959, %v2943
    %v3856 = vpack.c.b16 %v2960, %v2944
    %v3857 = vpack.c.b16 %v2961, %v2945
    %v3858 = vpack.c.b16 %v2962, %v2946
    %v3859 = vpack.c.b16 %v2963, %v2947
    %v3860 = vpack.c.b16 %v2980, %v2964
    %v3861 = vpack.c.b16 %v2981, %v2965
    %v3862 = vpack.c.b16 %v2982, %v2966
    %v3863 = vpack.c.b16 %v2983, %v2967
    %v3864 = vpack.c.b16 %v2984, %v2968
    %v3865 = vpack.c.b16 %v2985, %v2969
    %v3866 = vpack.c.b16 %v2986, %v2970
    %v3867 = vpack.c.b16 %v2987, %v2971
    %v3868 = vpack.c.b16 %v2988, %v2972
    %v3869 = vpack.c.b16 %v2989, %v2973
    %v3870 = vpack.c.b16 %v2990, %v2974
    %v3871 = vpack.c.b16 %v2991, %v2975
    %v3872 = vpack.c.b16 %v2992, %v2976
    %v3873 = vpack.c.b16 %v2993, %v2977
    %v3874 = vpack.c.b16 %v2994, %v2978
    %v3875 = vpack.c.b16 %v2995, %v2979
    %v3876 = vpack.c.b16 %v3012, %v2996
    %v3877 = vpack.c.b16 %v3013, %v2997
    %v3878 = vpack.c.b16 %v3014, %v2998
    %v3879 = vpack.c.b16 %v3015, %v2999
    %v3880 = vpack.c.b16 %v3016, %v3000
    %v3881 = vpack.c.b16 %v3017, %v3001
    %v3882 = vpack.c.b16 %v3018, %v3002
    %v3883 = vpack.c.b16 %v3019, %v3003
    %v3884 = vpack.c.b16 %v3020, %v3004
    %v3885 = vpack.c.b16 %v3021, %v3005
    %v3886 = vpack.c.b16 %v3022, %v3006
    %v3887 = vpack.c.b16 %v3023, %v3007
    %v3888 = vpack.c.b16 %v3024, %v3008
    %v3889 = vpack.c.b16 %v3025, %v3009
    %v3890 = vpack.c.b16 %v3026, %v3010
    %v3891 = vpack.c.b16 %v3027, %v3011
    %v3892 = vpack.c.b16 %v3044, %v3028
    %v3893 = vpack.c.b16 %v3045, %v3029
    %v3894 = vpack.c.b16 %v3046, %v3030
    %v3895 = vpack.c.b16 %v3047, %v3031
    %v3896 = vpack.c.b16 %v3048, %v3032
    %v3897 = vpack.c.b16 %v3049, %v3033
    %v3898 = vpack.c.b16 %v3050, %v3034
    %v3899 = vpack.c.b16 %v3051, %v3035
    %v3900 = vpack.c.b16 %v3052, %v3036
    %v3901 = vpack.c.b16 %v3053, %v3037
    %v3902 = vpack.c.b16 %v3054, %v3038
    %v3903 = vpack.c.b16 %v3055, %v3039
    %v3904 = vpack.c.b16 %v3056, %v3040
    %v3905 = vpack.c.b16 %v3057, %v3041
    %v3906 = vpack.c.b16 %v3058, %v3042
    %v3907 = vpack.c.b16 %v3059, %v3043
    %v3908 = vpack.c.b16 %v3076, %v3060
    %v3909 = vpack.c.b16 %v3077, %v3061
    %v3910 = vpack.c.b16 %v3078, %v3062
    %v3911 = vpack.c.b16 %v3079, %v3063
    %v3912 = vpack.c.b16 %v3080, %v3064
    %v3913 = vpack.c.b16 %v3081, %v3065
    %v3914 = vpack.c.b16 %v3082, %v3066
    %v3915 = vpack.c.b16 %v3083, %v3067
    %v3916 = vpack.c.b16 %v3084, %v3068
    %v3917 = vpack.c.b16 %v3085, %v3069
    %v3918 = vpack.c.b16 %v3086, %v3070
    %v3919 = vpack.c.b16 %v3087, %v3071
    %v3920 = vpack.c.b16 %v3088, %v3072
    %v3921 = vpack.c.b16 %v3089, %v3073
    %v3922 = vpack.c.b16 %v3090, %v3074
    %v3923 = vpack.c.b16 %v3091, %v3075
    %v3924 = vpack.c.b16 %v3108, %v3092
    %v3925 = vpack.c.b16 %v3109, %v3093
    %v3926 = vpack.c.b16 %v3110, %v3094
    %v3927 = vpack.c.b16 %v3111, %v3095
    %v3928 = vpack.c.b16 %v3112, %v3096
    %v3929 = vpack.c.b16 %v3113, %v3097
    %v3930 = vpack.c.b16 %v3114, %v3098
    %v3931 = vpack.c.b16 %v3115, %v3099
    %v3932 = vpack.c.b16 %v3116, %v3100
    %v3933 = vpack.c.b16 %v3117, %v3101
    %v3934 = vpack.c.b16 %v3118, %v3102
    %v3935 = vpack.c.b16 %v3119, %v3103
    %v3936 = vpack.c.b16 %v3120, %v3104
    %v3937 = vpack.c.b16 %v3121, %v3105
    %v3938 = vpack.c.b16 %v3122, %v3106
    %v3939 = vpack.c.b16 %v3123, %v3107
    %v3940 = vpack.c.b16 %v3140, %v3124
    %v3941 = vpack.c.b16 %v3141, %v3125
    %v3942 = vpack.c.b16 %v3142, %v3126
    %v3943 = vpack.c.b16 %v3143, %v3127
    %v3944 = vpack.c.b16 %v3144, %v3128
    %v3945 = vpack.c.b16 %v3145, %v3129
    %v3946 = vpack.c.b16 %v3146, %v3130
    %v3947 = vpack.c.b16 %v3147, %v3131
    %v3948 = vpack.c.b16 %v3148, %v3132
    %v3949 = vpack.c.b16 %v3149, %v3133
    %v3950 = vpack.c.b16 %v3150, %v3134
    %v3951 = vpack.c.b16 %v3151, %v3135
    %v3952 = vpack.c.b16 %v3152, %v3136
    %v3953 = vpack.c.b16 %v3153, %v3137
    %v3954 = vpack.c.b16 %v3154, %v3138
    %v3955 = vpack.c.b16 %v3155, %v3139
    %v3956 = vpack.c.b16 %v3172, %v3156
    %v3957 = vpack.c.b16 %v3173, %v3157
    %v3958 = vpack.c.b16 %v3174, %v3158
    %v3959 = vpack.c.b16 %v3175, %v3159
    %v3960 = vpack.c.b16 %v3176, %v3160
    %v3961 = vpack.c.b16 %v3177, %v3161
    %v3962 = vpack.c.b16 %v3178, %v3162
    %v3963 = vpack.c.b16 %v3179, %v3163
    %v3964 = vpack.c.b16 %v3180, %v3164
    %v3965 = vpack.c.b16 %v3181, %v3165
    %v3966 = vpack.c.b16 %v3182, %v3166
    %v3967 = vpack.c.b16 %v3183, %v3167
    %v3968 = vpack.c.b16 %v3184, %v3168
    %v3969 = vpack.c.b16 %v3185, %v3169
    %v3970 = vpack.c.b16 %v3186, %v3170
    %v3971 = vpack.c.b16 %v3187, %v3171
    %v3972 = vpack.c.b16 %v3204, %v3188
    %v3973 = vpack.c.b16 %v3205, %v3189
    %v3974 = vpack.c.b16 %v3206, %v3190
    %v3975 = vpack.c.b16 %v3207, %v3191
    %v3976 = vpack.c.b16 %v3208, %v3192
    %v3977 = vpack.c.b16 %v3209, %v3193
    %v3978 = vpack.c.b16 %v3210, %v3194
    %v3979 = vpack.c.b16 %v3211, %v3195
    %v3980 = vpack.c.b16 %v3212, %v3196
    %v3981 = vpack.c.b16 %v3213, %v3197
    %v3982 = vpack.c.b16 %v3214, %v3198
    %v3983 = vpack.c.b16 %v3215, %v3199
    %v3984 = vpack.c.b16 %v3216, %v3200
    %v3985 = vpack.c.b16 %v3217, %v3201
    %v3986 = vpack.c.b16 %v3218, %v3202
    %v3987 = vpack.c.b16 %v3219, %v3203
    %v3988 = vpack.c.b16 %v3236, %v3220
    %v3989 = vpack.c.b16 %v3237, %v3221
    %v3990 = vpack.c.b16 %v3238, %v3222
    %v3991 = vpack.c.b16 %v3239, %v3223
    %v3992 = vpack.c.b16 %v3240, %v3224
    %v3993 = vpack.c.b16 %v3241, %v3225
    %v3994 = vpack.c.b16 %v3242, %v3226
    %v3995 = vpack.c.b16 %v3243, %v3227
    %v3996 = vpack.c.b16 %v3244, %v3228
    %v3997 = vpack.c.b16 %v3245, %v3229
    %v3998 = vpack.c.b16 %v3246, %v3230
    %v3999 = vpack.c.b16 %v3247, %v3231
    %v4000 = vpack.c.b16 %v3248, %v3232
    %v4001 = vpack.c.b16 %v3249, %v3233
    %v4002 = vpack.c.b16 %v3250, %v3234
    %v4003 = vpack.c.b16 %v3251, %v3235
    %v4004 = vpack.c.b16 %v3268, %v3252
    %v4005 = vpack.c.b16 %v3269, %v3253
    %v4006 = vpack.c.b16 %v3270, %v3254
    %v4007 = vpack.c.b16 %v3271, %v3255
    %v4008 = vpack.c.b16 %v3272, %v3256
    %v4009 = vpack.c.b16 %v3273, %v3257
    %v4010 = vpack.c.b16 %v3274, %v3258
    %v4011 = vpack.c.b16 %v3275, %v3259
    %v4012 = vpack.c.b16 %v3276, %v3260
    %v4013 = vpack.c.b16 %v3277, %v3261
    %v4014 = vpack.c.b16 %v3278, %v3262
    %v4015 = vpack.c.b16 %v3279, %v3263
    %v4016 = vpack.c.b16 %v3280, %v3264
    %v4017 = vpack.c.b16 %v3281, %v3265
    %v4018 = vpack.c.b16 %v3282, %v3266
    %v4019 = vpack.c.b16 %v3283, %v3267
    %v4020 = vpack.c.b16 %v3300, %v3284
    %v4021 = vpack.c.b16 %v3301, %v3285
    %v4022 = vpack.c.b16 %v3302, %v3286
    %v4023 = vpack.c.b16 %v3303, %v3287
    %v4024 = vpack.c.b16 %v3304, %v3288
    %v4025 = vpack.c.b16 %v3305, %v3289
    %v4026 = vpack.c.b16 %v3306, %v3290
    %v4027 = vpack.c.b16 %v3307, %v3291
    %v4028 = vpack.c.b16 %v3308, %v3292
    %v4029 = vpack.c.b16 %v3309, %v3293
    %v4030 = vpack.c.b16 %v3310, %v3294
    %v4031 = vpack.c.b16 %v3311, %v3295
    %v4032 = vpack.c.b16 %v3312, %v3296
    %v4033 = vpack.c.b16 %v3313, %v3297
    %v4034 = vpack.c.b16 %v3314, %v3298
    %v4035 = vpack.c.b16 %v3315, %v3299
    %v4036 = vpack.c.b16 %v3332, %v3316
    %v4037 = vpack.c.b16 %v3333, %v3317
    %v4038 = vpack.c.b16 %v3334, %v3318
    %v4039 = vpack.c.b16 %v3335, %v3319
    %v4040 = vpack.c.b16 %v3336, %v3320
    %v4041 = vpack.c.b16 %v3337, %v3321
    %v4042 = vpack.c.b16 %v3338, %v3322
    %v4043 = vpack.c.b16 %v3339, %v3323
    %v4044 = vpack.c.b16 %v3340, %v3324
    %v4045 = vpack.c.b16 %v3341, %v3325
    %v4046 = vpack.c.b16 %v3342, %v3326
    %v4047 = vpack.c.b16 %v3343, %v3327
    %v4048 = vpack.c.b16 %v3344, %v3328
    %v4049 = vpack.c.b16 %v3345, %v3329
    %v4050 = vpack.c.b16 %v3346, %v3330
    %v4051 = vpack.c.b16 %v3347, %v3331
    %v4052 = vpack.c.b16 %v3364, %v3348
    %v4053 = vpack.c.b16 %v3365, %v3349
    %v4054 = vpack.c.b16 %v3366, %v3350
    %v4055 = vpack.c.b16 %v3367, %v3351
    %v4056 = vpack.c.b16 %v3368, %v3352
    %v4057 = vpack.c.b16 %v3369, %v3353
    %v4058 = vpack.c.b16 %v3370, %v3354
    %v4059 = vpack.c.b16 %v3371, %v3355
    %v4060 = vpack.c.b16 %v3372, %v3356
    %v4061 = vpack.c.b16 %v3373, %v3357
    %v4062 = vpack.c.b16 %v3374, %v3358
    %v4063 = vpack.c.b16 %v3375, %v3359
    %v4064 = vpack.c.b16 %v3376, %v3360
    %v4065 = vpack.c.b16 %v3377, %v3361
    %v4066 = vpack.c.b16 %v3378, %v3362
    %v4067 = vpack.c.b16 %v3379, %v3363
    %v4068 = vpack.c.b16 %v3396, %v3380
    %v4069 = vpack.c.b16 %v3397, %v3381
    %v4070 = vpack.c.b16 %v3398, %v3382
    %v4071 = vpack.c.b16 %v3399, %v3383
    %v4072 = vpack.c.b16 %v3400, %v3384
    %v4073 = vpack.c.b16 %v3401, %v3385
    %v4074 = vpack.c.b16 %v3402, %v3386
    %v4075 = vpack.c.b16 %v3403, %v3387
    %v4076 = vpack.c.b16 %v3404, %v3388
    %v4077 = vpack.c.b16 %v3405, %v3389
    %v4078 = vpack.c.b16 %v3406, %v3390
    %v4079 = vpack.c.b16 %v3407, %v3391
    %v4080 = vpack.c.b16 %v3408, %v3392
    %v4081 = vpack.c.b16 %v3409, %v3393
    %v4082 = vpack.c.b16 %v3410, %v3394
    %v4083 = vpack.c.b16 %v3411, %v3395
    %v4084 = vpack.c.b16 %v3428, %v3412
    %v4085 = vpack.c.b16 %v3429, %v3413
    %v4086 = vpack.c.b16 %v3430, %v3414
    %v4087 = vpack.c.b16 %v3431, %v3415
    %v4088 = vpack.c.b16 %v3432, %v3416
    %v4089 = vpack.c.b16 %v3433, %v3417
    %v4090 = vpack.c.b16 %v3434, %v3418
    %v4091 = vpack.c.b16 %v3435, %v3419
    %v4092 = vpack.c.b16 %v3436, %v3420
    %v4093 = vpack.c.b16 %v3437, %v3421
    %v4094 = vpack.c.b16 %v3438, %v3422
    %v4095 = vpack.c.b16 %v3439, %v3423
    %v4096 = vpack.c.b16 %v3440, %v3424
    %v4097 = vpack.c.b16 %v3441, %v3425
    %v4098 = vpack.c.b16 %v3442, %v3426
    %v4099 = vpack.c.b16 %v3443, %v3427
    %v4100 = vpack.c.b16 %v3460, %v3444
    %v4101 = vpack.c.b16 %v3461, %v3445
    %v4102 = vpack.c.b16 %v3462, %v3446
    %v4103 = vpack.c.b16 %v3463, %v3447
    %v4104 = vpack.c.b16 %v3464, %v3448
    %v4105 = vpack.c.b16 %v3465, %v3449
    %v4106 = vpack.c.b16 %v3466, %v3450
    %v4107 = vpack.c.b16 %v3467, %v3451
    %v4108 = vpack.c.b16 %v3468, %v3452
    %v4109 = vpack.c.b16 %v3469, %v3453
    %v4110 = vpack.c.b16 %v3470, %v3454
    %v4111 = vpack.c.b16 %v3471, %v3455
    %v4112 = vpack.c.b16 %v3472, %v3456
    %v4113 = vpack.c.b16 %v3473, %v3457
    %v4114 = vpack.c.b16 %v3474, %v3458
    %v4115 = vpack.c.b16 %v3475, %v3459
    %v4116 = vpack.c.b16 %v3492, %v3476
    %v4117 = vpack.c.b16 %v3493, %v3477
    %v4118 = vpack.c.b16 %v3494, %v3478
    %v4119 = vpack.c.b16 %v3495, %v3479
    %v4120 = vpack.c.b16 %v3496, %v3480
    %v4121 = vpack.c.b16 %v3497, %v3481
    %v4122 = vpack.c.b16 %v3498, %v3482
    %v4123 = vpack.c.b16 %v3499, %v3483
    %v4124 = vpack.c.b16 %v3500, %v3484
    %v4125 = vpack.c.b16 %v3501, %v3485
    %v4126 = vpack.c.b16 %v3502, %v3486
    %v4127 = vpack.c.b16 %v3503, %v3487
    %v4128 = vpack.c.b16 %v3504, %v3488
    %v4129 = vpack.c.b16 %v3505, %v3489
    %v4130 = vpack.c.b16 %v3506, %v3490
    %v4131 = vpack.c.b16 %v3507, %v3491
    %v4132 = vpack.c.b16 %v3524, %v3508
    %v4133 = vpack.c.b16 %v3525, %v3509
    %v4134 = vpack.c.b16 %v3526, %v3510
    %v4135 = vpack.c.b16 %v3527, %v3511
    %v4136 = vpack.c.b16 %v3528, %v3512
    %v4137 = vpack.c.b16 %v3529, %v3513
    %v4138 = vpack.c.b16 %v3530, %v3514
    %v4139 = vpack.c.b16 %v3531, %v3515
    %v4140 = vpack.c.b16 %v3532, %v3516
    %v4141 = vpack.c.b16 %v3533, %v3517
    %v4142 = vpack.c.b16 %v3534, %v3518
    %v4143 = vpack.c.b16 %v3535, %v3519
    %v4144 = vpack.c.b16 %v3536, %v3520
    %v4145 = vpack.c.b16 %v3537, %v3521
    %v4146 = vpack.c.b16 %v3538, %v3522
    %v4147 = vpack.c.b16 %v3539, %v3523
    %v4148 = vpack.c.b16 %v3556, %v3540
    %v4149 = vpack.c.b16 %v3557, %v3541
    %v4150 = vpack.c.b16 %v3558, %v3542
    %v4151 = vpack.c.b16 %v3559, %v3543
    %v4152 = vpack.c.b16 %v3560, %v3544
    %v4153 = vpack.c.b16 %v3561, %v3545
    %v4154 = vpack.c.b16 %v3562, %v3546
    %v4155 = vpack.c.b16 %v3563, %v3547
    %v4156 = vpack.c.b16 %v3564, %v3548
    %v4157 = vpack.c.b16 %v3565, %v3549
    %v4158 = vpack.c.b16 %v3566, %v3550
    %v4159 = vpack.c.b16 %v3567, %v3551
    %v4160 = vpack.c.b16 %v3568, %v3552
    %v4161 = vpack.c.b16 %v3569, %v3553
    %v4162 = vpack.c.b16 %v3570, %v3554
    %v4163 = vpack.c.b16 %v3571, %v3555
    %v4164 = vpack.c.b16 %v3588, %v3572
    %v4165 = vpack.c.b16 %v3589, %v3573
    %v4166 = vpack.c.b16 %v3590, %v3574
    %v4167 = vpack.c.b16 %v3591, %v3575
    %v4168 = vpack.c.b16 %v3592, %v3576
    %v4169 = vpack.c.b16 %v3593, %v3577
    %v4170 = vpack.c.b16 %v3594, %v3578
    %v4171 = vpack.c.b16 %v3595, %v3579
    %v4172 = vpack.c.b16 %v3596, %v3580
    %v4173 = vpack.c.b16 %v3597, %v3581
    %v4174 = vpack.c.b16 %v3598, %v3582
    %v4175 = vpack.c.b16 %v3599, %v3583
    %v4176 = vpack.c.b16 %v3600, %v3584
    %v4177 = vpack.c.b16 %v3601, %v3585
    %v4178 = vpack.c.b16 %v3602, %v3586
    %v4179 = vpack.c.b16 %v3603, %v3587
    %v4180 = vpack.c.b16 %v3620, %v3604
    %v4181 = vpack.c.b16 %v3621, %v3605
    %v4182 = vpack.c.b16 %v3622, %v3606
    %v4183 = vpack.c.b16 %v3623, %v3607
    %v4184 = vpack.c.b16 %v3624, %v3608
    %v4185 = vpack.c.b16 %v3625, %v3609
    %v4186 = vpack.c.b16 %v3626, %v3610
    %v4187 = vpack.c.b16 %v3627, %v3611
    %v4188 = vpack.c.b16 %v3628, %v3612
    %v4189 = vpack.c.b16 %v3629, %v3613
    %v4190 = vpack.c.b16 %v3630, %v3614
    %v4191 = vpack.c.b16 %v3631, %v3615
    %v4192 = vpack.c.b16 %v3632, %v3616
    %v4193 = vpack.c.b16 %v3633, %v3617
    %v4194 = vpack.c.b16 %v3634, %v3618
    %v4195 = vpack.c.b16 %v3635, %v3619
    %v4196 = vpack.c.b16 %v3652, %v3636
    %v4197 = vpack.c.b16 %v3653, %v3637
    %v4198 = vpack.c.b16 %v3654, %v3638
    %v4199 = vpack.c.b16 %v3655, %v3639
    %v4200 = vpack.c.b16 %v3656, %v3640
    %v4201 = vpack.c.b16 %v3657, %v3641
    %v4202 = vpack.c.b16 %v3658, %v3642
    %v4203 = vpack.c.b16 %v3659, %v3643
    %v4204 = vpack.c.b16 %v3660, %v3644
    %v4205 = vpack.c.b16 %v3661, %v3645
    %v4206 = vpack.c.b16 %v3662, %v3646
    %v4207 = vpack.c.b16 %v3663, %v3647
    %v4208 = vpack.c.b16 %v3664, %v3648
    %v4209 = vpack.c.b16 %v3665, %v3649
    %v4210 = vpack.c.b16 %v3666, %v3650
    %v4211 = vpack.c.b16 %v3667, %v3651
    %v4212 = vpack.c.b16 %v3684, %v3668
    %v4213 = vpack.c.b16 %v3685, %v3669
    %v4214 = vpack.c.b16 %v3686, %v3670
    %v4215 = vpack.c.b16 %v3687, %v3671
    %v4216 = vpack.c.b16 %v3688, %v3672
    %v4217 = vpack.c.b16 %v3689, %v3673
    %v4218 = vpack.c.b16 %v3690, %v3674
    %v4219 = vpack.c.b16 %v3691, %v3675
    %v4220 = vpack.c.b16 %v3692, %v3676
    %v4221 = vpack.c.b16 %v3693, %v3677
    %v4222 = vpack.c.b16 %v3694, %v3678
    %v4223 = vpack.c.b16 %v3695, %v3679
    %v4224 = vpack.c.b16 %v3696, %v3680
    %v4225 = vpack.c.b16 %v3697, %v3681
    %v4226 = vpack.c.b16 %v3698, %v3682
    %v4227 = vpack.c.b16 %v3699, %v3683
    %v4228 = vpack.c.b16 %v3716, %v3700
    %v4229 = vpack.c.b16 %v3717, %v3701
    %v4230 = vpack.c.b16 %v3718, %v3702
    %v4231 = vpack.c.b16 %v3719, %v3703
    %v4232 = vpack.c.b16 %v3720, %v3704
    %v4233 = vpack.c.b16 %v3721, %v3705
    %v4234 = vpack.c.b16 %v3722, %v3706
    %v4235 = vpack.c.b16 %v3723, %v3707
    %v4236 = vpack.c.b16 %v3724, %v3708
    %v4237 = vpack.c.b16 %v3725, %v3709
    %v4238 = vpack.c.b16 %v3726, %v3710
    %v4239 = vpack.c.b16 %v3727, %v3711
    %v4240 = vpack.c.b16 %v3728, %v3712
    %v4241 = vpack.c.b16 %v3729, %v3713
    %v4242 = vpack.c.b16 %v3730, %v3714
    %v4243 = vpack.c.b16 %v3731, %v3715
    %4756 = vmatprep.subr.bf16.mxu0 %v3733
    %4757 = vmatpush1.bf16.msra.mxu0 %v3732
    %4758 = vmatprep.subr.bf16.mxu0 %v3749
    %4759 = vmatpush1.bf16.msra.mxu0 %v3748
    %4760 = vmatprep.subr.bf16.mxu0 %v3765
    %4761 = vmatpush1.bf16.msra.mxu0 %v3764
    %4762 = vmatprep.subr.bf16.mxu0 %v3781
    %4763 = vmatpush1.bf16.msra.mxu0 %v3780
    %4764 = vmatprep.subr.bf16.mxu0 %v3797
    %4765 = vmatpush1.bf16.msra.mxu0 %v3796
    %4766 = vmatprep.subr.bf16.mxu0 %v3813
    %4767 = vmatpush1.bf16.msra.mxu0 %v3812
    %4768 = vmatprep.subr.bf16.mxu0 %v3829
    %4769 = vmatpush1.bf16.msra.mxu0 %v3828
    %4770 = vmatprep.subr.bf16.mxu0 %v3845
    %4771 = vmatpush1.bf16.msra.mxu0 %v3844
    %4772 = vmatprep.subr.bf16.mxu0 %v3861
    %4773 = vmatpush1.bf16.msra.mxu0 %v3860
    %4774 = vmatprep.subr.bf16.mxu0 %v3877
    %4775 = vmatpush1.bf16.msra.mxu0 %v3876
    %4776 = vmatprep.subr.bf16.mxu0 %v3893
    %4777 = vmatpush1.bf16.msra.mxu0 %v3892
    %4778 = vmatprep.subr.bf16.mxu0 %v3909
    %4779 = vmatpush1.bf16.msra.mxu0 %v3908
    %4780 = vmatprep.subr.bf16.mxu0 %v3925
    %4781 = vmatpush1.bf16.msra.mxu0 %v3924
    %4782 = vmatprep.subr.bf16.mxu0 %v3941
    %4783 = vmatpush1.bf16.msra.mxu0 %v3940
    %4784 = vmatprep.subr.bf16.mxu0 %v3957
    %4785 = vmatpush1.bf16.msra.mxu0 %v3956
    %4786 = vmatprep.subr.bf16.mxu0 %v3973
    %4787 = vmatpush1.bf16.msra.mxu0 %v3972
    %4788 = vmatprep.mubr.bf16.mxu0 %v1597
    %4789 = vmatmul.mubr.bf16.gmra.mrb[0].mxu0 %v1596
    %v4790 = vpop.f32.mrb[0].mxu0
    %v4791 = vadd.f32 %v2119, %v4790
    %v4792 = vpop.f32.mrb[0].mxu0
    %v4793 = vadd.f32 %v2123, %v4792
    %v4794 = vpop.f32.mrb[0].mxu0
    %v4795 = vpop.f32.mrb[0].mxu0
    %4796 = vdwg.mxu0
    %4797 = vmatprep.subr.bf16.mxu0 %v3989
    %4798 = vmatpush1.bf16.msra.mxu0 %v3988
    %4799 = vmatprep.subr.bf16.mxu0 %v4005
    %4800 = vmatpush1.bf16.msra.mxu0 %v4004
    %4801 = vmatprep.subr.bf16.mxu0 %v4021
    %4802 = vmatpush1.bf16.msra.mxu0 %v4020
    %4803 = vmatprep.subr.bf16.mxu0 %v4037
    %4804 = vmatpush1.bf16.msra.mxu0 %v4036
    %4805 = vmatprep.subr.bf16.mxu0 %v4053
    %4806 = vmatpush1.bf16.msra.mxu0 %v4052
    %4807 = vmatprep.subr.bf16.mxu0 %v4069
    %4808 = vmatpush1.bf16.msra.mxu0 %v4068
    %4809 = vmatprep.subr.bf16.mxu0 %v4085
    %4810 = vmatpush1.bf16.msra.mxu0 %v4084
    %4811 = vmatprep.subr.bf16.mxu0 %v4101
    %4812 = vmatpush1.bf16.msra.mxu0 %v4100
    %4813 = vmatprep.subr.bf16.mxu0 %v4117
    %4814 = vmatpush1.bf16.msra.mxu0 %v4116
    %4815 = vmatprep.subr.bf16.mxu0 %v4133
    %4816 = vmatpush1.bf16.msra.mxu0 %v4132
    %4817 = vmatprep.subr.bf16.mxu0 %v4149
    %4818 = vmatpush1.bf16.msra.mxu0 %v4148
    %4819 = vmatprep.subr.bf16.mxu0 %v4165
    %4820 = vmatpush1.bf16.msra.mxu0 %v4164
    %4821 = vmatprep.subr.bf16.mxu0 %v4181
    %4822 = vmatpush1.bf16.msra.mxu0 %v4180
    %4823 = vmatprep.subr.bf16.mxu0 %v4197
    %4824 = vmatpush1.bf16.msra.mxu0 %v4196
    %4825 = vmatprep.subr.bf16.mxu0 %v4213
    %4826 = vmatpush1.bf16.msra.mxu0 %v4212
    %4827 = vmatprep.subr.bf16.mxu0 %v4229
    %4828 = vmatpush1.bf16.msra.mxu0 %v4228
    %4829 = vmatprep.mubr.bf16.mxu0 %v1599
    %4830 = vmatmul.mubr.bf16.gmra.mrb[0].mxu0 %v1598
    %v4831 = vpop.f32.mrb[0].mxu0
    %v4832 = vadd.f32 %v4791, %v4831
    %v4833 = vpop.f32.mrb[0].mxu0
    %v4834 = vadd.f32 %v4793, %v4833
    %v4835 = vpop.f32.mrb[0].mxu0
    %v4836 = vpop.f32.mrb[0].mxu0
    %4837 = vdwg.mxu0
    %4838 = vmatprep.subr.bf16.mxu0 %v3735
    %4839 = vmatpush1.bf16.msra.mxu0 %v3734
    %4840 = vmatprep.subr.bf16.mxu0 %v3751
    %4841 = vmatpush1.bf16.msra.mxu0 %v3750
    %4842 = vmatprep.subr.bf16.mxu0 %v3767
    %4843 = vmatpush1.bf16.msra.mxu0 %v3766
    %4844 = vmatprep.subr.bf16.mxu0 %v3783
    %4845 = vmatpush1.bf16.msra.mxu0 %v3782
    %4846 = vmatprep.subr.bf16.mxu0 %v3799
    %4847 = vmatpush1.bf16.msra.mxu0 %v3798
    %4848 = vmatprep.subr.bf16.mxu0 %v3815
    %4849 = vmatpush1.bf16.msra.mxu0 %v3814
    %4850 = vmatprep.subr.bf16.mxu0 %v3831
    %4851 = vmatpush1.bf16.msra.mxu0 %v3830
    %4852 = vmatprep.subr.bf16.mxu0 %v3847
    %4853 = vmatpush1.bf16.msra.mxu0 %v3846
    %4854 = vmatprep.subr.bf16.mxu0 %v3863
    %4855 = vmatpush1.bf16.msra.mxu0 %v3862
    %4856 = vmatprep.subr.bf16.mxu0 %v3879
    %4857 = vmatpush1.bf16.msra.mxu0 %v3878
    %4858 = vmatprep.subr.bf16.mxu0 %v3895
    %4859 = vmatpush1.bf16.msra.mxu0 %v3894
    %4860 = vmatprep.subr.bf16.mxu0 %v3911
    %4861 = vmatpush1.bf16.msra.mxu0 %v3910
    %4862 = vmatprep.subr.bf16.mxu0 %v3927
    %4863 = vmatpush1.bf16.msra.mxu0 %v3926
    %4864 = vmatprep.subr.bf16.mxu0 %v3943
    %4865 = vmatpush1.bf16.msra.mxu0 %v3942
    %4866 = vmatprep.subr.bf16.mxu0 %v3959
    %4867 = vmatpush1.bf16.msra.mxu0 %v3958
    %4868 = vmatprep.subr.bf16.mxu0 %v3975
    %4869 = vmatpush1.bf16.msra.mxu0 %v3974
    %4870 = vmatprep.mubr.bf16.mxu0 %v1597
    %4871 = vmatmul.mubr.bf16.gmra.mrb[0].mxu0 %v1596
    %v4872 = vpop.f32.mrb[0].mxu0
    %v4873 = vadd.f32 %v2127, %v4872
    %v4874 = vpop.f32.mrb[0].mxu0
    %v4875 = vadd.f32 %v2131, %v4874
    %v4876 = vpop.f32.mrb[0].mxu0
    %v4877 = vpop.f32.mrb[0].mxu0
    %4878 = vdwg.mxu0
    %4879 = vmatprep.subr.bf16.mxu0 %v3991
    %4880 = vmatpush1.bf16.msra.mxu0 %v3990
    %4881 = vmatprep.subr.bf16.mxu0 %v4007
    %4882 = vmatpush1.bf16.msra.mxu0 %v4006
    %4883 = vmatprep.subr.bf16.mxu0 %v4023
    %4884 = vmatpush1.bf16.msra.mxu0 %v4022
    %4885 = vmatprep.subr.bf16.mxu0 %v4039
    %4886 = vmatpush1.bf16.msra.mxu0 %v4038
    %4887 = vmatprep.subr.bf16.mxu0 %v4055
    %4888 = vmatpush1.bf16.msra.mxu0 %v4054
    %4889 = vmatprep.subr.bf16.mxu0 %v4071
    %4890 = vmatpush1.bf16.msra.mxu0 %v4070
    %4891 = vmatprep.subr.bf16.mxu0 %v4087
    %4892 = vmatpush1.bf16.msra.mxu0 %v4086
    %4893 = vmatprep.subr.bf16.mxu0 %v4103
    %4894 = vmatpush1.bf16.msra.mxu0 %v4102
    %4895 = vmatprep.subr.bf16.mxu0 %v4119
    %4896 = vmatpush1.bf16.msra.mxu0 %v4118
    %4897 = vmatprep.subr.bf16.mxu0 %v4135
    %4898 = vmatpush1.bf16.msra.mxu0 %v4134
    %4899 = vmatprep.subr.bf16.mxu0 %v4151
    %4900 = vmatpush1.bf16.msra.mxu0 %v4150
    %4901 = vmatprep.subr.bf16.mxu0 %v4167
    %4902 = vmatpush1.bf16.msra.mxu0 %v4166
    %4903 = vmatprep.subr.bf16.mxu0 %v4183
    %4904 = vmatpush1.bf16.msra.mxu0 %v4182
    %4905 = vmatprep.subr.bf16.mxu0 %v4199
    %4906 = vmatpush1.bf16.msra.mxu0 %v4198
    %4907 = vmatprep.subr.bf16.mxu0 %v4215
    %4908 = vmatpush1.bf16.msra.mxu0 %v4214
    %4909 = vmatprep.subr.bf16.mxu0 %v4231
    %4910 = vmatpush1.bf16.msra.mxu0 %v4230
    %4911 = vmatprep.mubr.bf16.mxu0 %v1599
    %4912 = vmatmul.mubr.bf16.gmra.mrb[0].mxu0 %v1598
    %v4913 = vpop.f32.mrb[0].mxu0
    %v4914 = vadd.f32 %v4873, %v4913
    %v4915 = vpop.f32.mrb[0].mxu0
    %v4916 = vadd.f32 %v4875, %v4915
    %v4917 = vpop.f32.mrb[0].mxu0
    %v4918 = vpop.f32.mrb[0].mxu0
    %4919 = vdwg.mxu0
    %4920 = vmatprep.subr.bf16.mxu0 %v3737
    %4921 = vmatpush1.bf16.msra.mxu0 %v3736
    %4922 = vmatprep.subr.bf16.mxu0 %v3753
    %4923 = vmatpush1.bf16.msra.mxu0 %v3752
    %4924 = vmatprep.subr.bf16.mxu0 %v3769
    %4925 = vmatpush1.bf16.msra.mxu0 %v3768
    %4926 = vmatprep.subr.bf16.mxu0 %v3785
    %4927 = vmatpush1.bf16.msra.mxu0 %v3784
    %4928 = vmatprep.subr.bf16.mxu0 %v3801
    %4929 = vmatpush1.bf16.msra.mxu0 %v3800
    %4930 = vmatprep.subr.bf16.mxu0 %v3817
    %4931 = vmatpush1.bf16.msra.mxu0 %v3816
    %4932 = vmatprep.subr.bf16.mxu0 %v3833
    %4933 = vmatpush1.bf16.msra.mxu0 %v3832
    %4934 = vmatprep.subr.bf16.mxu0 %v3849
    %4935 = vmatpush1.bf16.msra.mxu0 %v3848
    %4936 = vmatprep.subr.bf16.mxu0 %v3865
    %4937 = vmatpush1.bf16.msra.mxu0 %v3864
    %4938 = vmatprep.subr.bf16.mxu0 %v3881
    %4939 = vmatpush1.bf16.msra.mxu0 %v3880
    %4940 = vmatprep.subr.bf16.mxu0 %v3897
    %4941 = vmatpush1.bf16.msra.mxu0 %v3896
    %4942 = vmatprep.subr.bf16.mxu0 %v3913
    %4943 = vmatpush1.bf16.msra.mxu0 %v3912
    %4944 = vmatprep.subr.bf16.mxu0 %v3929
    %4945 = vmatpush1.bf16.msra.mxu0 %v3928
    %4946 = vmatprep.subr.bf16.mxu0 %v3945
    %4947 = vmatpush1.bf16.msra.mxu0 %v3944
    %4948 = vmatprep.subr.bf16.mxu0 %v3961
    %4949 = vmatpush1.bf16.msra.mxu0 %v3960
    %4950 = vmatprep.subr.bf16.mxu0 %v3977
    %4951 = vmatpush1.bf16.msra.mxu0 %v3976
    %4952 = vmatprep.mubr.bf16.mxu0 %v1597
    %4953 = vmatmul.mubr.bf16.gmra.mrb[0].mxu0 %v1596
    %v4954 = vpop.f32.mrb[0].mxu0
    %v4955 = vadd.f32 %v2135, %v4954
    %v4956 = vpop.f32.mrb[0].mxu0
    %v4957 = vadd.f32 %v2139, %v4956
    %v4958 = vpop.f32.mrb[0].mxu0
    %v4959 = vpop.f32.mrb[0].mxu0
    %4960 = vdwg.mxu0
    %4961 = vmatprep.subr.bf16.mxu0 %v3993
    %4962 = vmatpush1.bf16.msra.mxu0 %v3992
    %4963 = vmatprep.subr.bf16.mxu0 %v4009
    %4964 = vmatpush1.bf16.msra.mxu0 %v4008
    %4965 = vmatprep.subr.bf16.mxu0 %v4025
    %4966 = vmatpush1.bf16.msra.mxu0 %v4024
    %4967 = vmatprep.subr.bf16.mxu0 %v4041
    %4968 = vmatpush1.bf16.msra.mxu0 %v4040
    %4969 = vmatprep.subr.bf16.mxu0 %v4057
    %4970 = vmatpush1.bf16.msra.mxu0 %v4056
    %4971 = vmatprep.subr.bf16.mxu0 %v4073
    %4972 = vmatpush1.bf16.msra.mxu0 %v4072
    %4973 = vmatprep.subr.bf16.mxu0 %v4089
    %4974 = vmatpush1.bf16.msra.mxu0 %v4088
    %4975 = vmatprep.subr.bf16.mxu0 %v4105
    %4976 = vmatpush1.bf16.msra.mxu0 %v4104
    %4977 = vmatprep.subr.bf16.mxu0 %v4121
    %4978 = vmatpush1.bf16.msra.mxu0 %v4120
    %4979 = vmatprep.subr.bf16.mxu0 %v4137
    %4980 = vmatpush1.bf16.msra.mxu0 %v4136
    %4981 = vmatprep.subr.bf16.mxu0 %v4153
    %4982 = vmatpush1.bf16.msra.mxu0 %v4152
    %4983 = vmatprep.subr.bf16.mxu0 %v4169
    %4984 = vmatpush1.bf16.msra.mxu0 %v4168
    %4985 = vmatprep.subr.bf16.mxu0 %v4185
    %4986 = vmatpush1.bf16.msra.mxu0 %v4184
    %4987 = vmatprep.subr.bf16.mxu0 %v4201
    %4988 = vmatpush1.bf16.msra.mxu0 %v4200
    %4989 = vmatprep.subr.bf16.mxu0 %v4217
    %4990 = vmatpush1.bf16.msra.mxu0 %v4216
    %4991 = vmatprep.subr.bf16.mxu0 %v4233
    %4992 = vmatpush1.bf16.msra.mxu0 %v4232
    %4993 = vmatprep.mubr.bf16.mxu0 %v1599
    %4994 = vmatmul.mubr.bf16.gmra.mrb[0].mxu0 %v1598
    %v4995 = vpop.f32.mrb[0].mxu0
    %v4996 = vadd.f32 %v4955, %v4995
    %v4997 = vpop.f32.mrb[0].mxu0
    %v4998 = vadd.f32 %v4957, %v4997
    %v4999 = vpop.f32.mrb[0].mxu0
    %v5000 = vpop.f32.mrb[0].mxu0
    %5001 = vdwg.mxu0
    %5002 = vmatprep.subr.bf16.mxu0 %v3739
    %5003 = vmatpush1.bf16.msra.mxu0 %v3738
    %5004 = vmatprep.subr.bf16.mxu0 %v3755
    %5005 = vmatpush1.bf16.msra.mxu0 %v3754
    %5006 = vmatprep.subr.bf16.mxu0 %v3771
    %5007 = vmatpush1.bf16.msra.mxu0 %v3770
    %5008 = vmatprep.subr.bf16.mxu0 %v3787
    %5009 = vmatpush1.bf16.msra.mxu0 %v3786
    %5010 = vmatprep.subr.bf16.mxu0 %v3803
    %5011 = vmatpush1.bf16.msra.mxu0 %v3802
    %5012 = vmatprep.subr.bf16.mxu0 %v3819
    %5013 = vmatpush1.bf16.msra.mxu0 %v3818
    %5014 = vmatprep.subr.bf16.mxu0 %v3835
    %5015 = vmatpush1.bf16.msra.mxu0 %v3834
    %5016 = vmatprep.subr.bf16.mxu0 %v3851
    %5017 = vmatpush1.bf16.msra.mxu0 %v3850
    %5018 = vmatprep.subr.bf16.mxu0 %v3867
    %5019 = vmatpush1.bf16.msra.mxu0 %v3866
    %5020 = vmatprep.subr.bf16.mxu0 %v3883
    %5021 = vmatpush1.bf16.msra.mxu0 %v3882
    %5022 = vmatprep.subr.bf16.mxu0 %v3899
    %5023 = vmatpush1.bf16.msra.mxu0 %v3898
    %5024 = vmatprep.subr.bf16.mxu0 %v3915
    %5025 = vmatpush1.bf16.msra.mxu0 %v3914
    %5026 = vmatprep.subr.bf16.mxu0 %v3931
    %5027 = vmatpush1.bf16.msra.mxu0 %v3930
    %5028 = vmatprep.subr.bf16.mxu0 %v3947
    %5029 = vmatpush1.bf16.msra.mxu0 %v3946
    %5030 = vmatprep.subr.bf16.mxu0 %v3963
    %5031 = vmatpush1.bf16.msra.mxu0 %v3962
    %5032 = vmatprep.subr.bf16.mxu0 %v3979
    %5033 = vmatpush1.bf16.msra.mxu0 %v3978
    %5034 = vmatprep.mubr.bf16.mxu0 %v1597
    %5035 = vmatmul.mubr.bf16.gmra.mrb[0].mxu0 %v1596
    %v5036 = vpop.f32.mrb[0].mxu0
    %v5037 = vadd.f32 %v2143, %v5036
    %v5038 = vpop.f32.mrb[0].mxu0
    %v5039 = vadd.f32 %v2147, %v5038
    %v5040 = vpop.f32.mrb[0].mxu0
    %v5041 = vpop.f32.mrb[0].mxu0
    %5042 = vdwg.mxu0
    %5043 = vmatprep.subr.bf16.mxu0 %v3995
    %5044 = vmatpush1.bf16.msra.mxu0 %v3994
    %5045 = vmatprep.subr.bf16.mxu0 %v4011
    %5046 = vmatpush1.bf16.msra.mxu0 %v4010
    %5047 = vmatprep.subr.bf16.mxu0 %v4027
    %5048 = vmatpush1.bf16.msra.mxu0 %v4026
    %5049 = vmatprep.subr.bf16.mxu0 %v4043
    %5050 = vmatpush1.bf16.msra.mxu0 %v4042
    %5051 = vmatprep.subr.bf16.mxu0 %v4059
    %5052 = vmatpush1.bf16.msra.mxu0 %v4058
    %5053 = vmatprep.subr.bf16.mxu0 %v4075
    %5054 = vmatpush1.bf16.msra.mxu0 %v4074
    %5055 = vmatprep.subr.bf16.mxu0 %v4091
    %5056 = vmatpush1.bf16.msra.mxu0 %v4090
    %5057 = vmatprep.subr.bf16.mxu0 %v4107
    %5058 = vmatpush1.bf16.msra.mxu0 %v4106
    %5059 = vmatprep.subr.bf16.mxu0 %v4123
    %5060 = vmatpush1.bf16.msra.mxu0 %v4122
    %5061 = vmatprep.subr.bf16.mxu0 %v4139
    %5062 = vmatpush1.bf16.msra.mxu0 %v4138
    %5063 = vmatprep.subr.bf16.mxu0 %v4155
    %5064 = vmatpush1.bf16.msra.mxu0 %v4154
    %5065 = vmatprep.subr.bf16.mxu0 %v4171
    %5066 = vmatpush1.bf16.msra.mxu0 %v4170
    %5067 = vmatprep.subr.bf16.mxu0 %v4187
    %5068 = vmatpush1.bf16.msra.mxu0 %v4186
    %5069 = vmatprep.subr.bf16.mxu0 %v4203
    %5070 = vmatpush1.bf16.msra.mxu0 %v4202
    %5071 = vmatprep.subr.bf16.mxu0 %v4219
    %5072 = vmatpush1.bf16.msra.mxu0 %v4218
    %5073 = vmatprep.subr.bf16.mxu0 %v4235
    %5074 = vmatpush1.bf16.msra.mxu0 %v4234
    %5075 = vmatprep.mubr.bf16.mxu0 %v1599
    %5076 = vmatmul.mubr.bf16.gmra.mrb[0].mxu0 %v1598
    %v5077 = vpop.f32.mrb[0].mxu0
    %v5078 = vadd.f32 %v5037, %v5077
    %v5079 = vpop.f32.mrb[0].mxu0
    %v5080 = vadd.f32 %v5039, %v5079
    %v5081 = vpop.f32.mrb[0].mxu0
    %v5082 = vpop.f32.mrb[0].mxu0
    %5083 = vdwg.mxu0
    %5084 = vmatprep.subr.bf16.mxu0 %v3741
    %5085 = vmatpush1.bf16.msra.mxu0 %v3740
    %5086 = vmatprep.subr.bf16.mxu0 %v3757
    %5087 = vmatpush1.bf16.msra.mxu0 %v3756
    %5088 = vmatprep.subr.bf16.mxu0 %v3773
    %5089 = vmatpush1.bf16.msra.mxu0 %v3772
    %5090 = vmatprep.subr.bf16.mxu0 %v3789
    %5091 = vmatpush1.bf16.msra.mxu0 %v3788
    %5092 = vmatprep.subr.bf16.mxu0 %v3805
    %5093 = vmatpush1.bf16.msra.mxu0 %v3804
    %5094 = vmatprep.subr.bf16.mxu0 %v3821
    %5095 = vmatpush1.bf16.msra.mxu0 %v3820
    %5096 = vmatprep.subr.bf16.mxu0 %v3837
    %5097 = vmatpush1.bf16.msra.mxu0 %v3836
    %5098 = vmatprep.subr.bf16.mxu0 %v3853
    %5099 = vmatpush1.bf16.msra.mxu0 %v3852
    %5100 = vmatprep.subr.bf16.mxu0 %v3869
    %5101 = vmatpush1.bf16.msra.mxu0 %v3868
    %5102 = vmatprep.subr.bf16.mxu0 %v3885
    %5103 = vmatpush1.bf16.msra.mxu0 %v3884
    %5104 = vmatprep.subr.bf16.mxu0 %v3901
    %5105 = vmatpush1.bf16.msra.mxu0 %v3900
    %5106 = vmatprep.subr.bf16.mxu0 %v3917
    %5107 = vmatpush1.bf16.msra.mxu0 %v3916
    %5108 = vmatprep.subr.bf16.mxu0 %v3933
    %5109 = vmatpush1.bf16.msra.mxu0 %v3932
    %5110 = vmatprep.subr.bf16.mxu0 %v3949
    %5111 = vmatpush1.bf16.msra.mxu0 %v3948
    %5112 = vmatprep.subr.bf16.mxu0 %v3965
    %5113 = vmatpush1.bf16.msra.mxu0 %v3964
    %5114 = vmatprep.subr.bf16.mxu0 %v3981
    %5115 = vmatpush1.bf16.msra.mxu0 %v3980
    %5116 = vmatprep.mubr.bf16.mxu0 %v1597
    %5117 = vmatmul.mubr.bf16.gmra.mrb[0].mxu0 %v1596
    %v5118 = vpop.f32.mrb[0].mxu0
    %v5119 = vadd.f32 %v2151, %v5118
    %v5120 = vpop.f32.mrb[0].mxu0
    %v5121 = vadd.f32 %v2155, %v5120
    %v5122 = vpop.f32.mrb[0].mxu0
    %v5123 = vpop.f32.mrb[0].mxu0
    %5124 = vdwg.mxu0
    %5125 = vmatprep.subr.bf16.mxu0 %v3997
    %5126 = vmatpush1.bf16.msra.mxu0 %v3996
    %5127 = vmatprep.subr.bf16.mxu0 %v4013
    %5128 = vmatpush1.bf16.msra.mxu0 %v4012
    %5129 = vmatprep.subr.bf16.mxu0 %v4029
    %5130 = vmatpush1.bf16.msra.mxu0 %v4028
    %5131 = vmatprep.subr.bf16.mxu0 %v4045
    %5132 = vmatpush1.bf16.msra.mxu0 %v4044
    %5133 = vmatprep.subr.bf16.mxu0 %v4061
    %5134 = vmatpush1.bf16.msra.mxu0 %v4060
    %5135 = vmatprep.subr.bf16.mxu0 %v4077
    %5136 = vmatpush1.bf16.msra.mxu0 %v4076
    %5137 = vmatprep.subr.bf16.mxu0 %v4093
    %5138 = vmatpush1.bf16.msra.mxu0 %v4092
    %5139 = vmatprep.subr.bf16.mxu0 %v4109
    %5140 = vmatpush1.bf16.msra.mxu0 %v4108
    %5141 = vmatprep.subr.bf16.mxu0 %v4125
    %5142 = vmatpush1.bf16.msra.mxu0 %v4124
    %5143 = vmatprep.subr.bf16.mxu0 %v4141
    %5144 = vmatpush1.bf16.msra.mxu0 %v4140
    %5145 = vmatprep.subr.bf16.mxu0 %v4157
    %5146 = vmatpush1.bf16.msra.mxu0 %v4156
    %5147 = vmatprep.subr.bf16.mxu0 %v4173
    %5148 = vmatpush1.bf16.msra.mxu0 %v4172
    %5149 = vmatprep.subr.bf16.mxu0 %v4189
    %5150 = vmatpush1.bf16.msra.mxu0 %v4188
    %5151 = vmatprep.subr.bf16.mxu0 %v4205
    %5152 = vmatpush1.bf16.msra.mxu0 %v4204
    %5153 = vmatprep.subr.bf16.mxu0 %v4221
    %5154 = vmatpush1.bf16.msra.mxu0 %v4220
    %5155 = vmatprep.subr.bf16.mxu0 %v4237
    %5156 = vmatpush1.bf16.msra.mxu0 %v4236
    %5157 = vmatprep.mubr.bf16.mxu0 %v1599
    %5158 = vmatmul.mubr.bf16.gmra.mrb[0].mxu0 %v1598
    %v5159 = vpop.f32.mrb[0].mxu0
    %v5160 = vadd.f32 %v5119, %v5159
    %v5161 = vpop.f32.mrb[0].mxu0
    %v5162 = vadd.f32 %v5121, %v5161
    %v5163 = vpop.f32.mrb[0].mxu0
    %v5164 = vpop.f32.mrb[0].mxu0
    %5165 = vdwg.mxu0
    %5166 = vmatprep.subr.bf16.mxu0 %v3743
    %5167 = vmatpush1.bf16.msra.mxu0 %v3742
    %5168 = vmatprep.subr.bf16.mxu0 %v3759
    %5169 = vmatpush1.bf16.msra.mxu0 %v3758
    %5170 = vmatprep.subr.bf16.mxu0 %v3775
    %5171 = vmatpush1.bf16.msra.mxu0 %v3774
    %5172 = vmatprep.subr.bf16.mxu0 %v3791
    %5173 = vmatpush1.bf16.msra.mxu0 %v3790
    %5174 = vmatprep.subr.bf16.mxu0 %v3807
    %5175 = vmatpush1.bf16.msra.mxu0 %v3806
    %5176 = vmatprep.subr.bf16.mxu0 %v3823
    %5177 = vmatpush1.bf16.msra.mxu0 %v3822
    %5178 = vmatprep.subr.bf16.mxu0 %v3839
    %5179 = vmatpush1.bf16.msra.mxu0 %v3838
    %5180 = vmatprep.subr.bf16.mxu0 %v3855
    %5181 = vmatpush1.bf16.msra.mxu0 %v3854
    %5182 = vmatprep.subr.bf16.mxu0 %v3871
    %5183 = vmatpush1.bf16.msra.mxu0 %v3870
    %5184 = vmatprep.subr.bf16.mxu0 %v3887
    %5185 = vmatpush1.bf16.msra.mxu0 %v3886
    %5186 = vmatprep.subr.bf16.mxu0 %v3903
    %5187 = vmatpush1.bf16.msra.mxu0 %v3902
    %5188 = vmatprep.subr.bf16.mxu0 %v3919
    %5189 = vmatpush1.bf16.msra.mxu0 %v3918
    %5190 = vmatprep.subr.bf16.mxu0 %v3935
    %5191 = vmatpush1.bf16.msra.mxu0 %v3934
    %5192 = vmatprep.subr.bf16.mxu0 %v3951
    %5193 = vmatpush1.bf16.msra.mxu0 %v3950
    %5194 = vmatprep.subr.bf16.mxu0 %v3967
    %5195 = vmatpush1.bf16.msra.mxu0 %v3966
    %5196 = vmatprep.subr.bf16.mxu0 %v3983
    %5197 = vmatpush1.bf16.msra.mxu0 %v3982
    %5198 = vmatprep.mubr.bf16.mxu0 %v1597
    %5199 = vmatmul.mubr.bf16.gmra.mrb[0].mxu0 %v1596
    %v5200 = vpop.f32.mrb[0].mxu0
    %v5201 = vadd.f32 %v2159, %v5200
    %v5202 = vpop.f32.mrb[0].mxu0
    %v5203 = vadd.f32 %v2163, %v5202
    %v5204 = vpop.f32.mrb[0].mxu0
    %v5205 = vpop.f32.mrb[0].mxu0
    %5206 = vdwg.mxu0
    %5207 = vmatprep.subr.bf16.mxu0 %v3999
    %5208 = vmatpush1.bf16.msra.mxu0 %v3998
    %5209 = vmatprep.subr.bf16.mxu0 %v4015
    %5210 = vmatpush1.bf16.msra.mxu0 %v4014
    %5211 = vmatprep.subr.bf16.mxu0 %v4031
    %5212 = vmatpush1.bf16.msra.mxu0 %v4030
    %5213 = vmatprep.subr.bf16.mxu0 %v4047
    %5214 = vmatpush1.bf16.msra.mxu0 %v4046
    %5215 = vmatprep.subr.bf16.mxu0 %v4063
    %5216 = vmatpush1.bf16.msra.mxu0 %v4062
    %5217 = vmatprep.subr.bf16.mxu0 %v4079
    %5218 = vmatpush1.bf16.msra.mxu0 %v4078
    %5219 = vmatprep.subr.bf16.mxu0 %v4095
    %5220 = vmatpush1.bf16.msra.mxu0 %v4094
    %5221 = vmatprep.subr.bf16.mxu0 %v4111
    %5222 = vmatpush1.bf16.msra.mxu0 %v4110
    %5223 = vmatprep.subr.bf16.mxu0 %v4127
    %5224 = vmatpush1.bf16.msra.mxu0 %v4126
    %5225 = vmatprep.subr.bf16.mxu0 %v4143
    %5226 = vmatpush1.bf16.msra.mxu0 %v4142
    %5227 = vmatprep.subr.bf16.mxu0 %v4159
    %5228 = vmatpush1.bf16.msra.mxu0 %v4158
    %5229 = vmatprep.subr.bf16.mxu0 %v4175
    %5230 = vmatpush1.bf16.msra.mxu0 %v4174
    %5231 = vmatprep.subr.bf16.mxu0 %v4191
    %5232 = vmatpush1.bf16.msra.mxu0 %v4190
    %5233 = vmatprep.subr.bf16.mxu0 %v4207
    %5234 = vmatpush1.bf16.msra.mxu0 %v4206
    %5235 = vmatprep.subr.bf16.mxu0 %v4223
    %5236 = vmatpush1.bf16.msra.mxu0 %v4222
    %5237 = vmatprep.subr.bf16.mxu0 %v4239
    %5238 = vmatpush1.bf16.msra.mxu0 %v4238
    %5239 = vmatprep.mubr.bf16.mxu0 %v1599
    %5240 = vmatmul.mubr.bf16.gmra.mrb[0].mxu0 %v1598
    %v5241 = vpop.f32.mrb[0].mxu0
    %v5242 = vadd.f32 %v5201, %v5241
    %v5243 = vpop.f32.mrb[0].mxu0
    %v5244 = vadd.f32 %v5203, %v5243
    %v5245 = vpop.f32.mrb[0].mxu0
    %v5246 = vpop.f32.mrb[0].mxu0
    %5247 = vdwg.mxu0
    %5248 = vmatprep.subr.bf16.mxu0 %v3745
    %5249 = vmatpush1.bf16.msra.mxu0 %v3744
    %5250 = vmatprep.subr.bf16.mxu0 %v3761
    %5251 = vmatpush1.bf16.msra.mxu0 %v3760
    %5252 = vmatprep.subr.bf16.mxu0 %v3777
    %5253 = vmatpush1.bf16.msra.mxu0 %v3776
    %5254 = vmatprep.subr.bf16.mxu0 %v3793
    %5255 = vmatpush1.bf16.msra.mxu0 %v3792
    %5256 = vmatprep.subr.bf16.mxu0 %v3809
    %5257 = vmatpush1.bf16.msra.mxu0 %v3808
    %5258 = vmatprep.subr.bf16.mxu0 %v3825
    %5259 = vmatpush1.bf16.msra.mxu0 %v3824
    %5260 = vmatprep.subr.bf16.mxu0 %v3841
    %5261 = vmatpush1.bf16.msra.mxu0 %v3840
    %5262 = vmatprep.subr.bf16.mxu0 %v3857
    %5263 = vmatpush1.bf16.msra.mxu0 %v3856
    %5264 = vmatprep.subr.bf16.mxu0 %v3873
    %5265 = vmatpush1.bf16.msra.mxu0 %v3872
    %5266 = vmatprep.subr.bf16.mxu0 %v3889
    %5267 = vmatpush1.bf16.msra.mxu0 %v3888
    %5268 = vmatprep.subr.bf16.mxu0 %v3905
    %5269 = vmatpush1.bf16.msra.mxu0 %v3904
    %5270 = vmatprep.subr.bf16.mxu0 %v3921
    %5271 = vmatpush1.bf16.msra.mxu0 %v3920
    %5272 = vmatprep.subr.bf16.mxu0 %v3937
    %5273 = vmatpush1.bf16.msra.mxu0 %v3936
    %5274 = vmatprep.subr.bf16.mxu0 %v3953
    %5275 = vmatpush1.bf16.msra.mxu0 %v3952
    %5276 = vmatprep.subr.bf16.mxu0 %v3969
    %5277 = vmatpush1.bf16.msra.mxu0 %v3968
    %5278 = vmatprep.subr.bf16.mxu0 %v3985
    %5279 = vmatpush1.bf16.msra.mxu0 %v3984
    %5280 = vmatprep.mubr.bf16.mxu0 %v1597
    %5281 = vmatmul.mubr.bf16.gmra.mrb[0].mxu0 %v1596
    %v5282 = vpop.f32.mrb[0].mxu0
    %v5283 = vadd.f32 %v2167, %v5282
    %v5284 = vpop.f32.mrb[0].mxu0
    %v5285 = vadd.f32 %v2171, %v5284
    %v5286 = vpop.f32.mrb[0].mxu0
    %v5287 = vpop.f32.mrb[0].mxu0
    %5288 = vdwg.mxu0
    %5289 = vmatprep.subr.bf16.mxu0 %v4001
    %5290 = vmatpush1.bf16.msra.mxu0 %v4000
    %5291 = vmatprep.subr.bf16.mxu0 %v4017
    %5292 = vmatpush1.bf16.msra.mxu0 %v4016
    %5293 = vmatprep.subr.bf16.mxu0 %v4033
    %5294 = vmatpush1.bf16.msra.mxu0 %v4032
    %5295 = vmatprep.subr.bf16.mxu0 %v4049
    %5296 = vmatpush1.bf16.msra.mxu0 %v4048
    %5297 = vmatprep.subr.bf16.mxu0 %v4065
    %5298 = vmatpush1.bf16.msra.mxu0 %v4064
    %5299 = vmatprep.subr.bf16.mxu0 %v4081
    %5300 = vmatpush1.bf16.msra.mxu0 %v4080
    %5301 = vmatprep.subr.bf16.mxu0 %v4097
    %5302 = vmatpush1.bf16.msra.mxu0 %v4096
    %5303 = vmatprep.subr.bf16.mxu0 %v4113
    %5304 = vmatpush1.bf16.msra.mxu0 %v4112
    %5305 = vmatprep.subr.bf16.mxu0 %v4129
    %5306 = vmatpush1.bf16.msra.mxu0 %v4128
    %5307 = vmatprep.subr.bf16.mxu0 %v4145
    %5308 = vmatpush1.bf16.msra.mxu0 %v4144
    %5309 = vmatprep.subr.bf16.mxu0 %v4161
    %5310 = vmatpush1.bf16.msra.mxu0 %v4160
    %5311 = vmatprep.subr.bf16.mxu0 %v4177
    %5312 = vmatpush1.bf16.msra.mxu0 %v4176
    %5313 = vmatprep.subr.bf16.mxu0 %v4193
    %5314 = vmatpush1.bf16.msra.mxu0 %v4192
    %5315 = vmatprep.subr.bf16.mxu0 %v4209
    %5316 = vmatpush1.bf16.msra.mxu0 %v4208
    %5317 = vmatprep.subr.bf16.mxu0 %v4225
    %5318 = vmatpush1.bf16.msra.mxu0 %v4224
    %5319 = vmatprep.subr.bf16.mxu0 %v4241
    %5320 = vmatpush1.bf16.msra.mxu0 %v4240
    %5321 = vmatprep.mubr.bf16.mxu0 %v1599
    %5322 = vmatmul.mubr.bf16.gmra.mrb[0].mxu0 %v1598
    %v5323 = vpop.f32.mrb[0].mxu0
    %v5324 = vadd.f32 %v5283, %v5323
    %v5325 = vpop.f32.mrb[0].mxu0
    %v5326 = vadd.f32 %v5285, %v5325
    %v5327 = vpop.f32.mrb[0].mxu0
    %v5328 = vpop.f32.mrb[0].mxu0
    %5329 = vdwg.mxu0
    %5330 = vmatprep.subr.bf16.mxu0 %v3747
    %5331 = vmatpush1.bf16.msra.mxu0 %v3746
    %5332 = vmatprep.subr.bf16.mxu0 %v3763
    %5333 = vmatpush1.bf16.msra.mxu0 %v3762
    %5334 = vmatprep.subr.bf16.mxu0 %v3779
    %5335 = vmatpush1.bf16.msra.mxu0 %v3778
    %5336 = vmatprep.subr.bf16.mxu0 %v3795
    %5337 = vmatpush1.bf16.msra.mxu0 %v3794
    %5338 = vmatprep.subr.bf16.mxu0 %v3811
    %5339 = vmatpush1.bf16.msra.mxu0 %v3810
    %5340 = vmatprep.subr.bf16.mxu0 %v3827
    %5341 = vmatpush1.bf16.msra.mxu0 %v3826
    %5342 = vmatprep.subr.bf16.mxu0 %v3843
    %5343 = vmatpush1.bf16.msra.mxu0 %v3842
    %5344 = vmatprep.subr.bf16.mxu0 %v3859
    %5345 = vmatpush1.bf16.msra.mxu0 %v3858
    %5346 = vmatprep.subr.bf16.mxu0 %v3875
    %5347 = vmatpush1.bf16.msra.mxu0 %v3874
    %5348 = vmatprep.subr.bf16.mxu0 %v3891
    %5349 = vmatpush1.bf16.msra.mxu0 %v3890
    %5350 = vmatprep.subr.bf16.mxu0 %v3907
    %5351 = vmatpush1.bf16.msra.mxu0 %v3906
    %5352 = vmatprep.subr.bf16.mxu0 %v3923
    %5353 = vmatpush1.bf16.msra.mxu0 %v3922
    %5354 = vmatprep.subr.bf16.mxu0 %v3939
    %5355 = vmatpush1.bf16.msra.mxu0 %v3938
    %5356 = vmatprep.subr.bf16.mxu0 %v3955
    %5357 = vmatpush1.bf16.msra.mxu0 %v3954
    %5358 = vmatprep.subr.bf16.mxu0 %v3971
    %5359 = vmatpush1.bf16.msra.mxu0 %v3970
    %5360 = vmatprep.subr.bf16.mxu0 %v3987
    %5361 = vmatpush1.bf16.msra.mxu0 %v3986
    %5362 = vmatprep.mubr.bf16.mxu0 %v1597
    %5363 = vmatmul.mubr.bf16.gmra.mrb[0].mxu0 %v1596
    %v5364 = vpop.f32.mrb[0].mxu0
    %v5365 = vadd.f32 %v2175, %v5364
    %v5366 = vpop.f32.mrb[0].mxu0
    %v5367 = vadd.f32 %v2179, %v5366
    %v5368 = vpop.f32.mrb[0].mxu0
    %v5369 = vpop.f32.mrb[0].mxu0
    %5370 = vdwg.mxu0
    %5371 = vmatprep.subr.bf16.mxu0 %v4003
    %5372 = vmatpush1.bf16.msra.mxu0 %v4002
    %5373 = vmatprep.subr.bf16.mxu0 %v4019
    %5374 = vmatpush1.bf16.msra.mxu0 %v4018
    %5375 = vmatprep.subr.bf16.mxu0 %v4035
    %5376 = vmatpush1.bf16.msra.mxu0 %v4034
    %5377 = vmatprep.subr.bf16.mxu0 %v4051
    %5378 = vmatpush1.bf16.msra.mxu0 %v4050
    %5379 = vmatprep.subr.bf16.mxu0 %v4067
    %5380 = vmatpush1.bf16.msra.mxu0 %v4066
    %5381 = vmatprep.subr.bf16.mxu0 %v4083
    %5382 = vmatpush1.bf16.msra.mxu0 %v4082
    %5383 = vmatprep.subr.bf16.mxu0 %v4099
    %5384 = vmatpush1.bf16.msra.mxu0 %v4098
    %5385 = vmatprep.subr.bf16.mxu0 %v4115
    %5386 = vmatpush1.bf16.msra.mxu0 %v4114
    %5387 = vmatprep.subr.bf16.mxu0 %v4131
    %5388 = vmatpush1.bf16.msra.mxu0 %v4130
    %5389 = vmatprep.subr.bf16.mxu0 %v4147
    %5390 = vmatpush1.bf16.msra.mxu0 %v4146
    %5391 = vmatprep.subr.bf16.mxu0 %v4163
    %5392 = vmatpush1.bf16.msra.mxu0 %v4162
    %5393 = vmatprep.subr.bf16.mxu0 %v4179
    %5394 = vmatpush1.bf16.msra.mxu0 %v4178
    %5395 = vmatprep.subr.bf16.mxu0 %v4195
    %5396 = vmatpush1.bf16.msra.mxu0 %v4194
    %5397 = vmatprep.subr.bf16.mxu0 %v4211
    %5398 = vmatpush1.bf16.msra.mxu0 %v4210
    %5399 = vmatprep.subr.bf16.mxu0 %v4227
    %5400 = vmatpush1.bf16.msra.mxu0 %v4226
    %5401 = vmatprep.subr.bf16.mxu0 %v4243
    %5402 = vmatpush1.bf16.msra.mxu0 %v4242
    %5403 = vmatprep.mubr.bf16.mxu0 %v1599
    %5404 = vmatmul.mubr.bf16.gmra.mrb[0].mxu0 %v1598
    %v5405 = vpop.f32.mrb[0].mxu0
    %v5406 = vadd.f32 %v5365, %v5405
    %v5407 = vpop.f32.mrb[0].mxu0
    %v5408 = vadd.f32 %v5367, %v5407
    %v5409 = vpop.f32.mrb[0].mxu0
    %v5410 = vpop.f32.mrb[0].mxu0
    %5411 = vdwg.mxu0
    %v5412 = vmax.f32 %v4832, 0.0
    %v5413 = vmax.f32 %v4834, 0.0
    %v5414 = vmax.f32 %v4914, 0.0
    %v5415 = vmax.f32 %v4916, 0.0
    %v5416 = vmax.f32 %v4996, 0.0
    %v5417 = vmax.f32 %v4998, 0.0
    %v5418 = vmax.f32 %v5078, 0.0
    %v5419 = vmax.f32 %v5080, 0.0
    %v5420 = vmax.f32 %v5160, 0.0
    %v5421 = vmax.f32 %v5162, 0.0
    %v5422 = vmax.f32 %v5242, 0.0
    %v5423 = vmax.f32 %v5244, 0.0
    %v5424 = vmax.f32 %v5324, 0.0
    %v5425 = vmax.f32 %v5326, 0.0
    %v5426 = vmax.f32 %v5406, 0.0
    %v5427 = vmax.f32 %v5408, 0.0
    %v5428 = vpack.c.bf16 %v5412, %v5412
    %v5429 = vpack.c.bf16 %v5413, %v5413
    %v5430 = vpack.c.bf16 %v5414, %v5414
    %v5431 = vpack.c.bf16 %v5415, %v5415
    %v5432 = vpack.c.bf16 %v5416, %v5416
    %v5433 = vpack.c.bf16 %v5417, %v5417
    %v5434 = vpack.c.bf16 %v5418, %v5418
    %v5435 = vpack.c.bf16 %v5419, %v5419
    %v5436 = vpack.c.bf16 %v5420, %v5420
    %v5437 = vpack.c.bf16 %v5421, %v5421
    %v5438 = vpack.c.bf16 %v5422, %v5422
    %v5439 = vpack.c.bf16 %v5423, %v5423
    %v5440 = vpack.c.bf16 %v5424, %v5424
    %v5441 = vpack.c.bf16 %v5425, %v5425
    %v5442 = vpack.c.bf16 %v5426, %v5426
    %v5443 = vpack.c.bf16 %v5427, %v5427
    %v5444 = vld [vmem:[#allocation12] sm:$0xf]
    %v5445 = vld [vmem:[#allocation12 + $0x4] sm:$0xf]
    %v5446 = vld [vmem:[#allocation12 + $0x8] sm:$0xf]
    %v5447 = vld [vmem:[#allocation12 + $0xc] sm:$0xf]
    %v5448 = vld [vmem:[#allocation12 + $0x10] sm:$0xf]
    %v5449 = vld [vmem:[#allocation12 + $0x14] sm:$0xf]
    %v5450 = vld [vmem:[#allocation12 + $0x18] sm:$0xf]
    %v5451 = vld [vmem:[#allocation12 + $0x1c] sm:$0xf]
    %v5452 = vld [vmem:[#allocation12 + $0x20] sm:$0xf]
    %v5453 = vld [vmem:[#allocation12 + $0x24] sm:$0xf]
    %v5454 = vld [vmem:[#allocation12 + $0x28] sm:$0xf]
    %v5455 = vld [vmem:[#allocation12 + $0x2c] sm:$0xf]
    %v5456 = vld [vmem:[#allocation12 + $0x30] sm:$0xf]
    %v5457 = vld [vmem:[#allocation12 + $0x34] sm:$0xf]
    %v5458 = vld [vmem:[#allocation12 + $0x38] sm:$0xf]
    %v5459 = vld [vmem:[#allocation12 + $0x3c] sm:$0xf]
    %v5460 = vld [vmem:[#allocation12 + $0x40] sm:$0xf]
    %v5461 = vld [vmem:[#allocation12 + $0x44] sm:$0xf]
    %v5462 = vld [vmem:[#allocation12 + $0x48] sm:$0xf]
    %v5463 = vld [vmem:[#allocation12 + $0x4c] sm:$0xf]
    %v5464 = vld [vmem:[#allocation12 + $0x50] sm:$0xf]
    %v5465 = vld [vmem:[#allocation12 + $0x54] sm:$0xf]
    %v5466 = vld [vmem:[#allocation12 + $0x58] sm:$0xf]
    %v5467 = vld [vmem:[#allocation12 + $0x5c] sm:$0xf]
    %v5468 = vld [vmem:[#allocation12 + $0x60] sm:$0xf]
    %v5469 = vld [vmem:[#allocation12 + $0x64] sm:$0xf]
    %v5470 = vld [vmem:[#allocation12 + $0x68] sm:$0xf]
    %v5471 = vld [vmem:[#allocation12 + $0x6c] sm:$0xf]
    %v5472 = vld [vmem:[#allocation12 + $0x70] sm:$0xf]
    %v5473 = vld [vmem:[#allocation12 + $0x74] sm:$0xf]
    %v5474 = vld [vmem:[#allocation12 + $0x78] sm:$0xf]
    %v5475 = vld [vmem:[#allocation12 + $0x7c] sm:$0xf]
    %v5476 = vld [vmem:[#allocation12 + $0x80] sm:$0xf]
    %v5477 = vld [vmem:[#allocation12 + $0x84] sm:$0xf]
    %v5478 = vld [vmem:[#allocation12 + $0x88] sm:$0xf]
    %v5479 = vld [vmem:[#allocation12 + $0x8c] sm:$0xf]
    %v5480 = vld [vmem:[#allocation12 + $0x90] sm:$0xf]
    %v5481 = vld [vmem:[#allocation12 + $0x94] sm:$0xf]
    %v5482 = vld [vmem:[#allocation12 + $0x98] sm:$0xf]
    %v5483 = vld [vmem:[#allocation12 + $0x9c] sm:$0xf]
    %v5484 = vld [vmem:[#allocation12 + $0xa0] sm:$0xf]
    %v5485 = vld [vmem:[#allocation12 + $0xa4] sm:$0xf]
    %v5486 = vld [vmem:[#allocation12 + $0xa8] sm:$0xf]
    %v5487 = vld [vmem:[#allocation12 + $0xac] sm:$0xf]
    %v5488 = vld [vmem:[#allocation12 + $0xb0] sm:$0xf]
    %v5489 = vld [vmem:[#allocation12 + $0xb4] sm:$0xf]
    %v5490 = vld [vmem:[#allocation12 + $0xb8] sm:$0xf]
    %v5491 = vld [vmem:[#allocation12 + $0xbc] sm:$0xf]
    %v5492 = vld [vmem:[#allocation12 + $0xc0] sm:$0xf]
    %v5493 = vld [vmem:[#allocation12 + $0xc4] sm:$0xf]
    %v5494 = vld [vmem:[#allocation12 + $0xc8] sm:$0xf]
    %v5495 = vld [vmem:[#allocation12 + $0xcc] sm:$0xf]
    %v5496 = vld [vmem:[#allocation12 + $0xd0] sm:$0xf]
    %v5497 = vld [vmem:[#allocation12 + $0xd4] sm:$0xf]
    %v5498 = vld [vmem:[#allocation12 + $0xd8] sm:$0xf]
    %v5499 = vld [vmem:[#allocation12 + $0xdc] sm:$0xf]
    %v5500 = vld [vmem:[#allocation12 + $0xe0] sm:$0xf]
    %v5501 = vld [vmem:[#allocation12 + $0xe4] sm:$0xf]
    %v5502 = vld [vmem:[#allocation12 + $0xe8] sm:$0xf]
    %v5503 = vld [vmem:[#allocation12 + $0xec] sm:$0xf]
    %v5504 = vld [vmem:[#allocation12 + $0xf0] sm:$0xf]
    %v5505 = vld [vmem:[#allocation12 + $0xf4] sm:$0xf]
    %v5506 = vld [vmem:[#allocation12 + $0xf8] sm:$0xf]
    %v5507 = vld [vmem:[#allocation12 + $0xfc] sm:$0xf]
    %v5508 = vld [vmem:[#allocation12 + $0x100] sm:$0xf]
    %v5509 = vld [vmem:[#allocation12 + $0x104] sm:$0xf]
    %v5510 = vld [vmem:[#allocation12 + $0x108] sm:$0xf]
    %v5511 = vld [vmem:[#allocation12 + $0x10c] sm:$0xf]
    %v5512 = vld [vmem:[#allocation12 + $0x110] sm:$0xf]
    %v5513 = vld [vmem:[#allocation12 + $0x114] sm:$0xf]
    %v5514 = vld [vmem:[#allocation12 + $0x118] sm:$0xf]
    %v5515 = vld [vmem:[#allocation12 + $0x11c] sm:$0xf]
    %v5516 = vld [vmem:[#allocation12 + $0x120] sm:$0xf]
    %v5517 = vld [vmem:[#allocation12 + $0x124] sm:$0xf]
    %v5518 = vld [vmem:[#allocation12 + $0x128] sm:$0xf]
    %v5519 = vld [vmem:[#allocation12 + $0x12c] sm:$0xf]
    %v5520 = vld [vmem:[#allocation12 + $0x130] sm:$0xf]
    %v5521 = vld [vmem:[#allocation12 + $0x134] sm:$0xf]
    %v5522 = vld [vmem:[#allocation12 + $0x138] sm:$0xf]
    %v5523 = vld [vmem:[#allocation12 + $0x13c] sm:$0xf]
    %v5524 = vld [vmem:[#allocation12 + $0x140] sm:$0xf]
    %v5525 = vld [vmem:[#allocation12 + $0x144] sm:$0xf]
    %v5526 = vld [vmem:[#allocation12 + $0x148] sm:$0xf]
    %v5527 = vld [vmem:[#allocation12 + $0x14c] sm:$0xf]
    %v5528 = vld [vmem:[#allocation12 + $0x150] sm:$0xf]
    %v5529 = vld [vmem:[#allocation12 + $0x154] sm:$0xf]
    %v5530 = vld [vmem:[#allocation12 + $0x158] sm:$0xf]
    %v5531 = vld [vmem:[#allocation12 + $0x15c] sm:$0xf]
    %v5532 = vld [vmem:[#allocation12 + $0x160] sm:$0xf]
    %v5533 = vld [vmem:[#allocation12 + $0x164] sm:$0xf]
    %v5534 = vld [vmem:[#allocation12 + $0x168] sm:$0xf]
    %v5535 = vld [vmem:[#allocation12 + $0x16c] sm:$0xf]
    %v5536 = vld [vmem:[#allocation12 + $0x170] sm:$0xf]
    %v5537 = vld [vmem:[#allocation12 + $0x174] sm:$0xf]
    %v5538 = vld [vmem:[#allocation12 + $0x178] sm:$0xf]
    %v5539 = vld [vmem:[#allocation12 + $0x17c] sm:$0xf]
    %v5540 = vld [vmem:[#allocation12 + $0x180] sm:$0xf]
    %v5541 = vld [vmem:[#allocation12 + $0x184] sm:$0xf]
    %v5542 = vld [vmem:[#allocation12 + $0x188] sm:$0xf]
    %v5543 = vld [vmem:[#allocation12 + $0x18c] sm:$0xf]
    %v5544 = vld [vmem:[#allocation12 + $0x190] sm:$0xf]
    %v5545 = vld [vmem:[#allocation12 + $0x194] sm:$0xf]
    %v5546 = vld [vmem:[#allocation12 + $0x198] sm:$0xf]
    %v5547 = vld [vmem:[#allocation12 + $0x19c] sm:$0xf]
    %v5548 = vld [vmem:[#allocation12 + $0x1a0] sm:$0xf]
    %v5549 = vld [vmem:[#allocation12 + $0x1a4] sm:$0xf]
    %v5550 = vld [vmem:[#allocation12 + $0x1a8] sm:$0xf]
    %v5551 = vld [vmem:[#allocation12 + $0x1ac] sm:$0xf]
    %v5552 = vld [vmem:[#allocation12 + $0x1b0] sm:$0xf]
    %v5553 = vld [vmem:[#allocation12 + $0x1b4] sm:$0xf]
    %v5554 = vld [vmem:[#allocation12 + $0x1b8] sm:$0xf]
    %v5555 = vld [vmem:[#allocation12 + $0x1bc] sm:$0xf]
    %v5556 = vld [vmem:[#allocation12 + $0x1c0] sm:$0xf]
    %v5557 = vld [vmem:[#allocation12 + $0x1c4] sm:$0xf]
    %v5558 = vld [vmem:[#allocation12 + $0x1c8] sm:$0xf]
    %v5559 = vld [vmem:[#allocation12 + $0x1cc] sm:$0xf]
    %v5560 = vld [vmem:[#allocation12 + $0x1d0] sm:$0xf]
    %v5561 = vld [vmem:[#allocation12 + $0x1d4] sm:$0xf]
    %v5562 = vld [vmem:[#allocation12 + $0x1d8] sm:$0xf]
    %v5563 = vld [vmem:[#allocation12 + $0x1dc] sm:$0xf]
    %v5564 = vld [vmem:[#allocation12 + $0x1e0] sm:$0xf]
    %v5565 = vld [vmem:[#allocation12 + $0x1e4] sm:$0xf]
    %v5566 = vld [vmem:[#allocation12 + $0x1e8] sm:$0xf]
    %v5567 = vld [vmem:[#allocation12 + $0x1ec] sm:$0xf]
    %v5568 = vld [vmem:[#allocation12 + $0x1f0] sm:$0xf]
    %v5569 = vld [vmem:[#allocation12 + $0x1f4] sm:$0xf]
    %v5570 = vld [vmem:[#allocation12 + $0x1f8] sm:$0xf]
    %v5571 = vld [vmem:[#allocation12 + $0x1fc] sm:$0xf]
    %v5572 = vld [vmem:[#allocation12 + $0x200] sm:$0xf]
    %v5573 = vld [vmem:[#allocation12 + $0x204] sm:$0xf]
    %v5574 = vld [vmem:[#allocation12 + $0x208] sm:$0xf]
    %v5575 = vld [vmem:[#allocation12 + $0x20c] sm:$0xf]
    %v5576 = vld [vmem:[#allocation12 + $0x210] sm:$0xf]
    %v5577 = vld [vmem:[#allocation12 + $0x214] sm:$0xf]
    %v5578 = vld [vmem:[#allocation12 + $0x218] sm:$0xf]
    %v5579 = vld [vmem:[#allocation12 + $0x21c] sm:$0xf]
    %v5580 = vld [vmem:[#allocation12 + $0x220] sm:$0xf]
    %v5581 = vld [vmem:[#allocation12 + $0x224] sm:$0xf]
    %v5582 = vld [vmem:[#allocation12 + $0x228] sm:$0xf]
    %v5583 = vld [vmem:[#allocation12 + $0x22c] sm:$0xf]
    %v5584 = vld [vmem:[#allocation12 + $0x230] sm:$0xf]
    %v5585 = vld [vmem:[#allocation12 + $0x234] sm:$0xf]
    %v5586 = vld [vmem:[#allocation12 + $0x238] sm:$0xf]
    %v5587 = vld [vmem:[#allocation12 + $0x23c] sm:$0xf]
    %v5588 = vld [vmem:[#allocation12 + $0x240] sm:$0xf]
    %v5589 = vld [vmem:[#allocation12 + $0x244] sm:$0xf]
    %v5590 = vld [vmem:[#allocation12 + $0x248] sm:$0xf]
    %v5591 = vld [vmem:[#allocation12 + $0x24c] sm:$0xf]
    %v5592 = vld [vmem:[#allocation12 + $0x250] sm:$0xf]
    %v5593 = vld [vmem:[#allocation12 + $0x254] sm:$0xf]
    %v5594 = vld [vmem:[#allocation12 + $0x258] sm:$0xf]
    %v5595 = vld [vmem:[#allocation12 + $0x25c] sm:$0xf]
    %v5596 = vld [vmem:[#allocation12 + $0x260] sm:$0xf]
    %v5597 = vld [vmem:[#allocation12 + $0x264] sm:$0xf]
    %v5598 = vld [vmem:[#allocation12 + $0x268] sm:$0xf]
    %v5599 = vld [vmem:[#allocation12 + $0x26c] sm:$0xf]
    %v5600 = vld [vmem:[#allocation12 + $0x270] sm:$0xf]
    %v5601 = vld [vmem:[#allocation12 + $0x274] sm:$0xf]
    %v5602 = vld [vmem:[#allocation12 + $0x278] sm:$0xf]
    %v5603 = vld [vmem:[#allocation12 + $0x27c] sm:$0xf]
    %v5604 = vld [vmem:[#allocation12 + $0x280] sm:$0xf]
    %v5605 = vld [vmem:[#allocation12 + $0x284] sm:$0xf]
    %v5606 = vld [vmem:[#allocation12 + $0x288] sm:$0xf]
    %v5607 = vld [vmem:[#allocation12 + $0x28c] sm:$0xf]
    %v5608 = vld [vmem:[#allocation12 + $0x290] sm:$0xf]
    %v5609 = vld [vmem:[#allocation12 + $0x294] sm:$0xf]
    %v5610 = vld [vmem:[#allocation12 + $0x298] sm:$0xf]
    %v5611 = vld [vmem:[#allocation12 + $0x29c] sm:$0xf]
    %v5612 = vld [vmem:[#allocation12 + $0x2a0] sm:$0xf]
    %v5613 = vld [vmem:[#allocation12 + $0x2a4] sm:$0xf]
    %v5614 = vld [vmem:[#allocation12 + $0x2a8] sm:$0xf]
    %v5615 = vld [vmem:[#allocation12 + $0x2ac] sm:$0xf]
    %v5616 = vld [vmem:[#allocation12 + $0x2b0] sm:$0xf]
    %v5617 = vld [vmem:[#allocation12 + $0x2b4] sm:$0xf]
    %v5618 = vld [vmem:[#allocation12 + $0x2b8] sm:$0xf]
    %v5619 = vld [vmem:[#allocation12 + $0x2bc] sm:$0xf]
    %v5620 = vld [vmem:[#allocation12 + $0x2c0] sm:$0xf]
    %v5621 = vld [vmem:[#allocation12 + $0x2c4] sm:$0xf]
    %v5622 = vld [vmem:[#allocation12 + $0x2c8] sm:$0xf]
    %v5623 = vld [vmem:[#allocation12 + $0x2cc] sm:$0xf]
    %v5624 = vld [vmem:[#allocation12 + $0x2d0] sm:$0xf]
    %v5625 = vld [vmem:[#allocation12 + $0x2d4] sm:$0xf]
    %v5626 = vld [vmem:[#allocation12 + $0x2d8] sm:$0xf]
    %v5627 = vld [vmem:[#allocation12 + $0x2dc] sm:$0xf]
    %v5628 = vld [vmem:[#allocation12 + $0x2e0] sm:$0xf]
    %v5629 = vld [vmem:[#allocation12 + $0x2e4] sm:$0xf]
    %v5630 = vld [vmem:[#allocation12 + $0x2e8] sm:$0xf]
    %v5631 = vld [vmem:[#allocation12 + $0x2ec] sm:$0xf]
    %v5632 = vld [vmem:[#allocation12 + $0x2f0] sm:$0xf]
    %v5633 = vld [vmem:[#allocation12 + $0x2f4] sm:$0xf]
    %v5634 = vld [vmem:[#allocation12 + $0x2f8] sm:$0xf]
    %v5635 = vld [vmem:[#allocation12 + $0x2fc] sm:$0xf]
    %v5636 = vld [vmem:[#allocation12 + $0x300] sm:$0xf]
    %v5637 = vld [vmem:[#allocation12 + $0x304] sm:$0xf]
    %v5638 = vld [vmem:[#allocation12 + $0x308] sm:$0xf]
    %v5639 = vld [vmem:[#allocation12 + $0x30c] sm:$0xf]
    %v5640 = vld [vmem:[#allocation12 + $0x310] sm:$0xf]
    %v5641 = vld [vmem:[#allocation12 + $0x314] sm:$0xf]
    %v5642 = vld [vmem:[#allocation12 + $0x318] sm:$0xf]
    %v5643 = vld [vmem:[#allocation12 + $0x31c] sm:$0xf]
    %v5644 = vld [vmem:[#allocation12 + $0x320] sm:$0xf]
    %v5645 = vld [vmem:[#allocation12 + $0x324] sm:$0xf]
    %v5646 = vld [vmem:[#allocation12 + $0x328] sm:$0xf]
    %v5647 = vld [vmem:[#allocation12 + $0x32c] sm:$0xf]
    %v5648 = vld [vmem:[#allocation12 + $0x330] sm:$0xf]
    %v5649 = vld [vmem:[#allocation12 + $0x334] sm:$0xf]
    %v5650 = vld [vmem:[#allocation12 + $0x338] sm:$0xf]
    %v5651 = vld [vmem:[#allocation12 + $0x33c] sm:$0xf]
    %v5652 = vld [vmem:[#allocation12 + $0x340] sm:$0xf]
    %v5653 = vld [vmem:[#allocation12 + $0x344] sm:$0xf]
    %v5654 = vld [vmem:[#allocation12 + $0x348] sm:$0xf]
    %v5655 = vld [vmem:[#allocation12 + $0x34c] sm:$0xf]
    %v5656 = vld [vmem:[#allocation12 + $0x350] sm:$0xf]
    %v5657 = vld [vmem:[#allocation12 + $0x354] sm:$0xf]
    %v5658 = vld [vmem:[#allocation12 + $0x358] sm:$0xf]
    %v5659 = vld [vmem:[#allocation12 + $0x35c] sm:$0xf]
    %v5660 = vld [vmem:[#allocation12 + $0x360] sm:$0xf]
    %v5661 = vld [vmem:[#allocation12 + $0x364] sm:$0xf]
    %v5662 = vld [vmem:[#allocation12 + $0x368] sm:$0xf]
    %v5663 = vld [vmem:[#allocation12 + $0x36c] sm:$0xf]
    %v5664 = vld [vmem:[#allocation12 + $0x370] sm:$0xf]
    %v5665 = vld [vmem:[#allocation12 + $0x374] sm:$0xf]
    %v5666 = vld [vmem:[#allocation12 + $0x378] sm:$0xf]
    %v5667 = vld [vmem:[#allocation12 + $0x37c] sm:$0xf]
    %v5668 = vld [vmem:[#allocation12 + $0x380] sm:$0xf]
    %v5669 = vld [vmem:[#allocation12 + $0x384] sm:$0xf]
    %v5670 = vld [vmem:[#allocation12 + $0x388] sm:$0xf]
    %v5671 = vld [vmem:[#allocation12 + $0x38c] sm:$0xf]
    %v5672 = vld [vmem:[#allocation12 + $0x390] sm:$0xf]
    %v5673 = vld [vmem:[#allocation12 + $0x394] sm:$0xf]
    %v5674 = vld [vmem:[#allocation12 + $0x398] sm:$0xf]
    %v5675 = vld [vmem:[#allocation12 + $0x39c] sm:$0xf]
    %v5676 = vld [vmem:[#allocation12 + $0x3a0] sm:$0xf]
    %v5677 = vld [vmem:[#allocation12 + $0x3a4] sm:$0xf]
    %v5678 = vld [vmem:[#allocation12 + $0x3a8] sm:$0xf]
    %v5679 = vld [vmem:[#allocation12 + $0x3ac] sm:$0xf]
    %v5680 = vld [vmem:[#allocation12 + $0x3b0] sm:$0xf]
    %v5681 = vld [vmem:[#allocation12 + $0x3b4] sm:$0xf]
    %v5682 = vld [vmem:[#allocation12 + $0x3b8] sm:$0xf]
    %v5683 = vld [vmem:[#allocation12 + $0x3bc] sm:$0xf]
    %v5684 = vld [vmem:[#allocation12 + $0x3c0] sm:$0xf]
    %v5685 = vld [vmem:[#allocation12 + $0x3c4] sm:$0xf]
    %v5686 = vld [vmem:[#allocation12 + $0x3c8] sm:$0xf]
    %v5687 = vld [vmem:[#allocation12 + $0x3cc] sm:$0xf]
    %v5688 = vld [vmem:[#allocation12 + $0x3d0] sm:$0xf]
    %v5689 = vld [vmem:[#allocation12 + $0x3d4] sm:$0xf]
    %v5690 = vld [vmem:[#allocation12 + $0x3d8] sm:$0xf]
    %v5691 = vld [vmem:[#allocation12 + $0x3dc] sm:$0xf]
    %v5692 = vld [vmem:[#allocation12 + $0x3e0] sm:$0xf]
    %v5693 = vld [vmem:[#allocation12 + $0x3e4] sm:$0xf]
    %v5694 = vld [vmem:[#allocation12 + $0x3e8] sm:$0xf]
    %v5695 = vld [vmem:[#allocation12 + $0x3ec] sm:$0xf]
    %v5696 = vld [vmem:[#allocation12 + $0x3f0] sm:$0xf]
    %v5697 = vld [vmem:[#allocation12 + $0x3f4] sm:$0xf]
    %v5698 = vld [vmem:[#allocation12 + $0x3f8] sm:$0xf]
    %v5699 = vld [vmem:[#allocation12 + $0x3fc] sm:$0xf]
    %v5700 = vld [vmem:[#allocation13] sm:$0x1]
    %v5702 = vlaneseq
    %v5703 = vshrl.u32 %v5702, 7
    %v5704 = vsub.s32 0, %v5703
    %v5705 = vrot.slane %v5700, %v5704
    %v5963 = vunpack.c.l.b16 %v5444
    %v5964 = vunpack.c.l.b16 %v5445
    %v5965 = vunpack.c.l.b16 %v5446
    %v5966 = vunpack.c.l.b16 %v5447
    %v5967 = vunpack.c.l.b16 %v5448
    %v5968 = vunpack.c.l.b16 %v5449
    %v5969 = vunpack.c.l.b16 %v5450
    %v5970 = vunpack.c.l.b16 %v5451
    %v5971 = vunpack.c.l.b16 %v5452
    %v5972 = vunpack.c.l.b16 %v5453
    %v5973 = vunpack.c.l.b16 %v5454
    %v5974 = vunpack.c.l.b16 %v5455
    %v5975 = vunpack.c.l.b16 %v5456
    %v5976 = vunpack.c.l.b16 %v5457
    %v5977 = vunpack.c.l.b16 %v5458
    %v5978 = vunpack.c.l.b16 %v5459
    %v5979 = vunpack.c.l.b16 %v5460
    %v5980 = vunpack.c.l.b16 %v5461
    %v5981 = vunpack.c.l.b16 %v5462
    %v5982 = vunpack.c.l.b16 %v5463
    %v5983 = vunpack.c.l.b16 %v5464
    %v5984 = vunpack.c.l.b16 %v5465
    %v5985 = vunpack.c.l.b16 %v5466
    %v5986 = vunpack.c.l.b16 %v5467
    %v5987 = vunpack.c.l.b16 %v5468
    %v5988 = vunpack.c.l.b16 %v5469
    %v5989 = vunpack.c.l.b16 %v5470
    %v5990 = vunpack.c.l.b16 %v5471
    %v5991 = vunpack.c.l.b16 %v5472
    %v5992 = vunpack.c.l.b16 %v5473
    %v5993 = vunpack.c.l.b16 %v5474
    %v5994 = vunpack.c.l.b16 %v5475
    %v5995 = vunpack.c.l.b16 %v5476
    %v5996 = vunpack.c.l.b16 %v5477
    %v5997 = vunpack.c.l.b16 %v5478
    %v5998 = vunpack.c.l.b16 %v5479
    %v5999 = vunpack.c.l.b16 %v5480
    %v6000 = vunpack.c.l.b16 %v5481
    %v6001 = vunpack.c.l.b16 %v5482
    %v6002 = vunpack.c.l.b16 %v5483
    %v6003 = vunpack.c.l.b16 %v5484
    %v6004 = vunpack.c.l.b16 %v5485
    %v6005 = vunpack.c.l.b16 %v5486
    %v6006 = vunpack.c.l.b16 %v5487
    %v6007 = vunpack.c.l.b16 %v5488
    %v6008 = vunpack.c.l.b16 %v5489
    %v6009 = vunpack.c.l.b16 %v5490
    %v6010 = vunpack.c.l.b16 %v5491
    %v6011 = vunpack.c.l.b16 %v5492
    %v6012 = vunpack.c.l.b16 %v5493
    %v6013 = vunpack.c.l.b16 %v5494
    %v6014 = vunpack.c.l.b16 %v5495
    %v6015 = vunpack.c.l.b16 %v5496
    %v6016 = vunpack.c.l.b16 %v5497
    %v6017 = vunpack.c.l.b16 %v5498
    %v6018 = vunpack.c.l.b16 %v5499
    %v6019 = vunpack.c.l.b16 %v5500
    %v6020 = vunpack.c.l.b16 %v5501
    %v6021 = vunpack.c.l.b16 %v5502
    %v6022 = vunpack.c.l.b16 %v5503
    %v6023 = vunpack.c.l.b16 %v5504
    %v6024 = vunpack.c.l.b16 %v5505
    %v6025 = vunpack.c.l.b16 %v5506
    %v6026 = vunpack.c.l.b16 %v5507
    %v6027 = vunpack.c.l.b16 %v5508
    %v6028 = vunpack.c.l.b16 %v5509
    %v6029 = vunpack.c.l.b16 %v5510
    %v6030 = vunpack.c.l.b16 %v5511
    %v6031 = vunpack.c.l.b16 %v5512
    %v6032 = vunpack.c.l.b16 %v5513
    %v6033 = vunpack.c.l.b16 %v5514
    %v6034 = vunpack.c.l.b16 %v5515
    %v6035 = vunpack.c.l.b16 %v5516
    %v6036 = vunpack.c.l.b16 %v5517
    %v6037 = vunpack.c.l.b16 %v5518
    %v6038 = vunpack.c.l.b16 %v5519
    %v6039 = vunpack.c.l.b16 %v5520
    %v6040 = vunpack.c.l.b16 %v5521
    %v6041 = vunpack.c.l.b16 %v5522
    %v6042 = vunpack.c.l.b16 %v5523
    %v6043 = vunpack.c.l.b16 %v5524
    %v6044 = vunpack.c.l.b16 %v5525
    %v6045 = vunpack.c.l.b16 %v5526
    %v6046 = vunpack.c.l.b16 %v5527
    %v6047 = vunpack.c.l.b16 %v5528
    %v6048 = vunpack.c.l.b16 %v5529
    %v6049 = vunpack.c.l.b16 %v5530
    %v6050 = vunpack.c.l.b16 %v5531
    %v6051 = vunpack.c.l.b16 %v5532
    %v6052 = vunpack.c.l.b16 %v5533
    %v6053 = vunpack.c.l.b16 %v5534
    %v6054 = vunpack.c.l.b16 %v5535
    %v6055 = vunpack.c.l.b16 %v5536
    %v6056 = vunpack.c.l.b16 %v5537
    %v6057 = vunpack.c.l.b16 %v5538
    %v6058 = vunpack.c.l.b16 %v5539
    %v6059 = vunpack.c.l.b16 %v5540
    %v6060 = vunpack.c.l.b16 %v5541
    %v6061 = vunpack.c.l.b16 %v5542
    %v6062 = vunpack.c.l.b16 %v5543
    %v6063 = vunpack.c.l.b16 %v5544
    %v6064 = vunpack.c.l.b16 %v5545
    %v6065 = vunpack.c.l.b16 %v5546
    %v6066 = vunpack.c.l.b16 %v5547
    %v6067 = vunpack.c.l.b16 %v5548
    %v6068 = vunpack.c.l.b16 %v5549
    %v6069 = vunpack.c.l.b16 %v5550
    %v6070 = vunpack.c.l.b16 %v5551
    %v6071 = vunpack.c.l.b16 %v5552
    %v6072 = vunpack.c.l.b16 %v5553
    %v6073 = vunpack.c.l.b16 %v5554
    %v6074 = vunpack.c.l.b16 %v5555
    %v6075 = vunpack.c.l.b16 %v5556
    %v6076 = vunpack.c.l.b16 %v5557
    %v6077 = vunpack.c.l.b16 %v5558
    %v6078 = vunpack.c.l.b16 %v5559
    %v6079 = vunpack.c.l.b16 %v5560
    %v6080 = vunpack.c.l.b16 %v5561
    %v6081 = vunpack.c.l.b16 %v5562
    %v6082 = vunpack.c.l.b16 %v5563
    %v6083 = vunpack.c.l.b16 %v5564
    %v6084 = vunpack.c.l.b16 %v5565
    %v6085 = vunpack.c.l.b16 %v5566
    %v6086 = vunpack.c.l.b16 %v5567
    %v6087 = vunpack.c.l.b16 %v5568
    %v6088 = vunpack.c.l.b16 %v5569
    %v6089 = vunpack.c.l.b16 %v5570
    %v6090 = vunpack.c.l.b16 %v5571
    %v6091 = vunpack.c.l.b16 %v5572
    %v6092 = vunpack.c.l.b16 %v5573
    %v6093 = vunpack.c.l.b16 %v5574
    %v6094 = vunpack.c.l.b16 %v5575
    %v6095 = vunpack.c.l.b16 %v5576
    %v6096 = vunpack.c.l.b16 %v5577
    %v6097 = vunpack.c.l.b16 %v5578
    %v6098 = vunpack.c.l.b16 %v5579
    %v6099 = vunpack.c.l.b16 %v5580
    %v6100 = vunpack.c.l.b16 %v5581
    %v6101 = vunpack.c.l.b16 %v5582
    %v6102 = vunpack.c.l.b16 %v5583
    %v6103 = vunpack.c.l.b16 %v5584
    %v6104 = vunpack.c.l.b16 %v5585
    %v6105 = vunpack.c.l.b16 %v5586
    %v6106 = vunpack.c.l.b16 %v5587
    %v6107 = vunpack.c.l.b16 %v5588
    %v6108 = vunpack.c.l.b16 %v5589
    %v6109 = vunpack.c.l.b16 %v5590
    %v6110 = vunpack.c.l.b16 %v5591
    %v6111 = vunpack.c.l.b16 %v5592
    %v6112 = vunpack.c.l.b16 %v5593
    %v6113 = vunpack.c.l.b16 %v5594
    %v6114 = vunpack.c.l.b16 %v5595
    %v6115 = vunpack.c.l.b16 %v5596
    %v6116 = vunpack.c.l.b16 %v5597
    %v6117 = vunpack.c.l.b16 %v5598
    %v6118 = vunpack.c.l.b16 %v5599
    %v6119 = vunpack.c.l.b16 %v5600
    %v6120 = vunpack.c.l.b16 %v5601
    %v6121 = vunpack.c.l.b16 %v5602
    %v6122 = vunpack.c.l.b16 %v5603
    %v6123 = vunpack.c.l.b16 %v5604
    %v6124 = vunpack.c.l.b16 %v5605
    %v6125 = vunpack.c.l.b16 %v5606
    %v6126 = vunpack.c.l.b16 %v5607
    %v6127 = vunpack.c.l.b16 %v5608
    %v6128 = vunpack.c.l.b16 %v5609
    %v6129 = vunpack.c.l.b16 %v5610
    %v6130 = vunpack.c.l.b16 %v5611
    %v6131 = vunpack.c.l.b16 %v5612
    %v6132 = vunpack.c.l.b16 %v5613
    %v6133 = vunpack.c.l.b16 %v5614
    %v6134 = vunpack.c.l.b16 %v5615
    %v6135 = vunpack.c.l.b16 %v5616
    %v6136 = vunpack.c.l.b16 %v5617
    %v6137 = vunpack.c.l.b16 %v5618
    %v6138 = vunpack.c.l.b16 %v5619
    %v6139 = vunpack.c.l.b16 %v5620
    %v6140 = vunpack.c.l.b16 %v5621
    %v6141 = vunpack.c.l.b16 %v5622
    %v6142 = vunpack.c.l.b16 %v5623
    %v6143 = vunpack.c.l.b16 %v5624
    %v6144 = vunpack.c.l.b16 %v5625
    %v6145 = vunpack.c.l.b16 %v5626
    %v6146 = vunpack.c.l.b16 %v5627
    %v6147 = vunpack.c.l.b16 %v5628
    %v6148 = vunpack.c.l.b16 %v5629
    %v6149 = vunpack.c.l.b16 %v5630
    %v6150 = vunpack.c.l.b16 %v5631
    %v6151 = vunpack.c.l.b16 %v5632
    %v6152 = vunpack.c.l.b16 %v5633
    %v6153 = vunpack.c.l.b16 %v5634
    %v6154 = vunpack.c.l.b16 %v5635
    %v6155 = vunpack.c.l.b16 %v5636
    %v6156 = vunpack.c.l.b16 %v5637
    %v6157 = vunpack.c.l.b16 %v5638
    %v6158 = vunpack.c.l.b16 %v5639
    %v6159 = vunpack.c.l.b16 %v5640
    %v6160 = vunpack.c.l.b16 %v5641
    %v6161 = vunpack.c.l.b16 %v5642
    %v6162 = vunpack.c.l.b16 %v5643
    %v6163 = vunpack.c.l.b16 %v5644
    %v6164 = vunpack.c.l.b16 %v5645
    %v6165 = vunpack.c.l.b16 %v5646
    %v6166 = vunpack.c.l.b16 %v5647
    %v6167 = vunpack.c.l.b16 %v5648
    %v6168 = vunpack.c.l.b16 %v5649
    %v6169 = vunpack.c.l.b16 %v5650
    %v6170 = vunpack.c.l.b16 %v5651
    %v6171 = vunpack.c.l.b16 %v5652
    %v6172 = vunpack.c.l.b16 %v5653
    %v6173 = vunpack.c.l.b16 %v5654
    %v6174 = vunpack.c.l.b16 %v5655
    %v6175 = vunpack.c.l.b16 %v5656
    %v6176 = vunpack.c.l.b16 %v5657
    %v6177 = vunpack.c.l.b16 %v5658
    %v6178 = vunpack.c.l.b16 %v5659
    %v6179 = vunpack.c.l.b16 %v5660
    %v6180 = vunpack.c.l.b16 %v5661
    %v6181 = vunpack.c.l.b16 %v5662
    %v6182 = vunpack.c.l.b16 %v5663
    %v6183 = vunpack.c.l.b16 %v5664
    %v6184 = vunpack.c.l.b16 %v5665
    %v6185 = vunpack.c.l.b16 %v5666
    %v6186 = vunpack.c.l.b16 %v5667
    %v6187 = vunpack.c.l.b16 %v5668
    %v6188 = vunpack.c.l.b16 %v5669
    %v6189 = vunpack.c.l.b16 %v5670
    %v6190 = vunpack.c.l.b16 %v5671
    %v6191 = vunpack.c.l.b16 %v5672
    %v6192 = vunpack.c.l.b16 %v5673
    %v6193 = vunpack.c.l.b16 %v5674
    %v6194 = vunpack.c.l.b16 %v5675
    %v6195 = vunpack.c.l.b16 %v5676
    %v6196 = vunpack.c.l.b16 %v5677
    %v6197 = vunpack.c.l.b16 %v5678
    %v6198 = vunpack.c.l.b16 %v5679
    %v6199 = vunpack.c.l.b16 %v5680
    %v6200 = vunpack.c.l.b16 %v5681
    %v6201 = vunpack.c.l.b16 %v5682
    %v6202 = vunpack.c.l.b16 %v5683
    %v6203 = vunpack.c.l.b16 %v5684
    %v6204 = vunpack.c.l.b16 %v5685
    %v6205 = vunpack.c.l.b16 %v5686
    %v6206 = vunpack.c.l.b16 %v5687
    %v6207 = vunpack.c.l.b16 %v5688
    %v6208 = vunpack.c.l.b16 %v5689
    %v6209 = vunpack.c.l.b16 %v5690
    %v6210 = vunpack.c.l.b16 %v5691
    %v6211 = vunpack.c.l.b16 %v5692
    %v6212 = vunpack.c.l.b16 %v5693
    %v6213 = vunpack.c.l.b16 %v5694
    %v6214 = vunpack.c.l.b16 %v5695
    %v6215 = vunpack.c.l.b16 %v5696
    %v6216 = vunpack.c.l.b16 %v5697
    %v6217 = vunpack.c.l.b16 %v5698
    %v6218 = vunpack.c.l.b16 %v5699
    %v6219 = vpack.c.b16 %v5964, %v5963
    %v6220 = vpack.c.b16 %v5966, %v5965
    %v6221 = vpack.c.b16 %v5968, %v5967
    %v6222 = vpack.c.b16 %v5970, %v5969
    %v6223 = vpack.c.b16 %v5972, %v5971
    %v6224 = vpack.c.b16 %v5974, %v5973
    %v6225 = vpack.c.b16 %v5976, %v5975
    %v6226 = vpack.c.b16 %v5978, %v5977
    %v6227 = vpack.c.b16 %v5980, %v5979
    %v6228 = vpack.c.b16 %v5982, %v5981
    %v6229 = vpack.c.b16 %v5984, %v5983
    %v6230 = vpack.c.b16 %v5986, %v5985
    %v6231 = vpack.c.b16 %v5988, %v5987
    %v6232 = vpack.c.b16 %v5990, %v5989
    %v6233 = vpack.c.b16 %v5992, %v5991
    %v6234 = vpack.c.b16 %v5994, %v5993
    %v6235 = vpack.c.b16 %v5996, %v5995
    %v6236 = vpack.c.b16 %v5998, %v5997
    %v6237 = vpack.c.b16 %v6000, %v5999
    %v6238 = vpack.c.b16 %v6002, %v6001
    %v6239 = vpack.c.b16 %v6004, %v6003
    %v6240 = vpack.c.b16 %v6006, %v6005
    %v6241 = vpack.c.b16 %v6008, %v6007
    %v6242 = vpack.c.b16 %v6010, %v6009
    %v6243 = vpack.c.b16 %v6012, %v6011
    %v6244 = vpack.c.b16 %v6014, %v6013
    %v6245 = vpack.c.b16 %v6016, %v6015
    %v6246 = vpack.c.b16 %v6018, %v6017
    %v6247 = vpack.c.b16 %v6020, %v6019
    %v6248 = vpack.c.b16 %v6022, %v6021
    %v6249 = vpack.c.b16 %v6024, %v6023
    %v6250 = vpack.c.b16 %v6026, %v6025
    %v6251 = vpack.c.b16 %v6028, %v6027
    %v6252 = vpack.c.b16 %v6030, %v6029
    %v6253 = vpack.c.b16 %v6032, %v6031
    %v6254 = vpack.c.b16 %v6034, %v6033
    %v6255 = vpack.c.b16 %v6036, %v6035
    %v6256 = vpack.c.b16 %v6038, %v6037
    %v6257 = vpack.c.b16 %v6040, %v6039
    %v6258 = vpack.c.b16 %v6042, %v6041
    %v6259 = vpack.c.b16 %v6044, %v6043
    %v6260 = vpack.c.b16 %v6046, %v6045
    %v6261 = vpack.c.b16 %v6048, %v6047
    %v6262 = vpack.c.b16 %v6050, %v6049
    %v6263 = vpack.c.b16 %v6052, %v6051
    %v6264 = vpack.c.b16 %v6054, %v6053
    %v6265 = vpack.c.b16 %v6056, %v6055
    %v6266 = vpack.c.b16 %v6058, %v6057
    %v6267 = vpack.c.b16 %v6060, %v6059
    %v6268 = vpack.c.b16 %v6062, %v6061
    %v6269 = vpack.c.b16 %v6064, %v6063
    %v6270 = vpack.c.b16 %v6066, %v6065
    %v6271 = vpack.c.b16 %v6068, %v6067
    %v6272 = vpack.c.b16 %v6070, %v6069
    %v6273 = vpack.c.b16 %v6072, %v6071
    %v6274 = vpack.c.b16 %v6074, %v6073
    %v6275 = vpack.c.b16 %v6076, %v6075
    %v6276 = vpack.c.b16 %v6078, %v6077
    %v6277 = vpack.c.b16 %v6080, %v6079
    %v6278 = vpack.c.b16 %v6082, %v6081
    %v6279 = vpack.c.b16 %v6084, %v6083
    %v6280 = vpack.c.b16 %v6086, %v6085
    %v6281 = vpack.c.b16 %v6088, %v6087
    %v6282 = vpack.c.b16 %v6090, %v6089
    %v6283 = vpack.c.b16 %v6092, %v6091
    %v6284 = vpack.c.b16 %v6094, %v6093
    %v6285 = vpack.c.b16 %v6096, %v6095
    %v6286 = vpack.c.b16 %v6098, %v6097
    %v6287 = vpack.c.b16 %v6100, %v6099
    %v6288 = vpack.c.b16 %v6102, %v6101
    %v6289 = vpack.c.b16 %v6104, %v6103
    %v6290 = vpack.c.b16 %v6106, %v6105
    %v6291 = vpack.c.b16 %v6108, %v6107
    %v6292 = vpack.c.b16 %v6110, %v6109
    %v6293 = vpack.c.b16 %v6112, %v6111
    %v6294 = vpack.c.b16 %v6114, %v6113
    %v6295 = vpack.c.b16 %v6116, %v6115
    %v6296 = vpack.c.b16 %v6118, %v6117
    %v6297 = vpack.c.b16 %v6120, %v6119
    %v6298 = vpack.c.b16 %v6122, %v6121
    %v6299 = vpack.c.b16 %v6124, %v6123
    %v6300 = vpack.c.b16 %v6126, %v6125
    %v6301 = vpack.c.b16 %v6128, %v6127
    %v6302 = vpack.c.b16 %v6130, %v6129
    %v6303 = vpack.c.b16 %v6132, %v6131
    %v6304 = vpack.c.b16 %v6134, %v6133
    %v6305 = vpack.c.b16 %v6136, %v6135
    %v6306 = vpack.c.b16 %v6138, %v6137
    %v6307 = vpack.c.b16 %v6140, %v6139
    %v6308 = vpack.c.b16 %v6142, %v6141
    %v6309 = vpack.c.b16 %v6144, %v6143
    %v6310 = vpack.c.b16 %v6146, %v6145
    %v6311 = vpack.c.b16 %v6148, %v6147
    %v6312 = vpack.c.b16 %v6150, %v6149
    %v6313 = vpack.c.b16 %v6152, %v6151
    %v6314 = vpack.c.b16 %v6154, %v6153
    %v6315 = vpack.c.b16 %v6156, %v6155
    %v6316 = vpack.c.b16 %v6158, %v6157
    %v6317 = vpack.c.b16 %v6160, %v6159
    %v6318 = vpack.c.b16 %v6162, %v6161
    %v6319 = vpack.c.b16 %v6164, %v6163
    %v6320 = vpack.c.b16 %v6166, %v6165
    %v6321 = vpack.c.b16 %v6168, %v6167
    %v6322 = vpack.c.b16 %v6170, %v6169
    %v6323 = vpack.c.b16 %v6172, %v6171
    %v6324 = vpack.c.b16 %v6174, %v6173
    %v6325 = vpack.c.b16 %v6176, %v6175
    %v6326 = vpack.c.b16 %v6178, %v6177
    %v6327 = vpack.c.b16 %v6180, %v6179
    %v6328 = vpack.c.b16 %v6182, %v6181
    %v6329 = vpack.c.b16 %v6184, %v6183
    %v6330 = vpack.c.b16 %v6186, %v6185
    %v6331 = vpack.c.b16 %v6188, %v6187
    %v6332 = vpack.c.b16 %v6190, %v6189
    %v6333 = vpack.c.b16 %v6192, %v6191
    %v6334 = vpack.c.b16 %v6194, %v6193
    %v6335 = vpack.c.b16 %v6196, %v6195
    %v6336 = vpack.c.b16 %v6198, %v6197
    %v6337 = vpack.c.b16 %v6200, %v6199
    %v6338 = vpack.c.b16 %v6202, %v6201
    %v6339 = vpack.c.b16 %v6204, %v6203
    %v6340 = vpack.c.b16 %v6206, %v6205
    %v6341 = vpack.c.b16 %v6208, %v6207
    %v6342 = vpack.c.b16 %v6210, %v6209
    %v6343 = vpack.c.b16 %v6212, %v6211
    %v6344 = vpack.c.b16 %v6214, %v6213
    %v6345 = vpack.c.b16 %v6216, %v6215
    %v6346 = vpack.c.b16 %v6218, %v6217
    %6475 = vmatprep.subr.bf16.mxu0 0
    %6476 = vmatpush1.bf16.msra.mxu0 %v6219
    %6477 = vmatprep.subr.bf16.mxu0 0
    %6478 = vmatpush1.bf16.msra.mxu0 %v6220
    %6479 = vmatprep.subr.bf16.mxu0 0
    %6480 = vmatpush1.bf16.msra.mxu0 %v6221
    %6481 = vmatprep.subr.bf16.mxu0 0
    %6482 = vmatpush1.bf16.msra.mxu0 %v6222
    %6483 = vmatprep.subr.bf16.mxu0 0
    %6484 = vmatpush1.bf16.msra.mxu0 %v6223
    %6485 = vmatprep.subr.bf16.mxu0 0
    %6486 = vmatpush1.bf16.msra.mxu0 %v6224
    %6487 = vmatprep.subr.bf16.mxu0 0
    %6488 = vmatpush1.bf16.msra.mxu0 %v6225
    %6489 = vmatprep.subr.bf16.mxu0 0
    %6490 = vmatpush1.bf16.msra.mxu0 %v6226
    %6491 = vmatprep.subr.bf16.mxu0 0
    %6492 = vmatpush1.bf16.msra.mxu0 %v6227
    %6493 = vmatprep.subr.bf16.mxu0 0
    %6494 = vmatpush1.bf16.msra.mxu0 %v6228
    %6495 = vmatprep.subr.bf16.mxu0 0
    %6496 = vmatpush1.bf16.msra.mxu0 %v6229
    %6497 = vmatprep.subr.bf16.mxu0 0
    %6498 = vmatpush1.bf16.msra.mxu0 %v6230
    %6499 = vmatprep.subr.bf16.mxu0 0
    %6500 = vmatpush1.bf16.msra.mxu0 %v6231
    %6501 = vmatprep.subr.bf16.mxu0 0
    %6502 = vmatpush1.bf16.msra.mxu0 %v6232
    %6503 = vmatprep.subr.bf16.mxu0 0
    %6504 = vmatpush1.bf16.msra.mxu0 %v6233
    %6505 = vmatprep.subr.bf16.mxu0 0
    %6506 = vmatpush1.bf16.msra.mxu0 %v6234
    %6507 = vmatprep.mubr.bf16.mxu0 %v5429
    %6508 = vmatmul.mubr.bf16.gmra.mrb[0].mxu0 %v5428
    %v6509 = vpop.f32.mrb[0].mxu0
    %v6510 = vadd.f32 %v5705, %v6509
    %v6511 = vpop.f32.mrb[0].mxu0
    %v6512 = vpop.f32.mrb[0].mxu0
    %v6513 = vpop.f32.mrb[0].mxu0
    %6514 = vdwg.mxu0
    %6515 = vmatprep.subr.bf16.mxu0 0
    %6516 = vmatpush1.bf16.msra.mxu0 %v6235
    %6517 = vmatprep.subr.bf16.mxu0 0
    %6518 = vmatpush1.bf16.msra.mxu0 %v6236
    %6519 = vmatprep.subr.bf16.mxu0 0
    %6520 = vmatpush1.bf16.msra.mxu0 %v6237
    %6521 = vmatprep.subr.bf16.mxu0 0
    %6522 = vmatpush1.bf16.msra.mxu0 %v6238
    %6523 = vmatprep.subr.bf16.mxu0 0
    %6524 = vmatpush1.bf16.msra.mxu0 %v6239
    %6525 = vmatprep.subr.bf16.mxu0 0
    %6526 = vmatpush1.bf16.msra.mxu0 %v6240
    %6527 = vmatprep.subr.bf16.mxu0 0
    %6528 = vmatpush1.bf16.msra.mxu0 %v6241
    %6529 = vmatprep.subr.bf16.mxu0 0
    %6530 = vmatpush1.bf16.msra.mxu0 %v6242
    %6531 = vmatprep.subr.bf16.mxu0 0
    %6532 = vmatpush1.bf16.msra.mxu0 %v6243
    %6533 = vmatprep.subr.bf16.mxu0 0
    %6534 = vmatpush1.bf16.msra.mxu0 %v6244
    %6535 = vmatprep.subr.bf16.mxu0 0
    %6536 = vmatpush1.bf16.msra.mxu0 %v6245
    %6537 = vmatprep.subr.bf16.mxu0 0
    %6538 = vmatpush1.bf16.msra.mxu0 %v6246
    %6539 = vmatprep.subr.bf16.mxu0 0
    %6540 = vmatpush1.bf16.msra.mxu0 %v6247
    %6541 = vmatprep.subr.bf16.mxu0 0
    %6542 = vmatpush1.bf16.msra.mxu0 %v6248
    %6543 = vmatprep.subr.bf16.mxu0 0
    %6544 = vmatpush1.bf16.msra.mxu0 %v6249
    %6545 = vmatprep.subr.bf16.mxu0 0
    %6546 = vmatpush1.bf16.msra.mxu0 %v6250
    %6547 = vmatprep.mubr.bf16.mxu0 %v5431
    %6548 = vmatmul.mubr.bf16.gmra.mrb[0].mxu0 %v5430
    %v6549 = vpop.f32.mrb[0].mxu0
    %v6550 = vadd.f32 %v6510, %v6549
    %v6551 = vpop.f32.mrb[0].mxu0
    %v6552 = vpop.f32.mrb[0].mxu0
    %v6553 = vpop.f32.mrb[0].mxu0
    %6554 = vdwg.mxu0
    %6555 = vmatprep.subr.bf16.mxu0 0
    %6556 = vmatpush1.bf16.msra.mxu0 %v6251
    %6557 = vmatprep.subr.bf16.mxu0 0
    %6558 = vmatpush1.bf16.msra.mxu0 %v6252
    %6559 = vmatprep.subr.bf16.mxu0 0
    %6560 = vmatpush1.bf16.msra.mxu0 %v6253
    %6561 = vmatprep.subr.bf16.mxu0 0
    %6562 = vmatpush1.bf16.msra.mxu0 %v6254
    %6563 = vmatprep.subr.bf16.mxu0 0
    %6564 = vmatpush1.bf16.msra.mxu0 %v6255
    %6565 = vmatprep.subr.bf16.mxu0 0
    %6566 = vmatpush1.bf16.msra.mxu0 %v6256
    %6567 = vmatprep.subr.bf16.mxu0 0
    %6568 = vmatpush1.bf16.msra.mxu0 %v6257
    %6569 = vmatprep.subr.bf16.mxu0 0
    %6570 = vmatpush1.bf16.msra.mxu0 %v6258
    %6571 = vmatprep.subr.bf16.mxu0 0
    %6572 = vmatpush1.bf16.msra.mxu0 %v6259
    %6573 = vmatprep.subr.bf16.mxu0 0
    %6574 = vmatpush1.bf16.msra.mxu0 %v6260
    %6575 = vmatprep.subr.bf16.mxu0 0
    %6576 = vmatpush1.bf16.msra.mxu0 %v6261
    %6577 = vmatprep.subr.bf16.mxu0 0
    %6578 = vmatpush1.bf16.msra.mxu0 %v6262
    %6579 = vmatprep.subr.bf16.mxu0 0
    %6580 = vmatpush1.bf16.msra.mxu0 %v6263
    %6581 = vmatprep.subr.bf16.mxu0 0
    %6582 = vmatpush1.bf16.msra.mxu0 %v6264
    %6583 = vmatprep.subr.bf16.mxu0 0
    %6584 = vmatpush1.bf16.msra.mxu0 %v6265
    %6585 = vmatprep.subr.bf16.mxu0 0
    %6586 = vmatpush1.bf16.msra.mxu0 %v6266
    %6587 = vmatprep.mubr.bf16.mxu0 %v5433
    %6588 = vmatmul.mubr.bf16.gmra.mrb[0].mxu0 %v5432
    %v6589 = vpop.f32.mrb[0].mxu0
    %v6590 = vadd.f32 %v6550, %v6589
    %v6591 = vpop.f32.mrb[0].mxu0
    %v6592 = vpop.f32.mrb[0].mxu0
    %v6593 = vpop.f32.mrb[0].mxu0
    %6594 = vdwg.mxu0
    %6595 = vmatprep.subr.bf16.mxu0 0
    %6596 = vmatpush1.bf16.msra.mxu0 %v6267
    %6597 = vmatprep.subr.bf16.mxu0 0
    %6598 = vmatpush1.bf16.msra.mxu0 %v6268
    %6599 = vmatprep.subr.bf16.mxu0 0
    %6600 = vmatpush1.bf16.msra.mxu0 %v6269
    %6601 = vmatprep.subr.bf16.mxu0 0
    %6602 = vmatpush1.bf16.msra.mxu0 %v6270
    %6603 = vmatprep.subr.bf16.mxu0 0
    %6604 = vmatpush1.bf16.msra.mxu0 %v6271
    %6605 = vmatprep.subr.bf16.mxu0 0
    %6606 = vmatpush1.bf16.msra.mxu0 %v6272
    %6607 = vmatprep.subr.bf16.mxu0 0
    %6608 = vmatpush1.bf16.msra.mxu0 %v6273
    %6609 = vmatprep.subr.bf16.mxu0 0
    %6610 = vmatpush1.bf16.msra.mxu0 %v6274
    %6611 = vmatprep.subr.bf16.mxu0 0
    %6612 = vmatpush1.bf16.msra.mxu0 %v6275
    %6613 = vmatprep.subr.bf16.mxu0 0
    %6614 = vmatpush1.bf16.msra.mxu0 %v6276
    %6615 = vmatprep.subr.bf16.mxu0 0
    %6616 = vmatpush1.bf16.msra.mxu0 %v6277
    %6617 = vmatprep.subr.bf16.mxu0 0
    %6618 = vmatpush1.bf16.msra.mxu0 %v6278
    %6619 = vmatprep.subr.bf16.mxu0 0
    %6620 = vmatpush1.bf16.msra.mxu0 %v6279
    %6621 = vmatprep.subr.bf16.mxu0 0
    %6622 = vmatpush1.bf16.msra.mxu0 %v6280
    %6623 = vmatprep.subr.bf16.mxu0 0
    %6624 = vmatpush1.bf16.msra.mxu0 %v6281
    %6625 = vmatprep.subr.bf16.mxu0 0
    %6626 = vmatpush1.bf16.msra.mxu0 %v6282
    %6627 = vmatprep.mubr.bf16.mxu0 %v5435
    %6628 = vmatmul.mubr.bf16.gmra.mrb[0].mxu0 %v5434
    %v6629 = vpop.f32.mrb[0].mxu0
    %v6630 = vadd.f32 %v6590, %v6629
    %v6631 = vpop.f32.mrb[0].mxu0
    %v6632 = vpop.f32.mrb[0].mxu0
    %v6633 = vpop.f32.mrb[0].mxu0
    %6634 = vdwg.mxu0
    %6635 = vmatprep.subr.bf16.mxu0 0
    %6636 = vmatpush1.bf16.msra.mxu0 %v6283
    %6637 = vmatprep.subr.bf16.mxu0 0
    %6638 = vmatpush1.bf16.msra.mxu0 %v6284
    %6639 = vmatprep.subr.bf16.mxu0 0
    %6640 = vmatpush1.bf16.msra.mxu0 %v6285
    %6641 = vmatprep.subr.bf16.mxu0 0
    %6642 = vmatpush1.bf16.msra.mxu0 %v6286
    %6643 = vmatprep.subr.bf16.mxu0 0
    %6644 = vmatpush1.bf16.msra.mxu0 %v6287
    %6645 = vmatprep.subr.bf16.mxu0 0
    %6646 = vmatpush1.bf16.msra.mxu0 %v6288
    %6647 = vmatprep.subr.bf16.mxu0 0
    %6648 = vmatpush1.bf16.msra.mxu0 %v6289
    %6649 = vmatprep.subr.bf16.mxu0 0
    %6650 = vmatpush1.bf16.msra.mxu0 %v6290
    %6651 = vmatprep.subr.bf16.mxu0 0
    %6652 = vmatpush1.bf16.msra.mxu0 %v6291
    %6653 = vmatprep.subr.bf16.mxu0 0
    %6654 = vmatpush1.bf16.msra.mxu0 %v6292
    %6655 = vmatprep.subr.bf16.mxu0 0
    %6656 = vmatpush1.bf16.msra.mxu0 %v6293
    %6657 = vmatprep.subr.bf16.mxu0 0
    %6658 = vmatpush1.bf16.msra.mxu0 %v6294
    %6659 = vmatprep.subr.bf16.mxu0 0
    %6660 = vmatpush1.bf16.msra.mxu0 %v6295
    %6661 = vmatprep.subr.bf16.mxu0 0
    %6662 = vmatpush1.bf16.msra.mxu0 %v6296
    %6663 = vmatprep.subr.bf16.mxu0 0
    %6664 = vmatpush1.bf16.msra.mxu0 %v6297
    %6665 = vmatprep.subr.bf16.mxu0 0
    %6666 = vmatpush1.bf16.msra.mxu0 %v6298
    %6667 = vmatprep.mubr.bf16.mxu0 %v5437
    %6668 = vmatmul.mubr.bf16.gmra.mrb[0].mxu0 %v5436
    %v6669 = vpop.f32.mrb[0].mxu0
    %v6670 = vadd.f32 %v6630, %v6669
    %v6671 = vpop.f32.mrb[0].mxu0
    %v6672 = vpop.f32.mrb[0].mxu0
    %v6673 = vpop.f32.mrb[0].mxu0
    %6674 = vdwg.mxu0
    %6675 = vmatprep.subr.bf16.mxu0 0
    %6676 = vmatpush1.bf16.msra.mxu0 %v6299
    %6677 = vmatprep.subr.bf16.mxu0 0
    %6678 = vmatpush1.bf16.msra.mxu0 %v6300
    %6679 = vmatprep.subr.bf16.mxu0 0
    %6680 = vmatpush1.bf16.msra.mxu0 %v6301
    %6681 = vmatprep.subr.bf16.mxu0 0
    %6682 = vmatpush1.bf16.msra.mxu0 %v6302
    %6683 = vmatprep.subr.bf16.mxu0 0
    %6684 = vmatpush1.bf16.msra.mxu0 %v6303
    %6685 = vmatprep.subr.bf16.mxu0 0
    %6686 = vmatpush1.bf16.msra.mxu0 %v6304
    %6687 = vmatprep.subr.bf16.mxu0 0
    %6688 = vmatpush1.bf16.msra.mxu0 %v6305
    %6689 = vmatprep.subr.bf16.mxu0 0
    %6690 = vmatpush1.bf16.msra.mxu0 %v6306
    %6691 = vmatprep.subr.bf16.mxu0 0
    %6692 = vmatpush1.bf16.msra.mxu0 %v6307
    %6693 = vmatprep.subr.bf16.mxu0 0
    %6694 = vmatpush1.bf16.msra.mxu0 %v6308
    %6695 = vmatprep.subr.bf16.mxu0 0
    %6696 = vmatpush1.bf16.msra.mxu0 %v6309
    %6697 = vmatprep.subr.bf16.mxu0 0
    %6698 = vmatpush1.bf16.msra.mxu0 %v6310
    %6699 = vmatprep.subr.bf16.mxu0 0
    %6700 = vmatpush1.bf16.msra.mxu0 %v6311
    %6701 = vmatprep.subr.bf16.mxu0 0
    %6702 = vmatpush1.bf16.msra.mxu0 %v6312
    %6703 = vmatprep.subr.bf16.mxu0 0
    %6704 = vmatpush1.bf16.msra.mxu0 %v6313
    %6705 = vmatprep.subr.bf16.mxu0 0
    %6706 = vmatpush1.bf16.msra.mxu0 %v6314
    %6707 = vmatprep.mubr.bf16.mxu0 %v5439
    %6708 = vmatmul.mubr.bf16.gmra.mrb[0].mxu0 %v5438
    %v6709 = vpop.f32.mrb[0].mxu0
    %v6710 = vadd.f32 %v6670, %v6709
    %v6711 = vpop.f32.mrb[0].mxu0
    %v6712 = vpop.f32.mrb[0].mxu0
    %v6713 = vpop.f32.mrb[0].mxu0
    %6714 = vdwg.mxu0
    %6715 = vmatprep.subr.bf16.mxu0 0
    %6716 = vmatpush1.bf16.msra.mxu0 %v6315
    %6717 = vmatprep.subr.bf16.mxu0 0
    %6718 = vmatpush1.bf16.msra.mxu0 %v6316
    %6719 = vmatprep.subr.bf16.mxu0 0
    %6720 = vmatpush1.bf16.msra.mxu0 %v6317
    %6721 = vmatprep.subr.bf16.mxu0 0
    %6722 = vmatpush1.bf16.msra.mxu0 %v6318
    %6723 = vmatprep.subr.bf16.mxu0 0
    %6724 = vmatpush1.bf16.msra.mxu0 %v6319
    %6725 = vmatprep.subr.bf16.mxu0 0
    %6726 = vmatpush1.bf16.msra.mxu0 %v6320
    %6727 = vmatprep.subr.bf16.mxu0 0
    %6728 = vmatpush1.bf16.msra.mxu0 %v6321
    %6729 = vmatprep.subr.bf16.mxu0 0
    %6730 = vmatpush1.bf16.msra.mxu0 %v6322
    %6731 = vmatprep.subr.bf16.mxu0 0
    %6732 = vmatpush1.bf16.msra.mxu0 %v6323
    %6733 = vmatprep.subr.bf16.mxu0 0
    %6734 = vmatpush1.bf16.msra.mxu0 %v6324
    %6735 = vmatprep.subr.bf16.mxu0 0
    %6736 = vmatpush1.bf16.msra.mxu0 %v6325
    %6737 = vmatprep.subr.bf16.mxu0 0
    %6738 = vmatpush1.bf16.msra.mxu0 %v6326
    %6739 = vmatprep.subr.bf16.mxu0 0
    %6740 = vmatpush1.bf16.msra.mxu0 %v6327
    %6741 = vmatprep.subr.bf16.mxu0 0
    %6742 = vmatpush1.bf16.msra.mxu0 %v6328
    %6743 = vmatprep.subr.bf16.mxu0 0
    %6744 = vmatpush1.bf16.msra.mxu0 %v6329
    %6745 = vmatprep.subr.bf16.mxu0 0
    %6746 = vmatpush1.bf16.msra.mxu0 %v6330
    %6747 = vmatprep.mubr.bf16.mxu0 %v5441
    %6748 = vmatmul.mubr.bf16.gmra.mrb[0].mxu0 %v5440
    %v6749 = vpop.f32.mrb[0].mxu0
    %v6750 = vadd.f32 %v6710, %v6749
    %v6751 = vpop.f32.mrb[0].mxu0
    %v6752 = vpop.f32.mrb[0].mxu0
    %v6753 = vpop.f32.mrb[0].mxu0
    %6754 = vdwg.mxu0
    %6755 = vmatprep.subr.bf16.mxu0 0
    %6756 = vmatpush1.bf16.msra.mxu0 %v6331
    %6757 = vmatprep.subr.bf16.mxu0 0
    %6758 = vmatpush1.bf16.msra.mxu0 %v6332
    %6759 = vmatprep.subr.bf16.mxu0 0
    %6760 = vmatpush1.bf16.msra.mxu0 %v6333
    %6761 = vmatprep.subr.bf16.mxu0 0
    %6762 = vmatpush1.bf16.msra.mxu0 %v6334
    %6763 = vmatprep.subr.bf16.mxu0 0
    %6764 = vmatpush1.bf16.msra.mxu0 %v6335
    %6765 = vmatprep.subr.bf16.mxu0 0
    %6766 = vmatpush1.bf16.msra.mxu0 %v6336
    %6767 = vmatprep.subr.bf16.mxu0 0
    %6768 = vmatpush1.bf16.msra.mxu0 %v6337
    %6769 = vmatprep.subr.bf16.mxu0 0
    %6770 = vmatpush1.bf16.msra.mxu0 %v6338
    %6771 = vmatprep.subr.bf16.mxu0 0
    %6772 = vmatpush1.bf16.msra.mxu0 %v6339
    %6773 = vmatprep.subr.bf16.mxu0 0
    %6774 = vmatpush1.bf16.msra.mxu0 %v6340
    %6775 = vmatprep.subr.bf16.mxu0 0
    %6776 = vmatpush1.bf16.msra.mxu0 %v6341
    %6777 = vmatprep.subr.bf16.mxu0 0
    %6778 = vmatpush1.bf16.msra.mxu0 %v6342
    %6779 = vmatprep.subr.bf16.mxu0 0
    %6780 = vmatpush1.bf16.msra.mxu0 %v6343
    %6781 = vmatprep.subr.bf16.mxu0 0
    %6782 = vmatpush1.bf16.msra.mxu0 %v6344
    %6783 = vmatprep.subr.bf16.mxu0 0
    %6784 = vmatpush1.bf16.msra.mxu0 %v6345
    %6785 = vmatprep.subr.bf16.mxu0 0
    %6786 = vmatpush1.bf16.msra.mxu0 %v6346
    %6787 = vmatprep.mubr.bf16.mxu0 %v5443
    %6788 = vmatmul.mubr.bf16.gmra.mrb[0].mxu0 %v5442
    %v6789 = vpop.f32.mrb[0].mxu0
    %v6790 = vadd.f32 %v6750, %v6789
    %v6791 = vpop.f32.mrb[0].mxu0
    %v6792 = vpop.f32.mrb[0].mxu0
    %v6793 = vpop.f32.mrb[0].mxu0
    %6794 = vdwg.mxu0
    %6795 = vst [vmem:[%s9] sm:$0xff] %v6790
    // Predicated region
    $region70: #{simple_net_forward.1} parent=1 // pred_check
      _
    $region71: #{simple_net_forward.1} parent=1 // pred_check_branch
      %6797 = sbr.rel (0) target = $region73
    $region72: #{simple_net_forward.1} parent=1 // pred_region
      _
    $region73: #{simple_net_forward.1} parent=1 // pred_fallthru
      _
    // Predicated region
    $region74: #{simple_net_forward.1} parent=1 // pred_check
      _
    $region75: #{simple_net_forward.1} parent=1 // pred_check_branch
      %6799 = sbr.rel (0) target = $region77
    $region76: #{simple_net_forward.1} parent=1 // pred_region
      _
    $region77: #{simple_net_forward.1} parent=1 // pred_fallthru
      _
    %6800 = vsyncpa [#allocation3], 1
    %6801 = vsyncpa [#allocation5], 1
    %6802 = vsyncpa [#allocation8], 1
    %6803 = vsyncpa [#allocation11], 1
    %6804 = vsyncpa [#allocation14], 1

</llo_original>
